<compile_context>
chip_gen: v6e
topology: v6e:2x2x1
jax: 0.10.0
libtpu: 0.0.40
codegen_flags: <defaults>
</compile_context>

<pallas_src>
import functools

import jax
import jax.numpy as jnp
import numpy as np
from jax.experimental import pallas as pl
from jax.experimental.pallas import tpu as pltpu


def _gelu_tanh(x):
    # tanh-approximate GELU (tanh runs on the EUP slot).
    c = 0.7978845608028654  # sqrt(2/pi)
    return 0.5 * x * (1.0 + jnp.tanh(c * (x + 0.044715 * (x * x * x))))


def _layer_norm(x, gamma, beta, eps):
    mean = jnp.mean(x, axis=-1, keepdims=True)
    cent = x - mean
    var = jnp.mean(cent * cent, axis=-1, keepdims=True)
    return cent * jax.lax.rsqrt(var + eps) * gamma + beta


def _encoder_layer_kernel(x_ref, mask_ref,
                          wq_ref, bq_ref, wk_ref, bk_ref, wv_ref, bv_ref,
                          wo_ref, bo_ref,
                          ln1_g_ref, ln1_b_ref,
                          w1_ref, b1_ref, w2_ref, b2_ref,
                          ln2_g_ref, ln2_b_ref,
                          out_ref, prob_ref,
                          *, n_head, scale, eps):
    f32 = jnp.float32
    x = x_ref[...]                                    # (S, D)
    S, D = x.shape
    mask = mask_ref[...].astype(jnp.int32) != 0       # (S_q, S_k) bool, True = masked

    # ---- Multi-head attention -------------------------------------------
    # Per-head projections as one batched contraction (head = leading batch dim):
    # no lane slices of a fused (S, n_head*d_head) tile, no transposes in-kernel.
    xb = jnp.broadcast_to(x, (n_head, S, D))          # (H, S, D)
    qs = jnp.einsum('hsk,hkd->hsd', xb, wq_ref[...],
                    preferred_element_type=f32) + bq_ref[...]
    ks = jnp.einsum('hsk,hkd->hsd', xb, wk_ref[...],
                    preferred_element_type=f32) + bk_ref[...]
    vs = jnp.einsum('hsk,hkd->hsd', xb, wv_ref[...],
                    preferred_element_type=f32) + bv_ref[...]

    # Scores: contraction over d_head of both operands (no explicit kh.T transpose).
    scores = jnp.einsum('hqd,hkd->hqk', qs, ks,
                        preferred_element_type=f32) * scale
    scores = jnp.where(mask[None, :, :], jnp.float32(-1e9), scores)

    # Softmax in f32: EUP reciprocal estimate + one Newton step (keeps ~f32 accuracy).
    m = jnp.max(scores, axis=-1, keepdims=True)
    e = jnp.exp(scores - m)
    denom = jnp.sum(e, axis=-1, keepdims=True)
    inv = pl.reciprocal(denom, approx=True)
    inv = inv * (2.0 - denom * inv)
    prob = e * inv                                    # (H, S_q, S_k)
    prob_ref[...] = prob.astype(prob_ref.dtype)

    # Context + output projection accumulated over heads (no concatenate).
    ctx = jnp.einsum('hqk,hkd->hqd', prob.astype(vs.dtype), vs,
                     preferred_element_type=f32)      # (H, S_q, d_head)
    att = jnp.sum(jnp.einsum('hqd,hde->hqe', ctx.astype(wo_ref.dtype),
                             wo_ref[...], preferred_element_type=f32),
                  axis=0) + bo_ref[...]               # (S, D)

    # ---- Residual + LayerNorm1 ------------------------------------------
    y1 = _layer_norm(x.astype(f32) + att, ln1_g_ref[...], ln1_b_ref[...], eps)

    # ---- Position-wise FFN (1x1 convs == linears) ------------------------
    h = jnp.dot(y1.astype(w1_ref.dtype), w1_ref[...],
                preferred_element_type=f32) + b1_ref[...]
    h = _gelu_tanh(h)
    f = jnp.dot(h.astype(w2_ref.dtype), w2_ref[...],
                preferred_element_type=f32) + b2_ref[...]

    # ---- Residual + LayerNorm2 ------------------------------------------
    y2 = _layer_norm(f + y1, ln2_g_ref[...], ln2_b_ref[...], eps)
    out_ref[...] = y2.astype(out_ref.dtype)


def encoder_layer(inputs, attn_mask, params, *, n_head, d_head, eps,
                  compute_dtype=jnp.float32):
    """Pallas-backed EncoderLayer forward (inference; dropout = identity).

    Returns (enc_outputs, attn_prob) like the PyTorch module.
    compute_dtype: dtype of MXU operands (use jnp.bfloat16 on v6e/v7x); accumulation,
    softmax and layernorm math stay in float32.
    """
    B, S, D = inputs.shape
    d_ff = params["w1"].shape[1]
    scale = 1.0 / float(d_head) ** 0.5
    cd = compute_dtype
    f32 = jnp.float32

    x = inputs.astype(cd)
    mask_i8 = attn_mask.astype(jnp.int8)              # True = masked position

    # Head-major weight layouts built wrapper-side so the kernel never slices or
    # transposes along the lane axis.
    def head_major_in(w):     # (D, H*dh) -> (H, D, dh)
        return w.reshape(D, n_head, d_head).transpose(1, 0, 2).astype(cd)

    wq_r = head_major_in(params["wq"])
    wk_r = head_major_in(params["wk"])
    wv_r = head_major_in(params["wv"])
    bq_r = params["bq"].reshape(n_head, 1, d_head).astype(f32)
    bk_r = params["bk"].reshape(n_head, 1, d_head).astype(f32)
    bv_r = params["bv"].reshape(n_head, 1, d_head).astype(f32)
    wo_r = params["wo"].reshape(n_head, d_head, D).astype(cd)   # (H, dh, D)
    bo_r = params["bo"].reshape(1, D).astype(f32)

    ln1_g = params["ln1_g"].reshape(1, D).astype(f32)
    ln1_b = params["ln1_b"].reshape(1, D).astype(f32)
    ln2_g = params["ln2_g"].reshape(1, D).astype(f32)
    ln2_b = params["ln2_b"].reshape(1, D).astype(f32)
    w1 = params["w1"].astype(cd)
    b1 = params["b1"].reshape(1, d_ff).astype(f32)
    w2 = params["w2"].astype(cd)
    b2 = params["b2"].reshape(1, D).astype(f32)

    kernel = functools.partial(_encoder_layer_kernel, n_head=n_head,
                               scale=scale, eps=eps)

    full2 = lambda b: (0, 0)
    full3 = lambda b: (0, 0, 0)

    grid_spec = pltpu.PrefetchScalarGridSpec(
        num_scalar_prefetch=0,
        grid=(B,),
        in_specs=[
            pl.BlockSpec((None, S, D), lambda b: (b, 0, 0)),     # x
            pl.BlockSpec((None, S, S), lambda b: (b, 0, 0)),     # mask (int8)
            pl.BlockSpec((n_head, D, d_head), full3),            # W_Q (head-major)
            pl.BlockSpec((n_head, 1, d_head), full3),            # b_Q
            pl.BlockSpec((n_head, D, d_head), full3),            # W_K
            pl.BlockSpec((n_head, 1, d_head), full3),            # b_K
            pl.BlockSpec((n_head, D, d_head), full3),            # W_V
            pl.BlockSpec((n_head, 1, d_head), full3),            # b_V
            pl.BlockSpec((n_head, d_head, D), full3),            # W_out (head-major)
            pl.BlockSpec((1, D), full2),                         # b_out
            pl.BlockSpec((1, D), full2),                         # ln1 gamma
            pl.BlockSpec((1, D), full2),                         # ln1 beta
            pl.BlockSpec((D, d_ff), full2),                      # FFN W1
            pl.BlockSpec((1, d_ff), full2),                      # FFN b1
            pl.BlockSpec((d_ff, D), full2),                      # FFN W2
            pl.BlockSpec((1, D), full2),                         # FFN b2
            pl.BlockSpec((1, D), full2),                         # ln2 gamma
            pl.BlockSpec((1, D), full2),                         # ln2 beta
        ],
        out_specs=(
            pl.BlockSpec((None, S, D), lambda b: (b, 0, 0)),             # enc out
            pl.BlockSpec((None, n_head, S, S), lambda b: (b, 0, 0, 0)),  # attn_prob
        ),
    )

    out, prob = pl.pallas_call(
        kernel,
        out_shape=(
            jax.ShapeDtypeStruct((B, S, D), inputs.dtype),
            jax.ShapeDtypeStruct((B, n_head, S, S), jnp.float32),
        ),
        grid_spec=grid_spec,
        compiler_params=pltpu.CompilerParams(
            dimension_semantics=("parallel",)),
    )(x, mask_i8,
      wq_r, bq_r, wk_r, bk_r, wv_r, bv_r, wo_r, bo_r,
      ln1_g, ln1_b, w1, b1, w2, b2, ln2_g, ln2_b)
    return out, prob


def _reference(inputs, attn_mask, params, *, n_head, d_head, eps):
    """Pure-JAX reference matching the PyTorch EncoderLayer (eval mode, tanh GELU)."""
    B, S, D = inputs.shape
    d_all = n_head * d_head
    scale = 1.0 / float(d_head) ** 0.5

    def proj(w, b):
        y = inputs @ w + b
        return y.reshape(B, S, n_head, d_head).transpose(0, 2, 1, 3)

    qs = proj(params["wq"], params["bq"])
    ks = proj(params["wk"], params["bk"])
    vs = proj(params["wv"], params["bv"])
    mask = attn_mask[:, None, :, :]
    scores = jnp.einsum("bhqd,bhkd->bhqk", qs, ks) * scale
    scores = jnp.where(mask, -1e9, scores)
    prob = jax.nn.softmax(scores, axis=-1)
    ctx = jnp.einsum("bhqk,bhkd->bhqd", prob, vs)
    ctx = ctx.transpose(0, 2, 1, 3).reshape(B, S, d_all)
    att = ctx @ params["wo"] + params["bo"]

    def ln(x, g, b):
        m = x.mean(-1, keepdims=True)
        v = ((x - m) ** 2).mean(-1, keepdims=True)
        return (x - m) / jnp.sqrt(v + eps) * g + b

    y1 = ln(inputs + att, params["ln1_g"], params["ln1_b"])
    h = _gelu_tanh(y1 @ params["w1"] + params["b1"])
    f = h @ params["w2"] + params["b2"]
    y2 = ln(f + y1, params["ln2_g"], params["ln2_b"])
    return y2, prob


if __name__ == "__main__":
    # Small config consistent with the module: d_hidn=32, n_head=4, d_head=8, d_ff=64.
    B, S, d_hidn, n_head, d_head, d_ff = 2, 8, 32, 4, 8, 64
    d_all = n_head * d_head
    eps = 1e-6

    key = jax.random.PRNGKey(0)
    ks_ = jax.random.split(key, 16)

    def lin_init(kw, kb, fan_in, fan_out):
        bound = 1.0 / np.sqrt(fan_in)
        w = jax.random.uniform(kw, (fan_in, fan_out), jnp.float32, -bound, bound)
        b = jax.random.uniform(kb, (fan_out,), jnp.float32, -bound, bound)
        return w, b

    wq, bq = lin_init(ks_[0], ks_[1], d_hidn, d_all)
    wk, bk = lin_init(ks_[2], ks_[3], d_hidn, d_all)
    wv, bv = lin_init(ks_[4], ks_[5], d_hidn, d_all)
    wo, bo = lin_init(ks_[6], ks_[7], d_all, d_hidn)
    w1, b1 = lin_init(ks_[8], ks_[9], d_hidn, d_ff)
    w2, b2 = lin_init(ks_[10], ks_[11], d_ff, d_hidn)
    params = dict(
        wq=wq, bq=bq, wk=wk, bk=bk, wv=wv, bv=bv, wo=wo, bo=bo,
        w1=w1, b1=b1, w2=w2, b2=b2,
        ln1_g=1.0 + 0.1 * jax.random.normal(ks_[12], (d_hidn,), jnp.float32),
        ln1_b=0.1 * jax.random.normal(ks_[13], (d_hidn,), jnp.float32),
        ln2_g=1.0 + 0.1 * jax.random.normal(ks_[14], (d_hidn,), jnp.float32),
        ln2_b=0.1 * jax.random.normal(ks_[15], (d_hidn,), jnp.float32),
    )

    inputs = jax.random.normal(jax.random.PRNGKey(1), (B, S, d_hidn), jnp.float32)
    # mask: True = masked key position (e.g. padding); mask last 2 keys of batch 1.
    attn_mask = jnp.zeros((B, S, S), jnp.bool_)
    attn_mask = attn_mask.at[1, :, -2:].set(True)

    out, prob = encoder_layer(inputs, attn_mask, params,
                              n_head=n_head, d_head=d_head, eps=eps)
    jax.block_until_ready((out, prob))

    ref_out, ref_prob = _reference(inputs, attn_mask, params,
                                   n_head=n_head, d_head=d_head, eps=eps)
    # Slightly relaxed tolerances to allow for the EUP approx-reciprocal (+Newton
    # refinement) in the softmax and rsqrt-based layernorm.
    np.testing.assert_allclose(np.asarray(prob), np.asarray(ref_prob),
                               rtol=2e-4, atol=2e-4)
    np.testing.assert_allclose(np.asarray(out), np.asarray(ref_out),
                               rtol=2e-3, atol=2e-4)

    print("KERNEL_OK")
</pallas_src>

<mosaic_0001>
module attributes {stable_mosaic.version = 11 : i64} {
  func.func @_encoder_layer_kernel(%arg0: i32, %arg1: memref<1x8x32xf32, #tpu.memory_space<vmem>>, %arg2: memref<1x8x8xi8, #tpu.memory_space<vmem>>, %arg3: memref<4x32x8xf32, #tpu.memory_space<vmem>>, %arg4: memref<4x1x8xf32, #tpu.memory_space<vmem>>, %arg5: memref<4x32x8xf32, #tpu.memory_space<vmem>>, %arg6: memref<4x1x8xf32, #tpu.memory_space<vmem>>, %arg7: memref<4x32x8xf32, #tpu.memory_space<vmem>>, %arg8: memref<4x1x8xf32, #tpu.memory_space<vmem>>, %arg9: memref<4x8x32xf32, #tpu.memory_space<vmem>>, %arg10: memref<1x32xf32, #tpu.memory_space<vmem>>, %arg11: memref<1x32xf32, #tpu.memory_space<vmem>>, %arg12: memref<1x32xf32, #tpu.memory_space<vmem>>, %arg13: memref<32x64xf32, #tpu.memory_space<vmem>>, %arg14: memref<1x64xf32, #tpu.memory_space<vmem>>, %arg15: memref<64x32xf32, #tpu.memory_space<vmem>>, %arg16: memref<1x32xf32, #tpu.memory_space<vmem>>, %arg17: memref<1x32xf32, #tpu.memory_space<vmem>>, %arg18: memref<1x32xf32, #tpu.memory_space<vmem>>, %arg19: memref<1x8x32xf32, #tpu.memory_space<vmem>>, %arg20: memref<1x4x8x8xf32, #tpu.memory_space<vmem>>) attributes {dimension_semantics = [#tpu.dimension_semantics<parallel>], iteration_bounds = array<i64: 2>, scalar_prefetch = 0 : i64, scratch_operands = 0 : i64, tpu.core_type = #tpu.core_type<tc>, window_params = [{transform_indices = @transform_0, window_bounds = array<i64: 1, 8, 32>}, {transform_indices = @transform_1, window_bounds = array<i64: 1, 8, 8>}, {pipeline_mode = #tpu.pipeline_mode<synchronous>, transform_indices = @transform_2, window_bounds = array<i64: 4, 32, 8>}, {pipeline_mode = #tpu.pipeline_mode<synchronous>, transform_indices = @transform_3, window_bounds = array<i64: 4, 1, 8>}, {pipeline_mode = #tpu.pipeline_mode<synchronous>, transform_indices = @transform_4, window_bounds = array<i64: 4, 32, 8>}, {pipeline_mode = #tpu.pipeline_mode<synchronous>, transform_indices = @transform_5, window_bounds = array<i64: 4, 1, 8>}, {pipeline_mode = #tpu.pipeline_mode<synchronous>, transform_indices = @transform_6, window_bounds = array<i64: 4, 32, 8>}, {pipeline_mode = #tpu.pipeline_mode<synchronous>, transform_indices = @transform_7, window_bounds = array<i64: 4, 1, 8>}, {pipeline_mode = #tpu.pipeline_mode<synchronous>, transform_indices = @transform_8, window_bounds = array<i64: 4, 8, 32>}, {pipeline_mode = #tpu.pipeline_mode<synchronous>, transform_indices = @transform_9, window_bounds = array<i64: 1, 32>}, {pipeline_mode = #tpu.pipeline_mode<synchronous>, transform_indices = @transform_10, window_bounds = array<i64: 1, 32>}, {pipeline_mode = #tpu.pipeline_mode<synchronous>, transform_indices = @transform_11, window_bounds = array<i64: 1, 32>}, {pipeline_mode = #tpu.pipeline_mode<synchronous>, transform_indices = @transform_12, window_bounds = array<i64: 32, 64>}, {pipeline_mode = #tpu.pipeline_mode<synchronous>, transform_indices = @transform_13, window_bounds = array<i64: 1, 64>}, {pipeline_mode = #tpu.pipeline_mode<synchronous>, transform_indices = @transform_14, window_bounds = array<i64: 64, 32>}, {pipeline_mode = #tpu.pipeline_mode<synchronous>, transform_indices = @transform_15, window_bounds = array<i64: 1, 32>}, {pipeline_mode = #tpu.pipeline_mode<synchronous>, transform_indices = @transform_16, window_bounds = array<i64: 1, 32>}, {pipeline_mode = #tpu.pipeline_mode<synchronous>, transform_indices = @transform_17, window_bounds = array<i64: 1, 32>}, {transform_indices = @transform_18, window_bounds = array<i64: 1, 8, 32>}, {transform_indices = @transform_19, window_bounds = array<i64: 1, 4, 8, 8>}]} {
    %c0 = arith.constant 0 : index
    %c0_0 = arith.constant 0 : index
    %c0_1 = arith.constant 0 : index
    %0 = vector.load %arg1[%c0, %c0_0, %c0_1] : memref<1x8x32xf32, #tpu.memory_space<vmem>>, vector<1x8x32xf32>
    %1 = vector.shape_cast %0 : vector<1x8x32xf32> to vector<8x32xf32>
    %c0_2 = arith.constant 0 : index
    %c0_3 = arith.constant 0 : index
    %c0_4 = arith.constant 0 : index
    %2 = vector.load %arg2[%c0_2, %c0_3, %c0_4] : memref<1x8x8xi8, #tpu.memory_space<vmem>>, vector<1x8x8xi8>
    %3 = vector.shape_cast %2 : vector<1x8x8xi8> to vector<8x8xi8>
    %4 = arith.extsi %3 : vector<8x8xi8> to vector<8x8xi32>
    %c0_i32 = arith.constant 0 : i32
    %5 = vector.broadcast %c0_i32 : i32 to vector<8x8xi32>
    %6 = arith.cmpi ne, %4, %5 : vector<8x8xi32>
    %7 = vector.shape_cast %1 : vector<8x32xf32> to vector<1x8x32xf32>
    %8 = vector.broadcast %7 : vector<1x8x32xf32> to vector<4x8x32xf32>
    %c0_5 = arith.constant 0 : index
    %c0_6 = arith.constant 0 : index
    %c0_7 = arith.constant 0 : index
    %9 = vector.load %arg3[%c0_5, %c0_6, %c0_7] : memref<4x32x8xf32, #tpu.memory_space<vmem>>, vector<4x32x8xf32>
    "tpu.trace_start"() <{level = 10 : i32, message = "hsk,hkd->hsd"}> : () -> ()
    %cst = arith.constant dense<0.000000e+00> : vector<4x8x8xf32>
    %10 = tpu.matmul %8, %9, %cst {dimension_numbers = #tpu.dot_dimension_numbers<[2], [1], [1], [2], [0, 0, 0, 1, 1, 2], [0], [0]>} : vector<4x8x32xf32>, vector<4x32x8xf32>, vector<4x8x8xf32> -> vector<4x8x8xf32>
    "tpu.trace_stop"() : () -> ()
    %c0_8 = arith.constant 0 : index
    %c0_9 = arith.constant 0 : index
    %c0_10 = arith.constant 0 : index
    %11 = vector.load %arg4[%c0_8, %c0_9, %c0_10] : memref<4x1x8xf32, #tpu.memory_space<vmem>>, vector<4x1x8xf32>
    %12 = vector.broadcast %11 : vector<4x1x8xf32> to vector<4x8x8xf32>
    %13 = arith.addf %10, %12 : vector<4x8x8xf32>
    %c0_11 = arith.constant 0 : index
    %c0_12 = arith.constant 0 : index
    %c0_13 = arith.constant 0 : index
    %14 = vector.load %arg5[%c0_11, %c0_12, %c0_13] : memref<4x32x8xf32, #tpu.memory_space<vmem>>, vector<4x32x8xf32>
    "tpu.trace_start"() <{level = 10 : i32, message = "hsk,hkd->hsd"}> : () -> ()
    %cst_14 = arith.constant dense<0.000000e+00> : vector<4x8x8xf32>
    %15 = tpu.matmul %8, %14, %cst_14 {dimension_numbers = #tpu.dot_dimension_numbers<[2], [1], [1], [2], [0, 0, 0, 1, 1, 2], [0], [0]>} : vector<4x8x32xf32>, vector<4x32x8xf32>, vector<4x8x8xf32> -> vector<4x8x8xf32>
    "tpu.trace_stop"() : () -> ()
    %c0_15 = arith.constant 0 : index
    %c0_16 = arith.constant 0 : index
    %c0_17 = arith.constant 0 : index
    %16 = vector.load %arg6[%c0_15, %c0_16, %c0_17] : memref<4x1x8xf32, #tpu.memory_space<vmem>>, vector<4x1x8xf32>
    %17 = vector.broadcast %16 : vector<4x1x8xf32> to vector<4x8x8xf32>
    %18 = arith.addf %15, %17 : vector<4x8x8xf32>
    %c0_18 = arith.constant 0 : index
    %c0_19 = arith.constant 0 : index
    %c0_20 = arith.constant 0 : index
    %19 = vector.load %arg7[%c0_18, %c0_19, %c0_20] : memref<4x32x8xf32, #tpu.memory_space<vmem>>, vector<4x32x8xf32>
    "tpu.trace_start"() <{level = 10 : i32, message = "hsk,hkd->hsd"}> : () -> ()
    %cst_21 = arith.constant dense<0.000000e+00> : vector<4x8x8xf32>
    %20 = tpu.matmul %8, %19, %cst_21 {dimension_numbers = #tpu.dot_dimension_numbers<[2], [1], [1], [2], [0, 0, 0, 1, 1, 2], [0], [0]>} : vector<4x8x32xf32>, vector<4x32x8xf32>, vector<4x8x8xf32> -> vector<4x8x8xf32>
    "tpu.trace_stop"() : () -> ()
    %c0_22 = arith.constant 0 : index
    %c0_23 = arith.constant 0 : index
    %c0_24 = arith.constant 0 : index
    %21 = vector.load %arg8[%c0_22, %c0_23, %c0_24] : memref<4x1x8xf32, #tpu.memory_space<vmem>>, vector<4x1x8xf32>
    %22 = vector.broadcast %21 : vector<4x1x8xf32> to vector<4x8x8xf32>
    %23 = arith.addf %20, %22 : vector<4x8x8xf32>
    "tpu.trace_start"() <{level = 10 : i32, message = "hqd,hkd->hqk"}> : () -> ()
    %cst_25 = arith.constant dense<0.000000e+00> : vector<4x8x8xf32>
    %24 = tpu.matmul %13, %18, %cst_25 {dimension_numbers = #tpu.dot_dimension_numbers<[2], [2], [1], [1], [0, 0, 0, 1, 1, 1], [0], [0]>} : vector<4x8x8xf32>, vector<4x8x8xf32>, vector<4x8x8xf32> -> vector<4x8x8xf32>
    "tpu.trace_stop"() : () -> ()
    %cst_26 = arith.constant 0.353553385 : f32
    %25 = vector.broadcast %cst_26 : f32 to vector<4x8x8xf32>
    %26 = arith.mulf %24, %25 : vector<4x8x8xf32>
    %27 = vector.shape_cast %6 : vector<8x8xi1> to vector<1x8x8xi1>
    %cst_27 = arith.constant -1.000000e+09 : f32
    %28 = vector.shape_cast %27 : vector<1x8x8xi1> to vector<1x8x8xi1>
    %29 = vector.broadcast %28 : vector<1x8x8xi1> to vector<4x8x8xi1>
    %30 = vector.broadcast %cst_27 : f32 to vector<4x8x8xf32>
    %31 = arith.select %29, %30, %26 : vector<4x8x8xi1>, vector<4x8x8xf32>
    %cst_28 = arith.constant dense<0xFF800000> : vector<4x8xf32>
    %32 = vector.multi_reduction <maximumf>, %31, %cst_28 [2] : vector<4x8x8xf32> to vector<4x8xf32>
    %33 = vector.shape_cast %32 : vector<4x8xf32> to vector<4x8x1xf32>
    %34 = vector.broadcast %33 : vector<4x8x1xf32> to vector<4x8x8xf32>
    %35 = arith.subf %31, %34 : vector<4x8x8xf32>
    %36 = math.exp %35 : vector<4x8x8xf32>
    %cst_29 = arith.constant dense<0.000000e+00> : vector<4x8xf32>
    %37 = vector.multi_reduction <add>, %36, %cst_29 [2] : vector<4x8x8xf32> to vector<4x8xf32>
    %38 = vector.shape_cast %37 : vector<4x8xf32> to vector<4x8x1xf32>
    %39 = tpu.reciprocal %38 {approx = true} : vector<4x8x1xf32> -> vector<4x8x1xf32>
    %40 = arith.mulf %38, %39 : vector<4x8x1xf32>
    %cst_30 = arith.constant 2.000000e+00 : f32
    %41 = vector.broadcast %cst_30 : f32 to vector<4x8x1xf32>
    %42 = arith.subf %41, %40 : vector<4x8x1xf32>
    %43 = arith.mulf %39, %42 : vector<4x8x1xf32>
    %44 = vector.broadcast %43 : vector<4x8x1xf32> to vector<4x8x8xf32>
    %45 = arith.mulf %36, %44 : vector<4x8x8xf32>
    %c0_31 = arith.constant 0 : index
    %c0_32 = arith.constant 0 : index
    %c0_33 = arith.constant 0 : index
    %c0_34 = arith.constant 0 : index
    %46 = vector.load %arg20[%c0_31, %c0_32, %c0_33, %c0_34] : memref<1x4x8x8xf32, #tpu.memory_space<vmem>>, vector<1x4x8x8xf32>
    %47 = vector.shape_cast %46 : vector<1x4x8x8xf32> to vector<4x8x8xf32>
    %48 = vector.shape_cast %45 : vector<4x8x8xf32> to vector<1x4x8x8xf32>
    tpu.vector_store %arg20[%c0_31, %c0_32, %c0_33, %c0_34], %48 {strides = array<i32>} : memref<1x4x8x8xf32, #tpu.memory_space<vmem>>, vector<1x4x8x8xf32>,
    "tpu.trace_start"() <{level = 10 : i32, message = "hqk,hkd->hqd"}> : () -> ()
    %cst_35 = arith.constant dense<0.000000e+00> : vector<4x8x8xf32>
    %49 = tpu.matmul %45, %23, %cst_35 {dimension_numbers = #tpu.dot_dimension_numbers<[2], [1], [1], [2], [0, 0, 0, 1, 1, 2], [0], [0]>} : vector<4x8x8xf32>, vector<4x8x8xf32>, vector<4x8x8xf32> -> vector<4x8x8xf32>
    "tpu.trace_stop"() : () -> ()
    %c0_36 = arith.constant 0 : index
    %c0_37 = arith.constant 0 : index
    %c0_38 = arith.constant 0 : index
    %50 = vector.load %arg9[%c0_36, %c0_37, %c0_38] : memref<4x8x32xf32, #tpu.memory_space<vmem>>, vector<4x8x32xf32>
    "tpu.trace_start"() <{level = 10 : i32, message = "hqd,hde->hqe"}> : () -> ()
    %cst_39 = arith.constant dense<0.000000e+00> : vector<4x8x32xf32>
    %51 = tpu.matmul %49, %50, %cst_39 {dimension_numbers = #tpu.dot_dimension_numbers<[2], [1], [1], [2], [0, 0, 0, 1, 1, 2], [0], [0]>} : vector<4x8x8xf32>, vector<4x8x32xf32>, vector<4x8x32xf32> -> vector<4x8x32xf32>
    "tpu.trace_stop"() : () -> ()
    %cst_40 = arith.constant dense<0.000000e+00> : vector<8x32xf32>
    %52 = vector.multi_reduction <add>, %51, %cst_40 [0] : vector<4x8x32xf32> to vector<8x32xf32>
    %c0_41 = arith.constant 0 : index
    %c0_42 = arith.constant 0 : index
    %53 = vector.load %arg10[%c0_41, %c0_42] : memref<1x32xf32, #tpu.memory_space<vmem>>, vector<1x32xf32>
    %54 = vector.broadcast %53 : vector<1x32xf32> to vector<8x32xf32>
    %55 = arith.addf %52, %54 : vector<8x32xf32>
    %56 = arith.addf %1, %55 : vector<8x32xf32>
    %c0_43 = arith.constant 0 : index
    %c0_44 = arith.constant 0 : index
    %57 = vector.load %arg11[%c0_43, %c0_44] : memref<1x32xf32, #tpu.memory_space<vmem>>, vector<1x32xf32>
    %c0_45 = arith.constant 0 : index
    %c0_46 = arith.constant 0 : index
    %58 = vector.load %arg12[%c0_45, %c0_46] : memref<1x32xf32, #tpu.memory_space<vmem>>, vector<1x32xf32>
    %cst_47 = arith.constant dense<0.000000e+00> : vector<8xf32>
    %59 = vector.multi_reduction <add>, %56, %cst_47 [1] : vector<8x32xf32> to vector<8xf32>
    %60 = vector.shape_cast %59 : vector<8xf32> to vector<8x1xf32>
    %cst_48 = arith.constant 3.200000e+01 : f32
    %61 = vector.broadcast %cst_48 : f32 to vector<8x1xf32>
    %62 = arith.divf %60, %61 : vector<8x1xf32>
    %63 = vector.broadcast %62 : vector<8x1xf32> to vector<8x32xf32>
    %64 = arith.subf %56, %63 : vector<8x32xf32>
    %65 = arith.mulf %64, %64 : vector<8x32xf32>
    %cst_49 = arith.constant dense<0.000000e+00> : vector<8xf32>
    %66 = vector.multi_reduction <add>, %65, %cst_49 [1] : vector<8x32xf32> to vector<8xf32>
    %67 = vector.shape_cast %66 : vector<8xf32> to vector<8x1xf32>
    %cst_50 = arith.constant 3.200000e+01 : f32
    %68 = vector.broadcast %cst_50 : f32 to vector<8x1xf32>
    %69 = arith.divf %67, %68 : vector<8x1xf32>
    %cst_51 = arith.constant 9.99999997E-7 : f32
    %70 = vector.broadcast %cst_51 : f32 to vector<8x1xf32>
    %71 = arith.addf %69, %70 : vector<8x1xf32>
    %72 = math.rsqrt %71 : vector<8x1xf32>
    %73 = vector.broadcast %72 : vector<8x1xf32> to vector<8x32xf32>
    %74 = arith.mulf %64, %73 : vector<8x32xf32>
    %75 = vector.broadcast %57 : vector<1x32xf32> to vector<8x32xf32>
    %76 = arith.mulf %74, %75 : vector<8x32xf32>
    %77 = vector.broadcast %58 : vector<1x32xf32> to vector<8x32xf32>
    %78 = arith.addf %76, %77 : vector<8x32xf32>
    %c0_52 = arith.constant 0 : index
    %c0_53 = arith.constant 0 : index
    %79 = vector.load %arg13[%c0_52, %c0_53] : memref<32x64xf32, #tpu.memory_space<vmem>>, vector<32x64xf32>
    %cst_54 = arith.constant dense<0.000000e+00> : vector<8x64xf32>
    %80 = tpu.matmul %78, %79, %cst_54 {dimension_numbers = #tpu.dot_dimension_numbers<[1], [0], [0], [1], [0, 0, 1, 1], [], []>} : vector<8x32xf32>, vector<32x64xf32>, vector<8x64xf32> -> vector<8x64xf32>
    %c0_55 = arith.constant 0 : index
    %c0_56 = arith.constant 0 : index
    %81 = vector.load %arg14[%c0_55, %c0_56] : memref<1x64xf32, #tpu.memory_space<vmem>>, vector<1x64xf32>
    %82 = vector.broadcast %81 : vector<1x64xf32> to vector<8x64xf32>
    %83 = arith.addf %80, %82 : vector<8x64xf32>
    %cst_57 = arith.constant 5.000000e-01 : f32
    %84 = vector.broadcast %cst_57 : f32 to vector<8x64xf32>
    %85 = arith.mulf %84, %83 : vector<8x64xf32>
    %86 = arith.mulf %83, %83 : vector<8x64xf32>
    %87 = arith.mulf %86, %83 : vector<8x64xf32>
    %cst_58 = arith.constant 4.471500e-02 : f32
    %88 = vector.broadcast %cst_58 : f32 to vector<8x64xf32>
    %89 = arith.mulf %88, %87 : vector<8x64xf32>
    %90 = arith.addf %83, %89 : vector<8x64xf32>
    %cst_59 = arith.constant 0.797884583 : f32
    %91 = vector.broadcast %cst_59 : f32 to vector<8x64xf32>
    %92 = arith.mulf %91, %90 : vector<8x64xf32>
    %93 = math.tanh %92 : vector<8x64xf32>
    %cst_60 = arith.constant 1.000000e+00 : f32
    %94 = vector.broadcast %cst_60 : f32 to vector<8x64xf32>
    %95 = arith.addf %94, %93 : vector<8x64xf32>
    %96 = arith.mulf %85, %95 : vector<8x64xf32>
    %c0_61 = arith.constant 0 : index
    %c0_62 = arith.constant 0 : index
    %97 = vector.load %arg15[%c0_61, %c0_62] : memref<64x32xf32, #tpu.memory_space<vmem>>, vector<64x32xf32>
    %cst_63 = arith.constant dense<0.000000e+00> : vector<8x32xf32>
    %98 = tpu.matmul %96, %97, %cst_63 {dimension_numbers = #tpu.dot_dimension_numbers<[1], [0], [0], [1], [0, 0, 1, 1], [], []>} : vector<8x64xf32>, vector<64x32xf32>, vector<8x32xf32> -> vector<8x32xf32>
    %c0_64 = arith.constant 0 : index
    %c0_65 = arith.constant 0 : index
    %99 = vector.load %arg16[%c0_64, %c0_65] : memref<1x32xf32, #tpu.memory_space<vmem>>, vector<1x32xf32>
    %100 = vector.broadcast %99 : vector<1x32xf32> to vector<8x32xf32>
    %101 = arith.addf %98, %100 : vector<8x32xf32>
    %102 = arith.addf %101, %78 : vector<8x32xf32>
    %c0_66 = arith.constant 0 : index
    %c0_67 = arith.constant 0 : index
    %103 = vector.load %arg17[%c0_66, %c0_67] : memref<1x32xf32, #tpu.memory_space<vmem>>, vector<1x32xf32>
    %c0_68 = arith.constant 0 : index
    %c0_69 = arith.constant 0 : index
    %104 = vector.load %arg18[%c0_68, %c0_69] : memref<1x32xf32, #tpu.memory_space<vmem>>, vector<1x32xf32>
    %cst_70 = arith.constant dense<0.000000e+00> : vector<8xf32>
    %105 = vector.multi_reduction <add>, %102, %cst_70 [1] : vector<8x32xf32> to vector<8xf32>
    %106 = vector.shape_cast %105 : vector<8xf32> to vector<8x1xf32>
    %cst_71 = arith.constant 3.200000e+01 : f32
    %107 = vector.broadcast %cst_71 : f32 to vector<8x1xf32>
    %108 = arith.divf %106, %107 : vector<8x1xf32>
    %109 = vector.broadcast %108 : vector<8x1xf32> to vector<8x32xf32>
    %110 = arith.subf %102, %109 : vector<8x32xf32>
    %111 = arith.mulf %110, %110 : vector<8x32xf32>
    %cst_72 = arith.constant dense<0.000000e+00> : vector<8xf32>
    %112 = vector.multi_reduction <add>, %111, %cst_72 [1] : vector<8x32xf32> to vector<8xf32>
    %113 = vector.shape_cast %112 : vector<8xf32> to vector<8x1xf32>
    %cst_73 = arith.constant 3.200000e+01 : f32
    %114 = vector.broadcast %cst_73 : f32 to vector<8x1xf32>
    %115 = arith.divf %113, %114 : vector<8x1xf32>
    %cst_74 = arith.constant 9.99999997E-7 : f32
    %116 = vector.broadcast %cst_74 : f32 to vector<8x1xf32>
    %117 = arith.addf %115, %116 : vector<8x1xf32>
    %118 = math.rsqrt %117 : vector<8x1xf32>
    %119 = vector.broadcast %118 : vector<8x1xf32> to vector<8x32xf32>
    %120 = arith.mulf %110, %119 : vector<8x32xf32>
    %121 = vector.broadcast %103 : vector<1x32xf32> to vector<8x32xf32>
    %122 = arith.mulf %120, %121 : vector<8x32xf32>
    %123 = vector.broadcast %104 : vector<1x32xf32> to vector<8x32xf32>
    %124 = arith.addf %122, %123 : vector<8x32xf32>
    %c0_75 = arith.constant 0 : index
    %c0_76 = arith.constant 0 : index
    %c0_77 = arith.constant 0 : index
    %125 = vector.load %arg19[%c0_75, %c0_76, %c0_77] : memref<1x8x32xf32, #tpu.memory_space<vmem>>, vector<1x8x32xf32>
    %126 = vector.shape_cast %125 : vector<1x8x32xf32> to vector<8x32xf32>
    %127 = vector.shape_cast %124 : vector<8x32xf32> to vector<1x8x32xf32>
    tpu.vector_store %arg19[%c0_75, %c0_76, %c0_77], %127 {strides = array<i32>} : memref<1x8x32xf32, #tpu.memory_space<vmem>>, vector<1x8x32xf32>,
    return
  }
  func.func @transform_0(%arg0: i32) -> (i32, i32, i32) {
    %c0_i32 = arith.constant 0 : i32
    %c0_i32_0 = arith.constant 0 : i32
    %c0_i32_1 = arith.constant 0 : i32
    return %arg0, %c0_i32, %c0_i32_0 : i32, i32, i32
  }
  func.func @transform_1(%arg0: i32) -> (i32, i32, i32) {
    %c0_i32 = arith.constant 0 : i32
    %c0_i32_0 = arith.constant 0 : i32
    %c0_i32_1 = arith.constant 0 : i32
    return %arg0, %c0_i32, %c0_i32_0 : i32, i32, i32
  }
  func.func @transform_2(%arg0: i32) -> (i32, i32, i32) {
    %c0_i32 = arith.constant 0 : i32
    %c0_i32_0 = arith.constant 0 : i32
    %c0_i32_1 = arith.constant 0 : i32
    %c0_i32_2 = arith.constant 0 : i32
    return %c0_i32, %c0_i32_0, %c0_i32_1 : i32, i32, i32
  }
  func.func @transform_3(%arg0: i32) -> (i32, i32, i32) {
    %c0_i32 = arith.constant 0 : i32
    %c0_i32_0 = arith.constant 0 : i32
    %c0_i32_1 = arith.constant 0 : i32
    %c0_i32_2 = arith.constant 0 : i32
    return %c0_i32, %c0_i32_0, %c0_i32_1 : i32, i32, i32
  }
  func.func @transform_4(%arg0: i32) -> (i32, i32, i32) {
    %c0_i32 = arith.constant 0 : i32
    %c0_i32_0 = arith.constant 0 : i32
    %c0_i32_1 = arith.constant 0 : i32
    %c0_i32_2 = arith.constant 0 : i32
    return %c0_i32, %c0_i32_0, %c0_i32_1 : i32, i32, i32
  }
  func.func @transform_5(%arg0: i32) -> (i32, i32, i32) {
    %c0_i32 = arith.constant 0 : i32
    %c0_i32_0 = arith.constant 0 : i32
    %c0_i32_1 = arith.constant 0 : i32
    %c0_i32_2 = arith.constant 0 : i32
    return %c0_i32, %c0_i32_0, %c0_i32_1 : i32, i32, i32
  }
  func.func @transform_6(%arg0: i32) -> (i32, i32, i32) {
    %c0_i32 = arith.constant 0 : i32
    %c0_i32_0 = arith.constant 0 : i32
    %c0_i32_1 = arith.constant 0 : i32
    %c0_i32_2 = arith.constant 0 : i32
    return %c0_i32, %c0_i32_0, %c0_i32_1 : i32, i32, i32
  }
  func.func @transform_7(%arg0: i32) -> (i32, i32, i32) {
    %c0_i32 = arith.constant 0 : i32
    %c0_i32_0 = arith.constant 0 : i32
    %c0_i32_1 = arith.constant 0 : i32
    %c0_i32_2 = arith.constant 0 : i32
    return %c0_i32, %c0_i32_0, %c0_i32_1 : i32, i32, i32
  }
  func.func @transform_8(%arg0: i32) -> (i32, i32, i32) {
    %c0_i32 = arith.constant 0 : i32
    %c0_i32_0 = arith.constant 0 : i32
    %c0_i32_1 = arith.constant 0 : i32
    %c0_i32_2 = arith.constant 0 : i32
    return %c0_i32, %c0_i32_0, %c0_i32_1 : i32, i32, i32
  }
  func.func @transform_9(%arg0: i32) -> (i32, i32) {
    %c0_i32 = arith.constant 0 : i32
    %c0_i32_0 = arith.constant 0 : i32
    %c0_i32_1 = arith.constant 0 : i32
    return %c0_i32, %c0_i32_0 : i32, i32
  }
  func.func @transform_10(%arg0: i32) -> (i32, i32) {
    %c0_i32 = arith.constant 0 : i32
    %c0_i32_0 = arith.constant 0 : i32
    %c0_i32_1 = arith.constant 0 : i32
    return %c0_i32, %c0_i32_0 : i32, i32
  }
  func.func @transform_11(%arg0: i32) -> (i32, i32) {
    %c0_i32 = arith.constant 0 : i32
    %c0_i32_0 = arith.constant 0 : i32
    %c0_i32_1 = arith.constant 0 : i32
    return %c0_i32, %c0_i32_0 : i32, i32
  }
  func.func @transform_12(%arg0: i32) -> (i32, i32) {
    %c0_i32 = arith.constant 0 : i32
    %c0_i32_0 = arith.constant 0 : i32
    %c0_i32_1 = arith.constant 0 : i32
    return %c0_i32, %c0_i32_0 : i32, i32
  }
  func.func @transform_13(%arg0: i32) -> (i32, i32) {
    %c0_i32 = arith.constant 0 : i32
    %c0_i32_0 = arith.constant 0 : i32
    %c0_i32_1 = arith.constant 0 : i32
    return %c0_i32, %c0_i32_0 : i32, i32
  }
  func.func @transform_14(%arg0: i32) -> (i32, i32) {
    %c0_i32 = arith.constant 0 : i32
    %c0_i32_0 = arith.constant 0 : i32
    %c0_i32_1 = arith.constant 0 : i32
    return %c0_i32, %c0_i32_0 : i32, i32
  }
  func.func @transform_15(%arg0: i32) -> (i32, i32) {
    %c0_i32 = arith.constant 0 : i32
    %c0_i32_0 = arith.constant 0 : i32
    %c0_i32_1 = arith.constant 0 : i32
    return %c0_i32, %c0_i32_0 : i32, i32
  }
  func.func @transform_16(%arg0: i32) -> (i32, i32) {
    %c0_i32 = arith.constant 0 : i32
    %c0_i32_0 = arith.constant 0 : i32
    %c0_i32_1 = arith.constant 0 : i32
    return %c0_i32, %c0_i32_0 : i32, i32
  }
  func.func @transform_17(%arg0: i32) -> (i32, i32) {
    %c0_i32 = arith.constant 0 : i32
    %c0_i32_0 = arith.constant 0 : i32
    %c0_i32_1 = arith.constant 0 : i32
    return %c0_i32, %c0_i32_0 : i32, i32
  }
  func.func @transform_18(%arg0: i32) -> (i32, i32, i32) {
    %c0_i32 = arith.constant 0 : i32
    %c0_i32_0 = arith.constant 0 : i32
    %c0_i32_1 = arith.constant 0 : i32
    return %arg0, %c0_i32, %c0_i32_0 : i32, i32, i32
  }
  func.func @transform_19(%arg0: i32) -> (i32, i32, i32, i32) {
    %c0_i32 = arith.constant 0 : i32
    %c0_i32_0 = arith.constant 0 : i32
    %c0_i32_1 = arith.constant 0 : i32
    %c0_i32_2 = arith.constant 0 : i32
    return %arg0, %c0_i32, %c0_i32_0, %c0_i32_1 : i32, i32, i32, i32
  }
}

</mosaic_0001>

<llo_original>
// kernel: tpu_custom_call.1
$region0: #{tpu_custom_call.1}
  #allocation0 [shape = 'u32[]', space=smem, size = 0x4, offset = 0x4, fixed_abs, tag = 'smem constant byte address 0x4 - core index']
  #allocation1 [shape = 'u32[144,128]{1,0:T(1,128)}', space=vmem, size = 0x12000, scoped, tag = 'internal scratch']
  %s0 = inlined_call_operand.vmem [shape: f32[2,8,32], index: 0, kind: input, shape index: {}]
  %s1 = inlined_call_operand.vmem [shape: s8[2,8,8], index: 1, kind: input, shape index: {}]
  %s2 = inlined_call_operand.vmem [shape: f32[4,32,8], index: 2, kind: input, shape index: {}]
  %s3 = inlined_call_operand.vmem [shape: f32[4,1,8], index: 3, kind: input, shape index: {}]
  %s4 = inlined_call_operand.vmem [shape: f32[4,32,8], index: 4, kind: input, shape index: {}]
  %s5 = inlined_call_operand.vmem [shape: f32[4,1,8], index: 5, kind: input, shape index: {}]
  %s6 = inlined_call_operand.vmem [shape: f32[4,32,8], index: 6, kind: input, shape index: {}]
  %s7 = inlined_call_operand.vmem [shape: f32[4,1,8], index: 7, kind: input, shape index: {}]
  %s8 = inlined_call_operand.vmem [shape: f32[4,8,32], index: 8, kind: input, shape index: {}]
  %s9 = inlined_call_operand.vmem [shape: f32[1,32], index: 9, kind: input, shape index: {}]
  %s10 = inlined_call_operand.vmem [shape: f32[1,32], index: 10, kind: input, shape index: {}]
  %s11 = inlined_call_operand.vmem [shape: f32[1,32], index: 11, kind: input, shape index: {}]
  %s12 = inlined_call_operand.vmem [shape: f32[32,64], index: 12, kind: input, shape index: {}]
  %s13 = inlined_call_operand.vmem [shape: f32[1,64], index: 13, kind: input, shape index: {}]
  %s14 = inlined_call_operand.vmem [shape: f32[64,32], index: 14, kind: input, shape index: {}]
  %s15 = inlined_call_operand.vmem [shape: f32[1,32], index: 15, kind: input, shape index: {}]
  %s16 = inlined_call_operand.vmem [shape: f32[1,32], index: 16, kind: input, shape index: {}]
  %s17 = inlined_call_operand.vmem [shape: f32[1,32], index: 17, kind: input, shape index: {}]
  %s18 = inlined_call_operand.hbm [shape: f32[2,8,32], index: 18, kind: output, shape index: {0}]
  %s19 = inlined_call_operand.hbm [shape: f32[2,4,8,8], index: 19, kind: output, shape index: {1}]
  %20 = xla_tuple %s18, %s19
  %s21 = sld [smem:[#allocation0]]
  $region113: #{tpu_custom_call.1} parent=0
    _
  %s23 = ssub.s32 1, %s21
  %s24 = scalar_select 0, %s23, %s21
  $region1: #{tpu_custom_call.1} parent=0
    #allocation2 [shape = 'u8[8192]{0}', space=vmem, size = 0x2000, scoped, tag = 'output window, operand 0']
    #allocation3 [shape = 's32[2]{0}', space=sflag, size = 0x8, scoped, tag = 'scoped memory for tpu_custom_call.1']
    #allocation4 [shape = 'u8[32768]{0}', space=vmem, size = 0x8000, scoped, tag = 'output window, operand 1']
    #allocation5 [shape = 's32[2]{0}', space=sflag, size = 0x8, scoped, tag = 'scoped memory for tpu_custom_call.1']
    %25 = vsyncpa [#allocation3], 0
    %s26 = scalar_lea.sflag [#allocation3], 1
    %27 = vsyncpa %s26, 0
    %28 = vsyncpa [#allocation5], 0
    %s29 = scalar_lea.sflag [#allocation5], 1
    %30 = vsyncpa %s29, 0
    loop: start=0, step=1, limit=4
    $region2: #{tpu_custom_call.1} parent=1 // loop_pre_header
      _
    $region3: #{tpu_custom_call.1} parent=1 // loop_header
      %s32 = sphi 0, %s36
      %p33 = scmp.ge.s32.totalorder %s32, 4
      %s42 = sphi 0, %s44
      %s45 = sphi 0, %s42
      %s46 = sphi 0, %s45
      %s62 = sphi 0, %s46
      %s68 = sphi 0, %s70
      %s71 = sphi 0, %s68
      %s72 = sphi 0, %s71
      %s88 = sphi 0, %s72
      %s92 = sphi 0, %s92
      %s94 = sphi 0, %s92
      %s95 = sphi 0, %s94
      %s109 = sphi 0, %s95
      %s113 = sphi 0, %s113
      %s115 = sphi 0, %s113
      %s116 = sphi 0, %s115
      %s130 = sphi 0, %s116
      %s134 = sphi 0, %s134
      %s136 = sphi 0, %s134
      %s137 = sphi 0, %s136
      %s151 = sphi 0, %s137
      %s155 = sphi 0, %s155
      %s157 = sphi 0, %s155
      %s158 = sphi 0, %s157
      %s172 = sphi 0, %s158
      %s176 = sphi 0, %s176
      %s178 = sphi 0, %s176
      %s179 = sphi 0, %s178
      %s193 = sphi 0, %s179
      %s197 = sphi 0, %s197
      %s199 = sphi 0, %s197
      %s200 = sphi 0, %s199
      %s214 = sphi 0, %s200
      %s218 = sphi 0, %s218
      %s220 = sphi 0, %s218
      %s221 = sphi 0, %s220
      %s235 = sphi 0, %s221
      %s239 = sphi 0, %s239
      %s241 = sphi 0, %s239
      %s242 = sphi 0, %s241
      %s256 = sphi 0, %s242
      %s260 = sphi 0, %s260
      %s262 = sphi 0, %s260
      %s263 = sphi 0, %s262
      %s277 = sphi 0, %s263
      %s281 = sphi 0, %s281
      %s283 = sphi 0, %s281
      %s284 = sphi 0, %s283
      %s298 = sphi 0, %s284
      %s302 = sphi 0, %s302
      %s304 = sphi 0, %s302
      %s305 = sphi 0, %s304
      %s319 = sphi 0, %s305
      %s323 = sphi 0, %s323
      %s325 = sphi 0, %s323
      %s326 = sphi 0, %s325
      %s340 = sphi 0, %s326
      %s344 = sphi 0, %s344
      %s346 = sphi 0, %s344
      %s347 = sphi 0, %s346
      %s361 = sphi 0, %s347
      %s365 = sphi 0, %s365
      %s367 = sphi 0, %s365
      %s368 = sphi 0, %s367
      %s382 = sphi 0, %s368
      %s386 = sphi 0, %s386
      %s388 = sphi 0, %s386
      %s389 = sphi 0, %s388
      %s403 = sphi 0, %s389
      %s407 = sphi 0, %s407
      %s409 = sphi 0, %s407
      %s410 = sphi 0, %s409
      %s424 = sphi 0, %s410
      %s430 = sphi 0, %s432
      %s433 = sphi 0, %s430
      %s434 = sphi 0, %s433
      %s450 = sphi 0, %s434
      %s456 = sphi 0, %s458
      %s459 = sphi 0, %s456
      %s460 = sphi 0, %s459
      %s476 = sphi 0, %s460
    $region4: #{tpu_custom_call.1} parent=1 // loop_header_branch
      %35 = sbr.rel (%p33) target = $region8
    $region5: #{tpu_custom_call.1} parent=1 // loop_body
      %s37 = ssub.s32 %s32, 1
      %s38 = ssub.s32 %s32, 2
      %s39 = sadd.s32 %s32, 1
      %s40 = ssub.s32 %s32, %s39
      %p41 = scmp.eq.s32.totalorder %s40, 0
      %s43 = sadd.s32 %s42, 1
      %s44 = scalar_select %p41, %s42, %s43
      %p47 = pneg %p41
      %p48 = scmp.eq.s32.totalorder %s32, 1
      %p49 = por %p47, %p48
      %p50 = scmp.ne.s32.totalorder %s42, %s45
      %p51 = scmp.eq.s32.totalorder %s32, 0
      %p52 = por %p50, %p51
      %p53 = scmp.ne.s32.totalorder %s42, %s45
      %p54 = scmp.eq.s32.totalorder %s37, 1
      %p55 = por %p53, %p54
      %p56 = scmp.ne.s32.totalorder %s45, %s46
      %p57 = scmp.eq.s32.totalorder %s37, 0
      %p58 = por %p56, %p57
      %p59 = scmp.ne.s32.totalorder %s45, %s46
      %p60 = scmp.eq.s32.totalorder %s38, 1
      %p61 = por %p59, %p60
      %p63 = scmp.ne.s32.totalorder %s46, %s62
      %p64 = scmp.eq.s32.totalorder %s38, 0
      %p65 = por %p63, %p64
      %s66 = ssub.s32 %s32, %s39
      %p67 = scmp.eq.s32.totalorder %s66, 0
      %s69 = sadd.s32 %s68, 1
      %s70 = scalar_select %p67, %s68, %s69
      %p73 = pneg %p67
      %p74 = scmp.eq.s32.totalorder %s32, 1
      %p75 = por %p73, %p74
      %p76 = scmp.ne.s32.totalorder %s68, %s71
      %p77 = scmp.eq.s32.totalorder %s32, 0
      %p78 = por %p76, %p77
      %p79 = scmp.ne.s32.totalorder %s68, %s71
      %p80 = scmp.eq.s32.totalorder %s37, 1
      %p81 = por %p79, %p80
      %p82 = scmp.ne.s32.totalorder %s71, %s72
      %p83 = scmp.eq.s32.totalorder %s37, 0
      %p84 = por %p82, %p83
      %p85 = scmp.ne.s32.totalorder %s71, %s72
      %p86 = scmp.eq.s32.totalorder %s38, 1
      %p87 = por %p85, %p86
      %p89 = scmp.ne.s32.totalorder %s72, %s88
      %p90 = scmp.eq.s32.totalorder %s38, 0
      %p91 = por %p89, %p90
      %s93 = sadd.s32 %s92, 1
      %p96 = scmp.eq.s32.totalorder %s32, 1
      %p97 = scmp.ne.s32.totalorder %s92, %s94
      %p98 = scmp.eq.s32.totalorder %s32, 0
      %p99 = por %p97, %p98
      %p100 = scmp.ne.s32.totalorder %s92, %s94
      %p101 = scmp.eq.s32.totalorder %s37, 1
      %p102 = por %p100, %p101
      %p103 = scmp.ne.s32.totalorder %s94, %s95
      %p104 = scmp.eq.s32.totalorder %s37, 0
      %p105 = por %p103, %p104
      %p106 = scmp.ne.s32.totalorder %s94, %s95
      %p107 = scmp.eq.s32.totalorder %s38, 1
      %p108 = por %p106, %p107
      %p110 = scmp.ne.s32.totalorder %s95, %s109
      %p111 = scmp.eq.s32.totalorder %s38, 0
      %p112 = por %p110, %p111
      %s114 = sadd.s32 %s113, 1
      %p117 = scmp.eq.s32.totalorder %s32, 1
      %p118 = scmp.ne.s32.totalorder %s113, %s115
      %p119 = scmp.eq.s32.totalorder %s32, 0
      %p120 = por %p118, %p119
      %p121 = scmp.ne.s32.totalorder %s113, %s115
      %p122 = scmp.eq.s32.totalorder %s37, 1
      %p123 = por %p121, %p122
      %p124 = scmp.ne.s32.totalorder %s115, %s116
      %p125 = scmp.eq.s32.totalorder %s37, 0
      %p126 = por %p124, %p125
      %p127 = scmp.ne.s32.totalorder %s115, %s116
      %p128 = scmp.eq.s32.totalorder %s38, 1
      %p129 = por %p127, %p128
      %p131 = scmp.ne.s32.totalorder %s116, %s130
      %p132 = scmp.eq.s32.totalorder %s38, 0
      %p133 = por %p131, %p132
      %s135 = sadd.s32 %s134, 1
      %p138 = scmp.eq.s32.totalorder %s32, 1
      %p139 = scmp.ne.s32.totalorder %s134, %s136
      %p140 = scmp.eq.s32.totalorder %s32, 0
      %p141 = por %p139, %p140
      %p142 = scmp.ne.s32.totalorder %s134, %s136
      %p143 = scmp.eq.s32.totalorder %s37, 1
      %p144 = por %p142, %p143
      %p145 = scmp.ne.s32.totalorder %s136, %s137
      %p146 = scmp.eq.s32.totalorder %s37, 0
      %p147 = por %p145, %p146
      %p148 = scmp.ne.s32.totalorder %s136, %s137
      %p149 = scmp.eq.s32.totalorder %s38, 1
      %p150 = por %p148, %p149
      %p152 = scmp.ne.s32.totalorder %s137, %s151
      %p153 = scmp.eq.s32.totalorder %s38, 0
      %p154 = por %p152, %p153
      %s156 = sadd.s32 %s155, 1
      %p159 = scmp.eq.s32.totalorder %s32, 1
      %p160 = scmp.ne.s32.totalorder %s155, %s157
      %p161 = scmp.eq.s32.totalorder %s32, 0
      %p162 = por %p160, %p161
      %p163 = scmp.ne.s32.totalorder %s155, %s157
      %p164 = scmp.eq.s32.totalorder %s37, 1
      %p165 = por %p163, %p164
      %p166 = scmp.ne.s32.totalorder %s157, %s158
      %p167 = scmp.eq.s32.totalorder %s37, 0
      %p168 = por %p166, %p167
      %p169 = scmp.ne.s32.totalorder %s157, %s158
      %p170 = scmp.eq.s32.totalorder %s38, 1
      %p171 = por %p169, %p170
      %p173 = scmp.ne.s32.totalorder %s158, %s172
      %p174 = scmp.eq.s32.totalorder %s38, 0
      %p175 = por %p173, %p174
      %s177 = sadd.s32 %s176, 1
      %p180 = scmp.eq.s32.totalorder %s32, 1
      %p181 = scmp.ne.s32.totalorder %s176, %s178
      %p182 = scmp.eq.s32.totalorder %s32, 0
      %p183 = por %p181, %p182
      %p184 = scmp.ne.s32.totalorder %s176, %s178
      %p185 = scmp.eq.s32.totalorder %s37, 1
      %p186 = por %p184, %p185
      %p187 = scmp.ne.s32.totalorder %s178, %s179
      %p188 = scmp.eq.s32.totalorder %s37, 0
      %p189 = por %p187, %p188
      %p190 = scmp.ne.s32.totalorder %s178, %s179
      %p191 = scmp.eq.s32.totalorder %s38, 1
      %p192 = por %p190, %p191
      %p194 = scmp.ne.s32.totalorder %s179, %s193
      %p195 = scmp.eq.s32.totalorder %s38, 0
      %p196 = por %p194, %p195
      %s198 = sadd.s32 %s197, 1
      %p201 = scmp.eq.s32.totalorder %s32, 1
      %p202 = scmp.ne.s32.totalorder %s197, %s199
      %p203 = scmp.eq.s32.totalorder %s32, 0
      %p204 = por %p202, %p203
      %p205 = scmp.ne.s32.totalorder %s197, %s199
      %p206 = scmp.eq.s32.totalorder %s37, 1
      %p207 = por %p205, %p206
      %p208 = scmp.ne.s32.totalorder %s199, %s200
      %p209 = scmp.eq.s32.totalorder %s37, 0
      %p210 = por %p208, %p209
      %p211 = scmp.ne.s32.totalorder %s199, %s200
      %p212 = scmp.eq.s32.totalorder %s38, 1
      %p213 = por %p211, %p212
      %p215 = scmp.ne.s32.totalorder %s200, %s214
      %p216 = scmp.eq.s32.totalorder %s38, 0
      %p217 = por %p215, %p216
      %s219 = sadd.s32 %s218, 1
      %p222 = scmp.eq.s32.totalorder %s32, 1
      %p223 = scmp.ne.s32.totalorder %s218, %s220
      %p224 = scmp.eq.s32.totalorder %s32, 0
      %p225 = por %p223, %p224
      %p226 = scmp.ne.s32.totalorder %s218, %s220
      %p227 = scmp.eq.s32.totalorder %s37, 1
      %p228 = por %p226, %p227
      %p229 = scmp.ne.s32.totalorder %s220, %s221
      %p230 = scmp.eq.s32.totalorder %s37, 0
      %p231 = por %p229, %p230
      %p232 = scmp.ne.s32.totalorder %s220, %s221
      %p233 = scmp.eq.s32.totalorder %s38, 1
      %p234 = por %p232, %p233
      %p236 = scmp.ne.s32.totalorder %s221, %s235
      %p237 = scmp.eq.s32.totalorder %s38, 0
      %p238 = por %p236, %p237
      %s240 = sadd.s32 %s239, 1
      %p243 = scmp.eq.s32.totalorder %s32, 1
      %p244 = scmp.ne.s32.totalorder %s239, %s241
      %p245 = scmp.eq.s32.totalorder %s32, 0
      %p246 = por %p244, %p245
      %p247 = scmp.ne.s32.totalorder %s239, %s241
      %p248 = scmp.eq.s32.totalorder %s37, 1
      %p249 = por %p247, %p248
      %p250 = scmp.ne.s32.totalorder %s241, %s242
      %p251 = scmp.eq.s32.totalorder %s37, 0
      %p252 = por %p250, %p251
      %p253 = scmp.ne.s32.totalorder %s241, %s242
      %p254 = scmp.eq.s32.totalorder %s38, 1
      %p255 = por %p253, %p254
      %p257 = scmp.ne.s32.totalorder %s242, %s256
      %p258 = scmp.eq.s32.totalorder %s38, 0
      %p259 = por %p257, %p258
      %s261 = sadd.s32 %s260, 1
      %p264 = scmp.eq.s32.totalorder %s32, 1
      %p265 = scmp.ne.s32.totalorder %s260, %s262
      %p266 = scmp.eq.s32.totalorder %s32, 0
      %p267 = por %p265, %p266
      %p268 = scmp.ne.s32.totalorder %s260, %s262
      %p269 = scmp.eq.s32.totalorder %s37, 1
      %p270 = por %p268, %p269
      %p271 = scmp.ne.s32.totalorder %s262, %s263
      %p272 = scmp.eq.s32.totalorder %s37, 0
      %p273 = por %p271, %p272
      %p274 = scmp.ne.s32.totalorder %s262, %s263
      %p275 = scmp.eq.s32.totalorder %s38, 1
      %p276 = por %p274, %p275
      %p278 = scmp.ne.s32.totalorder %s263, %s277
      %p279 = scmp.eq.s32.totalorder %s38, 0
      %p280 = por %p278, %p279
      %s282 = sadd.s32 %s281, 1
      %p285 = scmp.eq.s32.totalorder %s32, 1
      %p286 = scmp.ne.s32.totalorder %s281, %s283
      %p287 = scmp.eq.s32.totalorder %s32, 0
      %p288 = por %p286, %p287
      %p289 = scmp.ne.s32.totalorder %s281, %s283
      %p290 = scmp.eq.s32.totalorder %s37, 1
      %p291 = por %p289, %p290
      %p292 = scmp.ne.s32.totalorder %s283, %s284
      %p293 = scmp.eq.s32.totalorder %s37, 0
      %p294 = por %p292, %p293
      %p295 = scmp.ne.s32.totalorder %s283, %s284
      %p296 = scmp.eq.s32.totalorder %s38, 1
      %p297 = por %p295, %p296
      %p299 = scmp.ne.s32.totalorder %s284, %s298
      %p300 = scmp.eq.s32.totalorder %s38, 0
      %p301 = por %p299, %p300
      %s303 = sadd.s32 %s302, 1
      %p306 = scmp.eq.s32.totalorder %s32, 1
      %p307 = scmp.ne.s32.totalorder %s302, %s304
      %p308 = scmp.eq.s32.totalorder %s32, 0
      %p309 = por %p307, %p308
      %p310 = scmp.ne.s32.totalorder %s302, %s304
      %p311 = scmp.eq.s32.totalorder %s37, 1
      %p312 = por %p310, %p311
      %p313 = scmp.ne.s32.totalorder %s304, %s305
      %p314 = scmp.eq.s32.totalorder %s37, 0
      %p315 = por %p313, %p314
      %p316 = scmp.ne.s32.totalorder %s304, %s305
      %p317 = scmp.eq.s32.totalorder %s38, 1
      %p318 = por %p316, %p317
      %p320 = scmp.ne.s32.totalorder %s305, %s319
      %p321 = scmp.eq.s32.totalorder %s38, 0
      %p322 = por %p320, %p321
      %s324 = sadd.s32 %s323, 1
      %p327 = scmp.eq.s32.totalorder %s32, 1
      %p328 = scmp.ne.s32.totalorder %s323, %s325
      %p329 = scmp.eq.s32.totalorder %s32, 0
      %p330 = por %p328, %p329
      %p331 = scmp.ne.s32.totalorder %s323, %s325
      %p332 = scmp.eq.s32.totalorder %s37, 1
      %p333 = por %p331, %p332
      %p334 = scmp.ne.s32.totalorder %s325, %s326
      %p335 = scmp.eq.s32.totalorder %s37, 0
      %p336 = por %p334, %p335
      %p337 = scmp.ne.s32.totalorder %s325, %s326
      %p338 = scmp.eq.s32.totalorder %s38, 1
      %p339 = por %p337, %p338
      %p341 = scmp.ne.s32.totalorder %s326, %s340
      %p342 = scmp.eq.s32.totalorder %s38, 0
      %p343 = por %p341, %p342
      %s345 = sadd.s32 %s344, 1
      %p348 = scmp.eq.s32.totalorder %s32, 1
      %p349 = scmp.ne.s32.totalorder %s344, %s346
      %p350 = scmp.eq.s32.totalorder %s32, 0
      %p351 = por %p349, %p350
      %p352 = scmp.ne.s32.totalorder %s344, %s346
      %p353 = scmp.eq.s32.totalorder %s37, 1
      %p354 = por %p352, %p353
      %p355 = scmp.ne.s32.totalorder %s346, %s347
      %p356 = scmp.eq.s32.totalorder %s37, 0
      %p357 = por %p355, %p356
      %p358 = scmp.ne.s32.totalorder %s346, %s347
      %p359 = scmp.eq.s32.totalorder %s38, 1
      %p360 = por %p358, %p359
      %p362 = scmp.ne.s32.totalorder %s347, %s361
      %p363 = scmp.eq.s32.totalorder %s38, 0
      %p364 = por %p362, %p363
      %s366 = sadd.s32 %s365, 1
      %p369 = scmp.eq.s32.totalorder %s32, 1
      %p370 = scmp.ne.s32.totalorder %s365, %s367
      %p371 = scmp.eq.s32.totalorder %s32, 0
      %p372 = por %p370, %p371
      %p373 = scmp.ne.s32.totalorder %s365, %s367
      %p374 = scmp.eq.s32.totalorder %s37, 1
      %p375 = por %p373, %p374
      %p376 = scmp.ne.s32.totalorder %s367, %s368
      %p377 = scmp.eq.s32.totalorder %s37, 0
      %p378 = por %p376, %p377
      %p379 = scmp.ne.s32.totalorder %s367, %s368
      %p380 = scmp.eq.s32.totalorder %s38, 1
      %p381 = por %p379, %p380
      %p383 = scmp.ne.s32.totalorder %s368, %s382
      %p384 = scmp.eq.s32.totalorder %s38, 0
      %p385 = por %p383, %p384
      %s387 = sadd.s32 %s386, 1
      %p390 = scmp.eq.s32.totalorder %s32, 1
      %p391 = scmp.ne.s32.totalorder %s386, %s388
      %p392 = scmp.eq.s32.totalorder %s32, 0
      %p393 = por %p391, %p392
      %p394 = scmp.ne.s32.totalorder %s386, %s388
      %p395 = scmp.eq.s32.totalorder %s37, 1
      %p396 = por %p394, %p395
      %p397 = scmp.ne.s32.totalorder %s388, %s389
      %p398 = scmp.eq.s32.totalorder %s37, 0
      %p399 = por %p397, %p398
      %p400 = scmp.ne.s32.totalorder %s388, %s389
      %p401 = scmp.eq.s32.totalorder %s38, 1
      %p402 = por %p400, %p401
      %p404 = scmp.ne.s32.totalorder %s389, %s403
      %p405 = scmp.eq.s32.totalorder %s38, 0
      %p406 = por %p404, %p405
      %s408 = sadd.s32 %s407, 1
      %p411 = scmp.eq.s32.totalorder %s32, 1
      %p412 = scmp.ne.s32.totalorder %s407, %s409
      %p413 = scmp.eq.s32.totalorder %s32, 0
      %p414 = por %p412, %p413
      %p415 = scmp.ne.s32.totalorder %s407, %s409
      %p416 = scmp.eq.s32.totalorder %s37, 1
      %p417 = por %p415, %p416
      %p418 = scmp.ne.s32.totalorder %s409, %s410
      %p419 = scmp.eq.s32.totalorder %s37, 0
      %p420 = por %p418, %p419
      %p421 = scmp.ne.s32.totalorder %s409, %s410
      %p422 = scmp.eq.s32.totalorder %s38, 1
      %p423 = por %p421, %p422
      %p425 = scmp.ne.s32.totalorder %s410, %s424
      %p426 = scmp.eq.s32.totalorder %s38, 0
      %p427 = por %p425, %p426
      %s428 = ssub.s32 %s32, %s39
      %p429 = scmp.eq.s32.totalorder %s428, 0
      %s431 = sadd.s32 %s430, 1
      %s432 = scalar_select %p429, %s430, %s431
      %p435 = pneg %p429
      %p436 = scmp.eq.s32.totalorder %s32, 1
      %p437 = por %p435, %p436
      %p438 = scmp.ne.s32.totalorder %s430, %s433
      %p439 = scmp.eq.s32.totalorder %s32, 0
      %p440 = por %p438, %p439
      %p441 = scmp.ne.s32.totalorder %s430, %s433
      %p442 = scmp.eq.s32.totalorder %s37, 1
      %p443 = por %p441, %p442
      %p444 = scmp.ne.s32.totalorder %s433, %s434
      %p445 = scmp.eq.s32.totalorder %s37, 0
      %p446 = por %p444, %p445
      %p447 = scmp.ne.s32.totalorder %s433, %s434
      %p448 = scmp.eq.s32.totalorder %s38, 1
      %p449 = por %p447, %p448
      %p451 = scmp.ne.s32.totalorder %s434, %s450
      %p452 = scmp.eq.s32.totalorder %s38, 0
      %p453 = por %p451, %p452
      %s454 = ssub.s32 %s32, %s39
      %p455 = scmp.eq.s32.totalorder %s454, 0
      %s457 = sadd.s32 %s456, 1
      %s458 = scalar_select %p455, %s456, %s457
      %p461 = pneg %p455
      %p462 = scmp.eq.s32.totalorder %s32, 1
      %p463 = por %p461, %p462
      %p464 = scmp.ne.s32.totalorder %s456, %s459
      %p465 = scmp.eq.s32.totalorder %s32, 0
      %p466 = por %p464, %p465
      %p467 = scmp.ne.s32.totalorder %s456, %s459
      %p468 = scmp.eq.s32.totalorder %s37, 1
      %p469 = por %p467, %p468
      %p470 = scmp.ne.s32.totalorder %s459, %s460
      %p471 = scmp.eq.s32.totalorder %s37, 0
      %p472 = por %p470, %p471
      %p473 = scmp.ne.s32.totalorder %s459, %s460
      %p474 = scmp.eq.s32.totalorder %s38, 1
      %p475 = por %p473, %p474
      %p477 = scmp.ne.s32.totalorder %s460, %s476
      %p478 = scmp.eq.s32.totalorder %s38, 0
      %p479 = por %p477, %p478
      %p480 = scmp.le.s32.totalorder 1, %s32
      %p481 = scmp.lt.s32.totalorder %s32, 3
      %p482 = pnand %p480, %p481
      %p483 = pneg %p482
      // Predicated region
      $region9: #{tpu_custom_call.1} parent=5 // pred_check
        _
      $region10: #{tpu_custom_call.1} parent=5 // pred_check_branch
        %485 = sbr.rel (%p482) target = $region12
      $region11: #{tpu_custom_call.1} parent=5 // pred_region
        %s486 = ssub.s32 %s32, 1
        // Predicated region
        $region13: #{tpu_custom_call.1} parent=11 // pred_check
          %p487 = pneg %p105
        $region14: #{tpu_custom_call.1} parent=11 // pred_check_branch
          %489 = sbr.rel (%p487) target = $region16
        $region15: #{tpu_custom_call.1} parent=11 // pred_region
          _
        $region16: #{tpu_custom_call.1} parent=11 // pred_fallthru
          _
        // Predicated region
        $region17: #{tpu_custom_call.1} parent=11 // pred_check
          %p490 = pneg %p126
        $region18: #{tpu_custom_call.1} parent=11 // pred_check_branch
          %492 = sbr.rel (%p490) target = $region20
        $region19: #{tpu_custom_call.1} parent=11 // pred_region
          _
        $region20: #{tpu_custom_call.1} parent=11 // pred_fallthru
          _
        // Predicated region
        $region21: #{tpu_custom_call.1} parent=11 // pred_check
          %p493 = pneg %p147
        $region22: #{tpu_custom_call.1} parent=11 // pred_check_branch
          %495 = sbr.rel (%p493) target = $region24
        $region23: #{tpu_custom_call.1} parent=11 // pred_region
          _
        $region24: #{tpu_custom_call.1} parent=11 // pred_fallthru
          _
        // Predicated region
        $region25: #{tpu_custom_call.1} parent=11 // pred_check
          %p496 = pneg %p168
        $region26: #{tpu_custom_call.1} parent=11 // pred_check_branch
          %498 = sbr.rel (%p496) target = $region28
        $region27: #{tpu_custom_call.1} parent=11 // pred_region
          _
        $region28: #{tpu_custom_call.1} parent=11 // pred_fallthru
          _
        // Predicated region
        $region29: #{tpu_custom_call.1} parent=11 // pred_check
          %p499 = pneg %p189
        $region30: #{tpu_custom_call.1} parent=11 // pred_check_branch
          %501 = sbr.rel (%p499) target = $region32
        $region31: #{tpu_custom_call.1} parent=11 // pred_region
          _
        $region32: #{tpu_custom_call.1} parent=11 // pred_fallthru
          _
        // Predicated region
        $region33: #{tpu_custom_call.1} parent=11 // pred_check
          %p502 = pneg %p210
        $region34: #{tpu_custom_call.1} parent=11 // pred_check_branch
          %504 = sbr.rel (%p502) target = $region36
        $region35: #{tpu_custom_call.1} parent=11 // pred_region
          _
        $region36: #{tpu_custom_call.1} parent=11 // pred_fallthru
          _
        // Predicated region
        $region37: #{tpu_custom_call.1} parent=11 // pred_check
          %p505 = pneg %p231
        $region38: #{tpu_custom_call.1} parent=11 // pred_check_branch
          %507 = sbr.rel (%p505) target = $region40
        $region39: #{tpu_custom_call.1} parent=11 // pred_region
          _
        $region40: #{tpu_custom_call.1} parent=11 // pred_fallthru
          _
        // Predicated region
        $region41: #{tpu_custom_call.1} parent=11 // pred_check
          %p508 = pneg %p252
        $region42: #{tpu_custom_call.1} parent=11 // pred_check_branch
          %510 = sbr.rel (%p508) target = $region44
        $region43: #{tpu_custom_call.1} parent=11 // pred_region
          _
        $region44: #{tpu_custom_call.1} parent=11 // pred_fallthru
          _
        // Predicated region
        $region45: #{tpu_custom_call.1} parent=11 // pred_check
          %p511 = pneg %p273
        $region46: #{tpu_custom_call.1} parent=11 // pred_check_branch
          %513 = sbr.rel (%p511) target = $region48
        $region47: #{tpu_custom_call.1} parent=11 // pred_region
          _
        $region48: #{tpu_custom_call.1} parent=11 // pred_fallthru
          _
        // Predicated region
        $region49: #{tpu_custom_call.1} parent=11 // pred_check
          %p514 = pneg %p294
        $region50: #{tpu_custom_call.1} parent=11 // pred_check_branch
          %516 = sbr.rel (%p514) target = $region52
        $region51: #{tpu_custom_call.1} parent=11 // pred_region
          _
        $region52: #{tpu_custom_call.1} parent=11 // pred_fallthru
          _
        // Predicated region
        $region53: #{tpu_custom_call.1} parent=11 // pred_check
          %p517 = pneg %p315
        $region54: #{tpu_custom_call.1} parent=11 // pred_check_branch
          %519 = sbr.rel (%p517) target = $region56
        $region55: #{tpu_custom_call.1} parent=11 // pred_region
          _
        $region56: #{tpu_custom_call.1} parent=11 // pred_fallthru
          _
        // Predicated region
        $region57: #{tpu_custom_call.1} parent=11 // pred_check
          %p520 = pneg %p336
        $region58: #{tpu_custom_call.1} parent=11 // pred_check_branch
          %522 = sbr.rel (%p520) target = $region60
        $region59: #{tpu_custom_call.1} parent=11 // pred_region
          _
        $region60: #{tpu_custom_call.1} parent=11 // pred_fallthru
          _
        // Predicated region
        $region61: #{tpu_custom_call.1} parent=11 // pred_check
          %p523 = pneg %p357
        $region62: #{tpu_custom_call.1} parent=11 // pred_check_branch
          %525 = sbr.rel (%p523) target = $region64
        $region63: #{tpu_custom_call.1} parent=11 // pred_region
          _
        $region64: #{tpu_custom_call.1} parent=11 // pred_fallthru
          _
        // Predicated region
        $region65: #{tpu_custom_call.1} parent=11 // pred_check
          %p526 = pneg %p378
        $region66: #{tpu_custom_call.1} parent=11 // pred_check_branch
          %528 = sbr.rel (%p526) target = $region68
        $region67: #{tpu_custom_call.1} parent=11 // pred_region
          _
        $region68: #{tpu_custom_call.1} parent=11 // pred_fallthru
          _
        // Predicated region
        $region69: #{tpu_custom_call.1} parent=11 // pred_check
          %p529 = pneg %p399
        $region70: #{tpu_custom_call.1} parent=11 // pred_check_branch
          %531 = sbr.rel (%p529) target = $region72
        $region71: #{tpu_custom_call.1} parent=11 // pred_region
          _
        $region72: #{tpu_custom_call.1} parent=11 // pred_fallthru
          _
        // Predicated region
        $region73: #{tpu_custom_call.1} parent=11 // pred_check
          %p532 = pneg %p420
        $region74: #{tpu_custom_call.1} parent=11 // pred_check_branch
          %534 = sbr.rel (%p532) target = $region76
        $region75: #{tpu_custom_call.1} parent=11 // pred_region
          _
        $region76: #{tpu_custom_call.1} parent=11 // pred_fallthru
          _
      $region12: #{tpu_custom_call.1} parent=5 // pred_fallthru
        _
      %p535 = scmp.lt.s32.totalorder %s32, 2
      // Predicated region
      $region77: #{tpu_custom_call.1} parent=5 // pred_check
        %p536 = pneg %p535
      $region78: #{tpu_custom_call.1} parent=5 // pred_check_branch
        %538 = sbr.rel (%p536) target = $region80
      $region79: #{tpu_custom_call.1} parent=5 // pred_region
        // Predicated region
        $region81: #{tpu_custom_call.1} parent=79 // pred_check
          %p539 = pneg %p52
        $region82: #{tpu_custom_call.1} parent=79 // pred_check_branch
          %541 = sbr.rel (%p539) target = $region84
        $region83: #{tpu_custom_call.1} parent=79 // pred_region
          %p542 = scmp.lt.s32.totalorder %s32, 1
          %s543 = scalar_select %p542, %s32, 1
          %s544 = smul.addr %s543, 8
          %s545 = scalar_lea.vmem %s0, %s544
        $region84: #{tpu_custom_call.1} parent=79 // pred_fallthru
          _
        // Predicated region
        $region85: #{tpu_custom_call.1} parent=79 // pred_check
          %p546 = pneg %p78
        $region86: #{tpu_custom_call.1} parent=79 // pred_check_branch
          %548 = sbr.rel (%p546) target = $region88
        $region87: #{tpu_custom_call.1} parent=79 // pred_region
          %p549 = scmp.lt.s32.totalorder %s32, 1
          %s550 = scalar_select %p549, %s32, 1
          %s551 = smul.addr %s550, 2
          %s552 = scalar_lea.vmem %s1, %s551
        $region88: #{tpu_custom_call.1} parent=79 // pred_fallthru
          _
      $region80: #{tpu_custom_call.1} parent=5 // pred_fallthru
        _
      %p553 = scmp.le.s32.totalorder 1, %s32
      %p554 = scmp.lt.s32.totalorder %s32, 3
      %p555 = pnand %p553, %p554
      %p556 = pneg %p555
      // Predicated region
      $region89: #{tpu_custom_call.1} parent=5 // pred_check
        _
      $region90: #{tpu_custom_call.1} parent=5 // pred_check_branch
        %558 = sbr.rel (%p555) target = $region92
      $region91: #{tpu_custom_call.1} parent=5 // pred_region
        %s559 = ssub.s32 %s32, 1
        %p560 = scmp.lt.s32.totalorder %s37, 1
        %s561 = scalar_select %p560, %s37, 1
        %s562 = smul.addr %s561, 8
        %s563 = scalar_lea.vmem %s0, %s562
        %p564 = pneg %p58
        %p565 = pneg %p55
        %p566 = scmp.lt.s32.totalorder %s37, 1
        %s567 = scalar_select %p566, %s37, 1
        %s568 = smul.addr %s567, 2
        %s569 = scalar_lea.vmem %s1, %s568
        %p570 = pneg %p84
        %p571 = pneg %p81
        %p572 = pneg %p105
        %p573 = pneg %p102
        %p574 = pneg %p126
        %p575 = pneg %p123
        %p576 = pneg %p147
        %p577 = pneg %p144
        %p578 = pneg %p168
        %p579 = pneg %p165
        %p580 = pneg %p189
        %p581 = pneg %p186
        %p582 = pneg %p210
        %p583 = pneg %p207
        %p584 = pneg %p231
        %p585 = pneg %p228
        %p586 = pneg %p252
        %p587 = pneg %p249
        %p588 = pneg %p273
        %p589 = pneg %p270
        %p590 = pneg %p294
        %p591 = pneg %p291
        %p592 = pneg %p315
        %p593 = pneg %p312
        %p594 = pneg %p336
        %p595 = pneg %p333
        %p596 = pneg %p357
        %p597 = pneg %p354
        %p598 = pneg %p378
        %p599 = pneg %p375
        %p600 = pneg %p399
        %p601 = pneg %p396
        %p602 = pneg %p420
        %p603 = pneg %p417
        %p604 = pneg %p446
        %p605 = pneg %p443
        %s606 = sand.u32 %s433, 1
        %s607 = scalar_lea.sflag [#allocation3], %s606
        %s608 = sand.u32 %s433, 1
        %s609 = smul.addr %s608, 8
        %s610 = scalar_lea.vmem [#allocation2], %s609
        %p611 = pneg %p472
        %p612 = pneg %p469
        %s613 = sand.u32 %s459, 1
        %s614 = scalar_lea.sflag [#allocation5], %s613
        %s615 = sand.u32 %s459, 1
        %s616 = smul.addr %s615, 32
        %s617 = scalar_lea.vmem [#allocation4], %s616
        %p618 = scmp.lt.s32.totalorder %s37, 1
        %s619 = scalar_select %p618, %s37, 1
        %s620 = smul.addr %s619, 8
        %s621 = scalar_lea.vmem %s0, %s620
        %p622 = scmp.lt.s32.totalorder %s37, 1
        %s623 = scalar_select %p622, %s37, 1
        %s624 = smul.addr %s623, 2
        %s625 = scalar_lea.vmem %s1, %s624
        %v626 = vld [vmem:[%s621] sm:$0xff]
        %v627 = vld [vmem:[%s625] sm:$0x3]
        %v628 = vunpack.c.0.s8 %v627
        %vm629 = vcmp.ne.s32.totalorder %v628, 0
        %v630 = vld [vmem:[%s2] sm:$0xff]
        %v631 = vld [vmem:[%s2 + $0x8] sm:$0xff]
        %v632 = vld [vmem:[%s2 + $0x10] sm:$0xff]
        %v633 = vld [vmem:[%s2 + $0x18] sm:$0xff]
        %v634 = vld [vmem:[%s2 + $0x20] sm:$0xff]
        %v635 = vld [vmem:[%s2 + $0x28] sm:$0xff]
        %v636 = vld [vmem:[%s2 + $0x30] sm:$0xff]
        %v637 = vld [vmem:[%s2 + $0x38] sm:$0xff]
        %v638 = vld [vmem:[%s2 + $0x40] sm:$0xff]
        %v639 = vld [vmem:[%s2 + $0x48] sm:$0xff]
        %v640 = vld [vmem:[%s2 + $0x50] sm:$0xff]
        %v641 = vld [vmem:[%s2 + $0x58] sm:$0xff]
        %v642 = vld [vmem:[%s2 + $0x60] sm:$0xff]
        %v643 = vld [vmem:[%s2 + $0x68] sm:$0xff]
        %v644 = vld [vmem:[%s2 + $0x70] sm:$0xff]
        %v645 = vld [vmem:[%s2 + $0x78] sm:$0xff]
        %v646 = vld [vmem:[%s3] sm:$0x1]
        %v647 = vld [vmem:[%s3 + $0x1] sm:$0x1]
        %v648 = vld [vmem:[%s3 + $0x2] sm:$0x1]
        %v649 = vld [vmem:[%s3 + $0x3] sm:$0x1]
        %v654 = vlaneseq
        %v655 = vshrl.u32 %v654, 7
        %v656 = vsub.s32 0, %v655
        %v657 = vrot.slane %v646, %v656
        %v658 = vlaneseq
        %v659 = vshrl.u32 %v658, 7
        %v660 = vsub.s32 0, %v659
        %v661 = vrot.slane %v647, %v660
        %v662 = vlaneseq
        %v663 = vshrl.u32 %v662, 7
        %v664 = vsub.s32 0, %v663
        %v665 = vrot.slane %v648, %v664
        %v666 = vlaneseq
        %v667 = vshrl.u32 %v666, 7
        %v668 = vsub.s32 0, %v667
        %v669 = vrot.slane %v649, %v668
        %vm674 = vcmask 261120
        %v676 = vsel %vm674, %v626, 0
        %678 = vmatprep.subr.mxu0 0.0
        %679 = vmatpush1.msra.mxu0 0.0
        %680 = vmatprep.subr.mxu0 0.0
        %681 = vmatpush1.msra.mxu0 0.0
        %682 = vmatprep.subr.mxu0 0.0
        %683 = vmatpush1.msra.mxu0 0.0
        %684 = vmatprep.subr.mxu0 0.0
        %685 = vmatpush1.msra.mxu0 0.0
        %686 = vmatprep.subr.mxu0 0.0
        %687 = vmatpush1.msra.mxu0 0.0
        %688 = vmatprep.subr.mxu0 0.0
        %689 = vmatpush1.msra.mxu0 0.0
        %690 = vmatprep.subr.mxu0 0.0
        %691 = vmatpush1.msra.mxu0 0.0
        %692 = vmatprep.subr.mxu0 0.0
        %693 = vmatpush1.msra.mxu0 0.0
        %694 = vmatprep.subr.mxu0 0.0
        %695 = vmatpush1.msra.mxu0 0.0
        %696 = vmatprep.subr.mxu0 0.0
        %697 = vmatpush1.msra.mxu0 0.0
        %698 = vmatprep.subr.mxu0 0.0
        %699 = vmatpush1.msra.mxu0 0.0
        %700 = vmatprep.subr.mxu0 0.0
        %701 = vmatpush1.msra.mxu0 0.0
        %702 = vmatprep.subr.mxu0 0.0
        %703 = vmatpush1.msra.mxu0 %v633
        %704 = vmatprep.subr.mxu0 0.0
        %705 = vmatpush1.msra.mxu0 %v632
        %706 = vmatprep.subr.mxu0 0.0
        %707 = vmatpush1.msra.mxu0 %v631
        %708 = vmatprep.subr.mxu0 0.0
        %709 = vmatpush1.msra.mxu0 %v630
        %710 = vmatprep.subr.mxu0 0.0
        %711 = vmatpush2.msra.mxu0 0.0
        %712 = vmatprep.subr.mxu0 0.0
        %713 = vmatpush2.msra.mxu0 0.0
        %714 = vmatprep.subr.mxu0 0.0
        %715 = vmatpush2.msra.mxu0 0.0
        %716 = vmatprep.subr.mxu0 0.0
        %717 = vmatpush2.msra.mxu0 0.0
        %718 = vmatprep.subr.mxu0 0.0
        %719 = vmatpush2.msra.mxu0 0.0
        %720 = vmatprep.subr.mxu0 0.0
        %721 = vmatpush2.msra.mxu0 0.0
        %722 = vmatprep.subr.mxu0 0.0
        %723 = vmatpush2.msra.mxu0 0.0
        %724 = vmatprep.subr.mxu0 0.0
        %725 = vmatpush2.msra.mxu0 0.0
        %726 = vmatprep.subr.mxu0 0.0
        %727 = vmatpush2.msra.mxu0 0.0
        %728 = vmatprep.subr.mxu0 0.0
        %729 = vmatpush2.msra.mxu0 0.0
        %730 = vmatprep.subr.mxu0 0.0
        %731 = vmatpush2.msra.mxu0 0.0
        %732 = vmatprep.subr.mxu0 0.0
        %733 = vmatpush2.msra.mxu0 0.0
        %734 = vmatprep.subr.mxu0 0.0
        %735 = vmatpush2.msra.mxu0 0.0
        %736 = vmatprep.subr.mxu0 0.0
        %737 = vmatpush2.msra.mxu0 0.0
        %738 = vmatprep.subr.mxu0 0.0
        %739 = vmatpush2.msra.mxu0 0.0
        %740 = vmatprep.subr.mxu0 0.0
        %741 = vmatpush2.msra.mxu0 0.0
        %742 = vmatprep.mubr.f32.mxu0 0.0
        %743 = vmatmul.mubr.f32.gmra.mxu0 %v676
        %v744 = vpop.f32.mrf.mxu0
        %v745 = vadd.f32 %v657, %v744
        %v746 = vpop.f32.mrf.mxu0
        %747 = vdwg.mxu0
        %748 = vmatprep.subr.mxu0 0.0
        %749 = vmatpush1.msra.mxu0 0.0
        %750 = vmatprep.subr.mxu0 0.0
        %751 = vmatpush1.msra.mxu0 0.0
        %752 = vmatprep.subr.mxu0 0.0
        %753 = vmatpush1.msra.mxu0 0.0
        %754 = vmatprep.subr.mxu0 0.0
        %755 = vmatpush1.msra.mxu0 0.0
        %756 = vmatprep.subr.mxu0 0.0
        %757 = vmatpush1.msra.mxu0 0.0
        %758 = vmatprep.subr.mxu0 0.0
        %759 = vmatpush1.msra.mxu0 0.0
        %760 = vmatprep.subr.mxu0 0.0
        %761 = vmatpush1.msra.mxu0 0.0
        %762 = vmatprep.subr.mxu0 0.0
        %763 = vmatpush1.msra.mxu0 0.0
        %764 = vmatprep.subr.mxu0 0.0
        %765 = vmatpush1.msra.mxu0 0.0
        %766 = vmatprep.subr.mxu0 0.0
        %767 = vmatpush1.msra.mxu0 0.0
        %768 = vmatprep.subr.mxu0 0.0
        %769 = vmatpush1.msra.mxu0 0.0
        %770 = vmatprep.subr.mxu0 0.0
        %771 = vmatpush1.msra.mxu0 0.0
        %772 = vmatprep.subr.mxu0 0.0
        %773 = vmatpush1.msra.mxu0 %v637
        %774 = vmatprep.subr.mxu0 0.0
        %775 = vmatpush1.msra.mxu0 %v636
        %776 = vmatprep.subr.mxu0 0.0
        %777 = vmatpush1.msra.mxu0 %v635
        %778 = vmatprep.subr.mxu0 0.0
        %779 = vmatpush1.msra.mxu0 %v634
        %780 = vmatprep.subr.mxu0 0.0
        %781 = vmatpush2.msra.mxu0 0.0
        %782 = vmatprep.subr.mxu0 0.0
        %783 = vmatpush2.msra.mxu0 0.0
        %784 = vmatprep.subr.mxu0 0.0
        %785 = vmatpush2.msra.mxu0 0.0
        %786 = vmatprep.subr.mxu0 0.0
        %787 = vmatpush2.msra.mxu0 0.0
        %788 = vmatprep.subr.mxu0 0.0
        %789 = vmatpush2.msra.mxu0 0.0
        %790 = vmatprep.subr.mxu0 0.0
        %791 = vmatpush2.msra.mxu0 0.0
        %792 = vmatprep.subr.mxu0 0.0
        %793 = vmatpush2.msra.mxu0 0.0
        %794 = vmatprep.subr.mxu0 0.0
        %795 = vmatpush2.msra.mxu0 0.0
        %796 = vmatprep.subr.mxu0 0.0
        %797 = vmatpush2.msra.mxu0 0.0
        %798 = vmatprep.subr.mxu0 0.0
        %799 = vmatpush2.msra.mxu0 0.0
        %800 = vmatprep.subr.mxu0 0.0
        %801 = vmatpush2.msra.mxu0 0.0
        %802 = vmatprep.subr.mxu0 0.0
        %803 = vmatpush2.msra.mxu0 0.0
        %804 = vmatprep.subr.mxu0 0.0
        %805 = vmatpush2.msra.mxu0 0.0
        %806 = vmatprep.subr.mxu0 0.0
        %807 = vmatpush2.msra.mxu0 0.0
        %808 = vmatprep.subr.mxu0 0.0
        %809 = vmatpush2.msra.mxu0 0.0
        %810 = vmatprep.subr.mxu0 0.0
        %811 = vmatpush2.msra.mxu0 0.0
        %812 = vmatprep.mubr.f32.mxu0 0.0
        %813 = vmatmul.mubr.f32.gmra.mxu0 %v676
        %v814 = vpop.f32.mrf.mxu0
        %v815 = vadd.f32 %v661, %v814
        %v816 = vpop.f32.mrf.mxu0
        %817 = vdwg.mxu0
        %818 = vmatprep.subr.mxu0 0.0
        %819 = vmatpush1.msra.mxu0 0.0
        %820 = vmatprep.subr.mxu0 0.0
        %821 = vmatpush1.msra.mxu0 0.0
        %822 = vmatprep.subr.mxu0 0.0
        %823 = vmatpush1.msra.mxu0 0.0
        %824 = vmatprep.subr.mxu0 0.0
        %825 = vmatpush1.msra.mxu0 0.0
        %826 = vmatprep.subr.mxu0 0.0
        %827 = vmatpush1.msra.mxu0 0.0
        %828 = vmatprep.subr.mxu0 0.0
        %829 = vmatpush1.msra.mxu0 0.0
        %830 = vmatprep.subr.mxu0 0.0
        %831 = vmatpush1.msra.mxu0 0.0
        %832 = vmatprep.subr.mxu0 0.0
        %833 = vmatpush1.msra.mxu0 0.0
        %834 = vmatprep.subr.mxu0 0.0
        %835 = vmatpush1.msra.mxu0 0.0
        %836 = vmatprep.subr.mxu0 0.0
        %837 = vmatpush1.msra.mxu0 0.0
        %838 = vmatprep.subr.mxu0 0.0
        %839 = vmatpush1.msra.mxu0 0.0
        %840 = vmatprep.subr.mxu0 0.0
        %841 = vmatpush1.msra.mxu0 0.0
        %842 = vmatprep.subr.mxu0 0.0
        %843 = vmatpush1.msra.mxu0 %v641
        %844 = vmatprep.subr.mxu0 0.0
        %845 = vmatpush1.msra.mxu0 %v640
        %846 = vmatprep.subr.mxu0 0.0
        %847 = vmatpush1.msra.mxu0 %v639
        %848 = vmatprep.subr.mxu0 0.0
        %849 = vmatpush1.msra.mxu0 %v638
        %850 = vmatprep.subr.mxu0 0.0
        %851 = vmatpush2.msra.mxu0 0.0
        %852 = vmatprep.subr.mxu0 0.0
        %853 = vmatpush2.msra.mxu0 0.0
        %854 = vmatprep.subr.mxu0 0.0
        %855 = vmatpush2.msra.mxu0 0.0
        %856 = vmatprep.subr.mxu0 0.0
        %857 = vmatpush2.msra.mxu0 0.0
        %858 = vmatprep.subr.mxu0 0.0
        %859 = vmatpush2.msra.mxu0 0.0
        %860 = vmatprep.subr.mxu0 0.0
        %861 = vmatpush2.msra.mxu0 0.0
        %862 = vmatprep.subr.mxu0 0.0
        %863 = vmatpush2.msra.mxu0 0.0
        %864 = vmatprep.subr.mxu0 0.0
        %865 = vmatpush2.msra.mxu0 0.0
        %866 = vmatprep.subr.mxu0 0.0
        %867 = vmatpush2.msra.mxu0 0.0
        %868 = vmatprep.subr.mxu0 0.0
        %869 = vmatpush2.msra.mxu0 0.0
        %870 = vmatprep.subr.mxu0 0.0
        %871 = vmatpush2.msra.mxu0 0.0
        %872 = vmatprep.subr.mxu0 0.0
        %873 = vmatpush2.msra.mxu0 0.0
        %874 = vmatprep.subr.mxu0 0.0
        %875 = vmatpush2.msra.mxu0 0.0
        %876 = vmatprep.subr.mxu0 0.0
        %877 = vmatpush2.msra.mxu0 0.0
        %878 = vmatprep.subr.mxu0 0.0
        %879 = vmatpush2.msra.mxu0 0.0
        %880 = vmatprep.subr.mxu0 0.0
        %881 = vmatpush2.msra.mxu0 0.0
        %882 = vmatprep.mubr.f32.mxu0 0.0
        %883 = vmatmul.mubr.f32.gmra.mxu0 %v676
        %v884 = vpop.f32.mrf.mxu0
        %v885 = vadd.f32 %v665, %v884
        %v886 = vpop.f32.mrf.mxu0
        %887 = vdwg.mxu0
        %888 = vmatprep.subr.mxu0 0.0
        %889 = vmatpush1.msra.mxu0 0.0
        %890 = vmatprep.subr.mxu0 0.0
        %891 = vmatpush1.msra.mxu0 0.0
        %892 = vmatprep.subr.mxu0 0.0
        %893 = vmatpush1.msra.mxu0 0.0
        %894 = vmatprep.subr.mxu0 0.0
        %895 = vmatpush1.msra.mxu0 0.0
        %896 = vmatprep.subr.mxu0 0.0
        %897 = vmatpush1.msra.mxu0 0.0
        %898 = vmatprep.subr.mxu0 0.0
        %899 = vmatpush1.msra.mxu0 0.0
        %900 = vmatprep.subr.mxu0 0.0
        %901 = vmatpush1.msra.mxu0 0.0
        %902 = vmatprep.subr.mxu0 0.0
        %903 = vmatpush1.msra.mxu0 0.0
        %904 = vmatprep.subr.mxu0 0.0
        %905 = vmatpush1.msra.mxu0 0.0
        %906 = vmatprep.subr.mxu0 0.0
        %907 = vmatpush1.msra.mxu0 0.0
        %908 = vmatprep.subr.mxu0 0.0
        %909 = vmatpush1.msra.mxu0 0.0
        %910 = vmatprep.subr.mxu0 0.0
        %911 = vmatpush1.msra.mxu0 0.0
        %912 = vmatprep.subr.mxu0 0.0
        %913 = vmatpush1.msra.mxu0 %v645
        %914 = vmatprep.subr.mxu0 0.0
        %915 = vmatpush1.msra.mxu0 %v644
        %916 = vmatprep.subr.mxu0 0.0
        %917 = vmatpush1.msra.mxu0 %v643
        %918 = vmatprep.subr.mxu0 0.0
        %919 = vmatpush1.msra.mxu0 %v642
        %920 = vmatprep.subr.mxu0 0.0
        %921 = vmatpush2.msra.mxu0 0.0
        %922 = vmatprep.subr.mxu0 0.0
        %923 = vmatpush2.msra.mxu0 0.0
        %924 = vmatprep.subr.mxu0 0.0
        %925 = vmatpush2.msra.mxu0 0.0
        %926 = vmatprep.subr.mxu0 0.0
        %927 = vmatpush2.msra.mxu0 0.0
        %928 = vmatprep.subr.mxu0 0.0
        %929 = vmatpush2.msra.mxu0 0.0
        %930 = vmatprep.subr.mxu0 0.0
        %931 = vmatpush2.msra.mxu0 0.0
        %932 = vmatprep.subr.mxu0 0.0
        %933 = vmatpush2.msra.mxu0 0.0
        %934 = vmatprep.subr.mxu0 0.0
        %935 = vmatpush2.msra.mxu0 0.0
        %936 = vmatprep.subr.mxu0 0.0
        %937 = vmatpush2.msra.mxu0 0.0
        %938 = vmatprep.subr.mxu0 0.0
        %939 = vmatpush2.msra.mxu0 0.0
        %940 = vmatprep.subr.mxu0 0.0
        %941 = vmatpush2.msra.mxu0 0.0
        %942 = vmatprep.subr.mxu0 0.0
        %943 = vmatpush2.msra.mxu0 0.0
        %944 = vmatprep.subr.mxu0 0.0
        %945 = vmatpush2.msra.mxu0 0.0
        %946 = vmatprep.subr.mxu0 0.0
        %947 = vmatpush2.msra.mxu0 0.0
        %948 = vmatprep.subr.mxu0 0.0
        %949 = vmatpush2.msra.mxu0 0.0
        %950 = vmatprep.subr.mxu0 0.0
        %951 = vmatpush2.msra.mxu0 0.0
        %952 = vmatprep.mubr.f32.mxu0 0.0
        %953 = vmatmul.mubr.f32.gmra.mxu0 %v676
        %v954 = vpop.f32.mrf.mxu0
        %v955 = vadd.f32 %v669, %v954
        %v956 = vpop.f32.mrf.mxu0
        %957 = vdwg.mxu0
        %v958 = vld [vmem:[%s4] sm:$0xff]
        %v959 = vld [vmem:[%s4 + $0x8] sm:$0xff]
        %v960 = vld [vmem:[%s4 + $0x10] sm:$0xff]
        %v961 = vld [vmem:[%s4 + $0x18] sm:$0xff]
        %v962 = vld [vmem:[%s4 + $0x20] sm:$0xff]
        %v963 = vld [vmem:[%s4 + $0x28] sm:$0xff]
        %v964 = vld [vmem:[%s4 + $0x30] sm:$0xff]
        %v965 = vld [vmem:[%s4 + $0x38] sm:$0xff]
        %v966 = vld [vmem:[%s4 + $0x40] sm:$0xff]
        %v967 = vld [vmem:[%s4 + $0x48] sm:$0xff]
        %v968 = vld [vmem:[%s4 + $0x50] sm:$0xff]
        %v969 = vld [vmem:[%s4 + $0x58] sm:$0xff]
        %v970 = vld [vmem:[%s4 + $0x60] sm:$0xff]
        %v971 = vld [vmem:[%s4 + $0x68] sm:$0xff]
        %v972 = vld [vmem:[%s4 + $0x70] sm:$0xff]
        %v973 = vld [vmem:[%s4 + $0x78] sm:$0xff]
        %v974 = vld [vmem:[%s5] sm:$0x1]
        %v975 = vld [vmem:[%s5 + $0x1] sm:$0x1]
        %v976 = vld [vmem:[%s5 + $0x2] sm:$0x1]
        %v977 = vld [vmem:[%s5 + $0x3] sm:$0x1]
        %v982 = vlaneseq
        %v983 = vshrl.u32 %v982, 7
        %v984 = vsub.s32 0, %v983
        %v985 = vrot.slane %v974, %v984
        %v986 = vlaneseq
        %v987 = vshrl.u32 %v986, 7
        %v988 = vsub.s32 0, %v987
        %v989 = vrot.slane %v975, %v988
        %v990 = vlaneseq
        %v991 = vshrl.u32 %v990, 7
        %v992 = vsub.s32 0, %v991
        %v993 = vrot.slane %v976, %v992
        %v994 = vlaneseq
        %v995 = vshrl.u32 %v994, 7
        %v996 = vsub.s32 0, %v995
        %v997 = vrot.slane %v977, %v996
        %1002 = vmatprep.subr.mxu0 0.0
        %1003 = vmatpush1.msra.mxu0 0.0
        %1004 = vmatprep.subr.mxu0 0.0
        %1005 = vmatpush1.msra.mxu0 0.0
        %1006 = vmatprep.subr.mxu0 0.0
        %1007 = vmatpush1.msra.mxu0 0.0
        %1008 = vmatprep.subr.mxu0 0.0
        %1009 = vmatpush1.msra.mxu0 0.0
        %1010 = vmatprep.subr.mxu0 0.0
        %1011 = vmatpush1.msra.mxu0 0.0
        %1012 = vmatprep.subr.mxu0 0.0
        %1013 = vmatpush1.msra.mxu0 0.0
        %1014 = vmatprep.subr.mxu0 0.0
        %1015 = vmatpush1.msra.mxu0 0.0
        %1016 = vmatprep.subr.mxu0 0.0
        %1017 = vmatpush1.msra.mxu0 0.0
        %1018 = vmatprep.subr.mxu0 0.0
        %1019 = vmatpush1.msra.mxu0 0.0
        %1020 = vmatprep.subr.mxu0 0.0
        %1021 = vmatpush1.msra.mxu0 0.0
        %1022 = vmatprep.subr.mxu0 0.0
        %1023 = vmatpush1.msra.mxu0 0.0
        %1024 = vmatprep.subr.mxu0 0.0
        %1025 = vmatpush1.msra.mxu0 0.0
        %1026 = vmatprep.subr.mxu0 0.0
        %1027 = vmatpush1.msra.mxu0 %v961
        %1028 = vmatprep.subr.mxu0 0.0
        %1029 = vmatpush1.msra.mxu0 %v960
        %1030 = vmatprep.subr.mxu0 0.0
        %1031 = vmatpush1.msra.mxu0 %v959
        %1032 = vmatprep.subr.mxu0 0.0
        %1033 = vmatpush1.msra.mxu0 %v958
        %1034 = vmatprep.subr.mxu0 0.0
        %1035 = vmatpush2.msra.mxu0 0.0
        %1036 = vmatprep.subr.mxu0 0.0
        %1037 = vmatpush2.msra.mxu0 0.0
        %1038 = vmatprep.subr.mxu0 0.0
        %1039 = vmatpush2.msra.mxu0 0.0
        %1040 = vmatprep.subr.mxu0 0.0
        %1041 = vmatpush2.msra.mxu0 0.0
        %1042 = vmatprep.subr.mxu0 0.0
        %1043 = vmatpush2.msra.mxu0 0.0
        %1044 = vmatprep.subr.mxu0 0.0
        %1045 = vmatpush2.msra.mxu0 0.0
        %1046 = vmatprep.subr.mxu0 0.0
        %1047 = vmatpush2.msra.mxu0 0.0
        %1048 = vmatprep.subr.mxu0 0.0
        %1049 = vmatpush2.msra.mxu0 0.0
        %1050 = vmatprep.subr.mxu0 0.0
        %1051 = vmatpush2.msra.mxu0 0.0
        %1052 = vmatprep.subr.mxu0 0.0
        %1053 = vmatpush2.msra.mxu0 0.0
        %1054 = vmatprep.subr.mxu0 0.0
        %1055 = vmatpush2.msra.mxu0 0.0
        %1056 = vmatprep.subr.mxu0 0.0
        %1057 = vmatpush2.msra.mxu0 0.0
        %1058 = vmatprep.subr.mxu0 0.0
        %1059 = vmatpush2.msra.mxu0 0.0
        %1060 = vmatprep.subr.mxu0 0.0
        %1061 = vmatpush2.msra.mxu0 0.0
        %1062 = vmatprep.subr.mxu0 0.0
        %1063 = vmatpush2.msra.mxu0 0.0
        %1064 = vmatprep.subr.mxu0 0.0
        %1065 = vmatpush2.msra.mxu0 0.0
        %1066 = vmatprep.mubr.f32.mxu0 0.0
        %1067 = vmatmul.mubr.f32.gmra.mxu0 %v676
        %v1068 = vpop.f32.mrf.mxu0
        %v1069 = vadd.f32 %v985, %v1068
        %v1070 = vpop.f32.mrf.mxu0
        %1071 = vdwg.mxu0
        %1072 = vmatprep.subr.mxu0 0.0
        %1073 = vmatpush1.msra.mxu0 0.0
        %1074 = vmatprep.subr.mxu0 0.0
        %1075 = vmatpush1.msra.mxu0 0.0
        %1076 = vmatprep.subr.mxu0 0.0
        %1077 = vmatpush1.msra.mxu0 0.0
        %1078 = vmatprep.subr.mxu0 0.0
        %1079 = vmatpush1.msra.mxu0 0.0
        %1080 = vmatprep.subr.mxu0 0.0
        %1081 = vmatpush1.msra.mxu0 0.0
        %1082 = vmatprep.subr.mxu0 0.0
        %1083 = vmatpush1.msra.mxu0 0.0
        %1084 = vmatprep.subr.mxu0 0.0
        %1085 = vmatpush1.msra.mxu0 0.0
        %1086 = vmatprep.subr.mxu0 0.0
        %1087 = vmatpush1.msra.mxu0 0.0
        %1088 = vmatprep.subr.mxu0 0.0
        %1089 = vmatpush1.msra.mxu0 0.0
        %1090 = vmatprep.subr.mxu0 0.0
        %1091 = vmatpush1.msra.mxu0 0.0
        %1092 = vmatprep.subr.mxu0 0.0
        %1093 = vmatpush1.msra.mxu0 0.0
        %1094 = vmatprep.subr.mxu0 0.0
        %1095 = vmatpush1.msra.mxu0 0.0
        %1096 = vmatprep.subr.mxu0 0.0
        %1097 = vmatpush1.msra.mxu0 %v965
        %1098 = vmatprep.subr.mxu0 0.0
        %1099 = vmatpush1.msra.mxu0 %v964
        %1100 = vmatprep.subr.mxu0 0.0
        %1101 = vmatpush1.msra.mxu0 %v963
        %1102 = vmatprep.subr.mxu0 0.0
        %1103 = vmatpush1.msra.mxu0 %v962
        %1104 = vmatprep.subr.mxu0 0.0
        %1105 = vmatpush2.msra.mxu0 0.0
        %1106 = vmatprep.subr.mxu0 0.0
        %1107 = vmatpush2.msra.mxu0 0.0
        %1108 = vmatprep.subr.mxu0 0.0
        %1109 = vmatpush2.msra.mxu0 0.0
        %1110 = vmatprep.subr.mxu0 0.0
        %1111 = vmatpush2.msra.mxu0 0.0
        %1112 = vmatprep.subr.mxu0 0.0
        %1113 = vmatpush2.msra.mxu0 0.0
        %1114 = vmatprep.subr.mxu0 0.0
        %1115 = vmatpush2.msra.mxu0 0.0
        %1116 = vmatprep.subr.mxu0 0.0
        %1117 = vmatpush2.msra.mxu0 0.0
        %1118 = vmatprep.subr.mxu0 0.0
        %1119 = vmatpush2.msra.mxu0 0.0
        %1120 = vmatprep.subr.mxu0 0.0
        %1121 = vmatpush2.msra.mxu0 0.0
        %1122 = vmatprep.subr.mxu0 0.0
        %1123 = vmatpush2.msra.mxu0 0.0
        %1124 = vmatprep.subr.mxu0 0.0
        %1125 = vmatpush2.msra.mxu0 0.0
        %1126 = vmatprep.subr.mxu0 0.0
        %1127 = vmatpush2.msra.mxu0 0.0
        %1128 = vmatprep.subr.mxu0 0.0
        %1129 = vmatpush2.msra.mxu0 0.0
        %1130 = vmatprep.subr.mxu0 0.0
        %1131 = vmatpush2.msra.mxu0 0.0
        %1132 = vmatprep.subr.mxu0 0.0
        %1133 = vmatpush2.msra.mxu0 0.0
        %1134 = vmatprep.subr.mxu0 0.0
        %1135 = vmatpush2.msra.mxu0 0.0
        %1136 = vmatprep.mubr.f32.mxu0 0.0
        %1137 = vmatmul.mubr.f32.gmra.mxu0 %v676
        %v1138 = vpop.f32.mrf.mxu0
        %v1139 = vadd.f32 %v989, %v1138
        %v1140 = vpop.f32.mrf.mxu0
        %1141 = vdwg.mxu0
        %1142 = vmatprep.subr.mxu0 0.0
        %1143 = vmatpush1.msra.mxu0 0.0
        %1144 = vmatprep.subr.mxu0 0.0
        %1145 = vmatpush1.msra.mxu0 0.0
        %1146 = vmatprep.subr.mxu0 0.0
        %1147 = vmatpush1.msra.mxu0 0.0
        %1148 = vmatprep.subr.mxu0 0.0
        %1149 = vmatpush1.msra.mxu0 0.0
        %1150 = vmatprep.subr.mxu0 0.0
        %1151 = vmatpush1.msra.mxu0 0.0
        %1152 = vmatprep.subr.mxu0 0.0
        %1153 = vmatpush1.msra.mxu0 0.0
        %1154 = vmatprep.subr.mxu0 0.0
        %1155 = vmatpush1.msra.mxu0 0.0
        %1156 = vmatprep.subr.mxu0 0.0
        %1157 = vmatpush1.msra.mxu0 0.0
        %1158 = vmatprep.subr.mxu0 0.0
        %1159 = vmatpush1.msra.mxu0 0.0
        %1160 = vmatprep.subr.mxu0 0.0
        %1161 = vmatpush1.msra.mxu0 0.0
        %1162 = vmatprep.subr.mxu0 0.0
        %1163 = vmatpush1.msra.mxu0 0.0
        %1164 = vmatprep.subr.mxu0 0.0
        %1165 = vmatpush1.msra.mxu0 0.0
        %1166 = vmatprep.subr.mxu0 0.0
        %1167 = vmatpush1.msra.mxu0 %v969
        %1168 = vmatprep.subr.mxu0 0.0
        %1169 = vmatpush1.msra.mxu0 %v968
        %1170 = vmatprep.subr.mxu0 0.0
        %1171 = vmatpush1.msra.mxu0 %v967
        %1172 = vmatprep.subr.mxu0 0.0
        %1173 = vmatpush1.msra.mxu0 %v966
        %1174 = vmatprep.subr.mxu0 0.0
        %1175 = vmatpush2.msra.mxu0 0.0
        %1176 = vmatprep.subr.mxu0 0.0
        %1177 = vmatpush2.msra.mxu0 0.0
        %1178 = vmatprep.subr.mxu0 0.0
        %1179 = vmatpush2.msra.mxu0 0.0
        %1180 = vmatprep.subr.mxu0 0.0
        %1181 = vmatpush2.msra.mxu0 0.0
        %1182 = vmatprep.subr.mxu0 0.0
        %1183 = vmatpush2.msra.mxu0 0.0
        %1184 = vmatprep.subr.mxu0 0.0
        %1185 = vmatpush2.msra.mxu0 0.0
        %1186 = vmatprep.subr.mxu0 0.0
        %1187 = vmatpush2.msra.mxu0 0.0
        %1188 = vmatprep.subr.mxu0 0.0
        %1189 = vmatpush2.msra.mxu0 0.0
        %1190 = vmatprep.subr.mxu0 0.0
        %1191 = vmatpush2.msra.mxu0 0.0
        %1192 = vmatprep.subr.mxu0 0.0
        %1193 = vmatpush2.msra.mxu0 0.0
        %1194 = vmatprep.subr.mxu0 0.0
        %1195 = vmatpush2.msra.mxu0 0.0
        %1196 = vmatprep.subr.mxu0 0.0
        %1197 = vmatpush2.msra.mxu0 0.0
        %1198 = vmatprep.subr.mxu0 0.0
        %1199 = vmatpush2.msra.mxu0 0.0
        %1200 = vmatprep.subr.mxu0 0.0
        %1201 = vmatpush2.msra.mxu0 0.0
        %1202 = vmatprep.subr.mxu0 0.0
        %1203 = vmatpush2.msra.mxu0 0.0
        %1204 = vmatprep.subr.mxu0 0.0
        %1205 = vmatpush2.msra.mxu0 0.0
        %1206 = vmatprep.mubr.f32.mxu0 0.0
        %1207 = vmatmul.mubr.f32.gmra.mxu0 %v676
        %v1208 = vpop.f32.mrf.mxu0
        %v1209 = vadd.f32 %v993, %v1208
        %v1210 = vpop.f32.mrf.mxu0
        %1211 = vdwg.mxu0
        %1212 = vmatprep.subr.mxu0 0.0
        %1213 = vmatpush1.msra.mxu0 0.0
        %1214 = vmatprep.subr.mxu0 0.0
        %1215 = vmatpush1.msra.mxu0 0.0
        %1216 = vmatprep.subr.mxu0 0.0
        %1217 = vmatpush1.msra.mxu0 0.0
        %1218 = vmatprep.subr.mxu0 0.0
        %1219 = vmatpush1.msra.mxu0 0.0
        %1220 = vmatprep.subr.mxu0 0.0
        %1221 = vmatpush1.msra.mxu0 0.0
        %1222 = vmatprep.subr.mxu0 0.0
        %1223 = vmatpush1.msra.mxu0 0.0
        %1224 = vmatprep.subr.mxu0 0.0
        %1225 = vmatpush1.msra.mxu0 0.0
        %1226 = vmatprep.subr.mxu0 0.0
        %1227 = vmatpush1.msra.mxu0 0.0
        %1228 = vmatprep.subr.mxu0 0.0
        %1229 = vmatpush1.msra.mxu0 0.0
        %1230 = vmatprep.subr.mxu0 0.0
        %1231 = vmatpush1.msra.mxu0 0.0
        %1232 = vmatprep.subr.mxu0 0.0
        %1233 = vmatpush1.msra.mxu0 0.0
        %1234 = vmatprep.subr.mxu0 0.0
        %1235 = vmatpush1.msra.mxu0 0.0
        %1236 = vmatprep.subr.mxu0 0.0
        %1237 = vmatpush1.msra.mxu0 %v973
        %1238 = vmatprep.subr.mxu0 0.0
        %1239 = vmatpush1.msra.mxu0 %v972
        %1240 = vmatprep.subr.mxu0 0.0
        %1241 = vmatpush1.msra.mxu0 %v971
        %1242 = vmatprep.subr.mxu0 0.0
        %1243 = vmatpush1.msra.mxu0 %v970
        %1244 = vmatprep.subr.mxu0 0.0
        %1245 = vmatpush2.msra.mxu0 0.0
        %1246 = vmatprep.subr.mxu0 0.0
        %1247 = vmatpush2.msra.mxu0 0.0
        %1248 = vmatprep.subr.mxu0 0.0
        %1249 = vmatpush2.msra.mxu0 0.0
        %1250 = vmatprep.subr.mxu0 0.0
        %1251 = vmatpush2.msra.mxu0 0.0
        %1252 = vmatprep.subr.mxu0 0.0
        %1253 = vmatpush2.msra.mxu0 0.0
        %1254 = vmatprep.subr.mxu0 0.0
        %1255 = vmatpush2.msra.mxu0 0.0
        %1256 = vmatprep.subr.mxu0 0.0
        %1257 = vmatpush2.msra.mxu0 0.0
        %1258 = vmatprep.subr.mxu0 0.0
        %1259 = vmatpush2.msra.mxu0 0.0
        %1260 = vmatprep.subr.mxu0 0.0
        %1261 = vmatpush2.msra.mxu0 0.0
        %1262 = vmatprep.subr.mxu0 0.0
        %1263 = vmatpush2.msra.mxu0 0.0
        %1264 = vmatprep.subr.mxu0 0.0
        %1265 = vmatpush2.msra.mxu0 0.0
        %1266 = vmatprep.subr.mxu0 0.0
        %1267 = vmatpush2.msra.mxu0 0.0
        %1268 = vmatprep.subr.mxu0 0.0
        %1269 = vmatpush2.msra.mxu0 0.0
        %1270 = vmatprep.subr.mxu0 0.0
        %1271 = vmatpush2.msra.mxu0 0.0
        %1272 = vmatprep.subr.mxu0 0.0
        %1273 = vmatpush2.msra.mxu0 0.0
        %1274 = vmatprep.subr.mxu0 0.0
        %1275 = vmatpush2.msra.mxu0 0.0
        %1276 = vmatprep.mubr.f32.mxu0 0.0
        %1277 = vmatmul.mubr.f32.gmra.mxu0 %v676
        %v1278 = vpop.f32.mrf.mxu0
        %v1279 = vadd.f32 %v997, %v1278
        %v1280 = vpop.f32.mrf.mxu0
        %1281 = vdwg.mxu0
        %v1282 = vld [vmem:[%s6] sm:$0xff]
        %v1283 = vld [vmem:[%s6 + $0x8] sm:$0xff]
        %v1284 = vld [vmem:[%s6 + $0x10] sm:$0xff]
        %v1285 = vld [vmem:[%s6 + $0x18] sm:$0xff]
        %v1286 = vld [vmem:[%s6 + $0x20] sm:$0xff]
        %v1287 = vld [vmem:[%s6 + $0x28] sm:$0xff]
        %v1288 = vld [vmem:[%s6 + $0x30] sm:$0xff]
        %v1289 = vld [vmem:[%s6 + $0x38] sm:$0xff]
        %v1290 = vld [vmem:[%s6 + $0x40] sm:$0xff]
        %v1291 = vld [vmem:[%s6 + $0x48] sm:$0xff]
        %v1292 = vld [vmem:[%s6 + $0x50] sm:$0xff]
        %v1293 = vld [vmem:[%s6 + $0x58] sm:$0xff]
        %v1294 = vld [vmem:[%s6 + $0x60] sm:$0xff]
        %v1295 = vld [vmem:[%s6 + $0x68] sm:$0xff]
        %v1296 = vld [vmem:[%s6 + $0x70] sm:$0xff]
        %v1297 = vld [vmem:[%s6 + $0x78] sm:$0xff]
        %v1298 = vld [vmem:[%s7] sm:$0x1]
        %v1299 = vld [vmem:[%s7 + $0x1] sm:$0x1]
        %v1300 = vld [vmem:[%s7 + $0x2] sm:$0x1]
        %v1301 = vld [vmem:[%s7 + $0x3] sm:$0x1]
        %v1306 = vlaneseq
        %v1307 = vshrl.u32 %v1306, 7
        %v1308 = vsub.s32 0, %v1307
        %v1309 = vrot.slane %v1298, %v1308
        %v1310 = vlaneseq
        %v1311 = vshrl.u32 %v1310, 7
        %v1312 = vsub.s32 0, %v1311
        %v1313 = vrot.slane %v1299, %v1312
        %v1314 = vlaneseq
        %v1315 = vshrl.u32 %v1314, 7
        %v1316 = vsub.s32 0, %v1315
        %v1317 = vrot.slane %v1300, %v1316
        %v1318 = vlaneseq
        %v1319 = vshrl.u32 %v1318, 7
        %v1320 = vsub.s32 0, %v1319
        %v1321 = vrot.slane %v1301, %v1320
        %1326 = vmatprep.subr.mxu0 0.0
        %1327 = vmatpush1.msra.mxu0 0.0
        %1328 = vmatprep.subr.mxu0 0.0
        %1329 = vmatpush1.msra.mxu0 0.0
        %1330 = vmatprep.subr.mxu0 0.0
        %1331 = vmatpush1.msra.mxu0 0.0
        %1332 = vmatprep.subr.mxu0 0.0
        %1333 = vmatpush1.msra.mxu0 0.0
        %1334 = vmatprep.subr.mxu0 0.0
        %1335 = vmatpush1.msra.mxu0 0.0
        %1336 = vmatprep.subr.mxu0 0.0
        %1337 = vmatpush1.msra.mxu0 0.0
        %1338 = vmatprep.subr.mxu0 0.0
        %1339 = vmatpush1.msra.mxu0 0.0
        %1340 = vmatprep.subr.mxu0 0.0
        %1341 = vmatpush1.msra.mxu0 0.0
        %1342 = vmatprep.subr.mxu0 0.0
        %1343 = vmatpush1.msra.mxu0 0.0
        %1344 = vmatprep.subr.mxu0 0.0
        %1345 = vmatpush1.msra.mxu0 0.0
        %1346 = vmatprep.subr.mxu0 0.0
        %1347 = vmatpush1.msra.mxu0 0.0
        %1348 = vmatprep.subr.mxu0 0.0
        %1349 = vmatpush1.msra.mxu0 0.0
        %1350 = vmatprep.subr.mxu0 0.0
        %1351 = vmatpush1.msra.mxu0 %v1285
        %1352 = vmatprep.subr.mxu0 0.0
        %1353 = vmatpush1.msra.mxu0 %v1284
        %1354 = vmatprep.subr.mxu0 0.0
        %1355 = vmatpush1.msra.mxu0 %v1283
        %1356 = vmatprep.subr.mxu0 0.0
        %1357 = vmatpush1.msra.mxu0 %v1282
        %1358 = vmatprep.subr.mxu0 0.0
        %1359 = vmatpush2.msra.mxu0 0.0
        %1360 = vmatprep.subr.mxu0 0.0
        %1361 = vmatpush2.msra.mxu0 0.0
        %1362 = vmatprep.subr.mxu0 0.0
        %1363 = vmatpush2.msra.mxu0 0.0
        %1364 = vmatprep.subr.mxu0 0.0
        %1365 = vmatpush2.msra.mxu0 0.0
        %1366 = vmatprep.subr.mxu0 0.0
        %1367 = vmatpush2.msra.mxu0 0.0
        %1368 = vmatprep.subr.mxu0 0.0
        %1369 = vmatpush2.msra.mxu0 0.0
        %1370 = vmatprep.subr.mxu0 0.0
        %1371 = vmatpush2.msra.mxu0 0.0
        %1372 = vmatprep.subr.mxu0 0.0
        %1373 = vmatpush2.msra.mxu0 0.0
        %1374 = vmatprep.subr.mxu0 0.0
        %1375 = vmatpush2.msra.mxu0 0.0
        %1376 = vmatprep.subr.mxu0 0.0
        %1377 = vmatpush2.msra.mxu0 0.0
        %1378 = vmatprep.subr.mxu0 0.0
        %1379 = vmatpush2.msra.mxu0 0.0
        %1380 = vmatprep.subr.mxu0 0.0
        %1381 = vmatpush2.msra.mxu0 0.0
        %1382 = vmatprep.subr.mxu0 0.0
        %1383 = vmatpush2.msra.mxu0 0.0
        %1384 = vmatprep.subr.mxu0 0.0
        %1385 = vmatpush2.msra.mxu0 0.0
        %1386 = vmatprep.subr.mxu0 0.0
        %1387 = vmatpush2.msra.mxu0 0.0
        %1388 = vmatprep.subr.mxu0 0.0
        %1389 = vmatpush2.msra.mxu0 0.0
        %1390 = vmatprep.mubr.f32.mxu0 0.0
        %1391 = vmatmul.mubr.f32.gmra.mxu0 %v676
        %v1392 = vpop.f32.mrf.mxu0
        %v1393 = vadd.f32 %v1309, %v1392
        %v1394 = vpop.f32.mrf.mxu0
        %1395 = vdwg.mxu0
        %1396 = vmatprep.subr.mxu0 0.0
        %1397 = vmatpush1.msra.mxu0 0.0
        %1398 = vmatprep.subr.mxu0 0.0
        %1399 = vmatpush1.msra.mxu0 0.0
        %1400 = vmatprep.subr.mxu0 0.0
        %1401 = vmatpush1.msra.mxu0 0.0
        %1402 = vmatprep.subr.mxu0 0.0
        %1403 = vmatpush1.msra.mxu0 0.0
        %1404 = vmatprep.subr.mxu0 0.0
        %1405 = vmatpush1.msra.mxu0 0.0
        %1406 = vmatprep.subr.mxu0 0.0
        %1407 = vmatpush1.msra.mxu0 0.0
        %1408 = vmatprep.subr.mxu0 0.0
        %1409 = vmatpush1.msra.mxu0 0.0
        %1410 = vmatprep.subr.mxu0 0.0
        %1411 = vmatpush1.msra.mxu0 0.0
        %1412 = vmatprep.subr.mxu0 0.0
        %1413 = vmatpush1.msra.mxu0 0.0
        %1414 = vmatprep.subr.mxu0 0.0
        %1415 = vmatpush1.msra.mxu0 0.0
        %1416 = vmatprep.subr.mxu0 0.0
        %1417 = vmatpush1.msra.mxu0 0.0
        %1418 = vmatprep.subr.mxu0 0.0
        %1419 = vmatpush1.msra.mxu0 0.0
        %1420 = vmatprep.subr.mxu0 0.0
        %1421 = vmatpush1.msra.mxu0 %v1289
        %1422 = vmatprep.subr.mxu0 0.0
        %1423 = vmatpush1.msra.mxu0 %v1288
        %1424 = vmatprep.subr.mxu0 0.0
        %1425 = vmatpush1.msra.mxu0 %v1287
        %1426 = vmatprep.subr.mxu0 0.0
        %1427 = vmatpush1.msra.mxu0 %v1286
        %1428 = vmatprep.subr.mxu0 0.0
        %1429 = vmatpush2.msra.mxu0 0.0
        %1430 = vmatprep.subr.mxu0 0.0
        %1431 = vmatpush2.msra.mxu0 0.0
        %1432 = vmatprep.subr.mxu0 0.0
        %1433 = vmatpush2.msra.mxu0 0.0
        %1434 = vmatprep.subr.mxu0 0.0
        %1435 = vmatpush2.msra.mxu0 0.0
        %1436 = vmatprep.subr.mxu0 0.0
        %1437 = vmatpush2.msra.mxu0 0.0
        %1438 = vmatprep.subr.mxu0 0.0
        %1439 = vmatpush2.msra.mxu0 0.0
        %1440 = vmatprep.subr.mxu0 0.0
        %1441 = vmatpush2.msra.mxu0 0.0
        %1442 = vmatprep.subr.mxu0 0.0
        %1443 = vmatpush2.msra.mxu0 0.0
        %1444 = vmatprep.subr.mxu0 0.0
        %1445 = vmatpush2.msra.mxu0 0.0
        %1446 = vmatprep.subr.mxu0 0.0
        %1447 = vmatpush2.msra.mxu0 0.0
        %1448 = vmatprep.subr.mxu0 0.0
        %1449 = vmatpush2.msra.mxu0 0.0
        %1450 = vmatprep.subr.mxu0 0.0
        %1451 = vmatpush2.msra.mxu0 0.0
        %1452 = vmatprep.subr.mxu0 0.0
        %1453 = vmatpush2.msra.mxu0 0.0
        %1454 = vmatprep.subr.mxu0 0.0
        %1455 = vmatpush2.msra.mxu0 0.0
        %1456 = vmatprep.subr.mxu0 0.0
        %1457 = vmatpush2.msra.mxu0 0.0
        %1458 = vmatprep.subr.mxu0 0.0
        %1459 = vmatpush2.msra.mxu0 0.0
        %1460 = vmatprep.mubr.f32.mxu0 0.0
        %1461 = vmatmul.mubr.f32.gmra.mxu0 %v676
        %v1462 = vpop.f32.mrf.mxu0
        %v1463 = vadd.f32 %v1313, %v1462
        %v1464 = vpop.f32.mrf.mxu0
        %1465 = vdwg.mxu0
        %1466 = vmatprep.subr.mxu0 0.0
        %1467 = vmatpush1.msra.mxu0 0.0
        %1468 = vmatprep.subr.mxu0 0.0
        %1469 = vmatpush1.msra.mxu0 0.0
        %1470 = vmatprep.subr.mxu0 0.0
        %1471 = vmatpush1.msra.mxu0 0.0
        %1472 = vmatprep.subr.mxu0 0.0
        %1473 = vmatpush1.msra.mxu0 0.0
        %1474 = vmatprep.subr.mxu0 0.0
        %1475 = vmatpush1.msra.mxu0 0.0
        %1476 = vmatprep.subr.mxu0 0.0
        %1477 = vmatpush1.msra.mxu0 0.0
        %1478 = vmatprep.subr.mxu0 0.0
        %1479 = vmatpush1.msra.mxu0 0.0
        %1480 = vmatprep.subr.mxu0 0.0
        %1481 = vmatpush1.msra.mxu0 0.0
        %1482 = vmatprep.subr.mxu0 0.0
        %1483 = vmatpush1.msra.mxu0 0.0
        %1484 = vmatprep.subr.mxu0 0.0
        %1485 = vmatpush1.msra.mxu0 0.0
        %1486 = vmatprep.subr.mxu0 0.0
        %1487 = vmatpush1.msra.mxu0 0.0
        %1488 = vmatprep.subr.mxu0 0.0
        %1489 = vmatpush1.msra.mxu0 0.0
        %1490 = vmatprep.subr.mxu0 0.0
        %1491 = vmatpush1.msra.mxu0 %v1293
        %1492 = vmatprep.subr.mxu0 0.0
        %1493 = vmatpush1.msra.mxu0 %v1292
        %1494 = vmatprep.subr.mxu0 0.0
        %1495 = vmatpush1.msra.mxu0 %v1291
        %1496 = vmatprep.subr.mxu0 0.0
        %1497 = vmatpush1.msra.mxu0 %v1290
        %1498 = vmatprep.subr.mxu0 0.0
        %1499 = vmatpush2.msra.mxu0 0.0
        %1500 = vmatprep.subr.mxu0 0.0
        %1501 = vmatpush2.msra.mxu0 0.0
        %1502 = vmatprep.subr.mxu0 0.0
        %1503 = vmatpush2.msra.mxu0 0.0
        %1504 = vmatprep.subr.mxu0 0.0
        %1505 = vmatpush2.msra.mxu0 0.0
        %1506 = vmatprep.subr.mxu0 0.0
        %1507 = vmatpush2.msra.mxu0 0.0
        %1508 = vmatprep.subr.mxu0 0.0
        %1509 = vmatpush2.msra.mxu0 0.0
        %1510 = vmatprep.subr.mxu0 0.0
        %1511 = vmatpush2.msra.mxu0 0.0
        %1512 = vmatprep.subr.mxu0 0.0
        %1513 = vmatpush2.msra.mxu0 0.0
        %1514 = vmatprep.subr.mxu0 0.0
        %1515 = vmatpush2.msra.mxu0 0.0
        %1516 = vmatprep.subr.mxu0 0.0
        %1517 = vmatpush2.msra.mxu0 0.0
        %1518 = vmatprep.subr.mxu0 0.0
        %1519 = vmatpush2.msra.mxu0 0.0
        %1520 = vmatprep.subr.mxu0 0.0
        %1521 = vmatpush2.msra.mxu0 0.0
        %1522 = vmatprep.subr.mxu0 0.0
        %1523 = vmatpush2.msra.mxu0 0.0
        %1524 = vmatprep.subr.mxu0 0.0
        %1525 = vmatpush2.msra.mxu0 0.0
        %1526 = vmatprep.subr.mxu0 0.0
        %1527 = vmatpush2.msra.mxu0 0.0
        %1528 = vmatprep.subr.mxu0 0.0
        %1529 = vmatpush2.msra.mxu0 0.0
        %1530 = vmatprep.mubr.f32.mxu0 0.0
        %1531 = vmatmul.mubr.f32.gmra.mxu0 %v676
        %v1532 = vpop.f32.mrf.mxu0
        %v1533 = vadd.f32 %v1317, %v1532
        %v1534 = vpop.f32.mrf.mxu0
        %1535 = vdwg.mxu0
        %1536 = vmatprep.subr.mxu0 0.0
        %1537 = vmatpush1.msra.mxu0 0.0
        %1538 = vmatprep.subr.mxu0 0.0
        %1539 = vmatpush1.msra.mxu0 0.0
        %1540 = vmatprep.subr.mxu0 0.0
        %1541 = vmatpush1.msra.mxu0 0.0
        %1542 = vmatprep.subr.mxu0 0.0
        %1543 = vmatpush1.msra.mxu0 0.0
        %1544 = vmatprep.subr.mxu0 0.0
        %1545 = vmatpush1.msra.mxu0 0.0
        %1546 = vmatprep.subr.mxu0 0.0
        %1547 = vmatpush1.msra.mxu0 0.0
        %1548 = vmatprep.subr.mxu0 0.0
        %1549 = vmatpush1.msra.mxu0 0.0
        %1550 = vmatprep.subr.mxu0 0.0
        %1551 = vmatpush1.msra.mxu0 0.0
        %1552 = vmatprep.subr.mxu0 0.0
        %1553 = vmatpush1.msra.mxu0 0.0
        %1554 = vmatprep.subr.mxu0 0.0
        %1555 = vmatpush1.msra.mxu0 0.0
        %1556 = vmatprep.subr.mxu0 0.0
        %1557 = vmatpush1.msra.mxu0 0.0
        %1558 = vmatprep.subr.mxu0 0.0
        %1559 = vmatpush1.msra.mxu0 0.0
        %1560 = vmatprep.subr.mxu0 0.0
        %1561 = vmatpush1.msra.mxu0 %v1297
        %1562 = vmatprep.subr.mxu0 0.0
        %1563 = vmatpush1.msra.mxu0 %v1296
        %1564 = vmatprep.subr.mxu0 0.0
        %1565 = vmatpush1.msra.mxu0 %v1295
        %1566 = vmatprep.subr.mxu0 0.0
        %1567 = vmatpush1.msra.mxu0 %v1294
        %1568 = vmatprep.subr.mxu0 0.0
        %1569 = vmatpush2.msra.mxu0 0.0
        %1570 = vmatprep.subr.mxu0 0.0
        %1571 = vmatpush2.msra.mxu0 0.0
        %1572 = vmatprep.subr.mxu0 0.0
        %1573 = vmatpush2.msra.mxu0 0.0
        %1574 = vmatprep.subr.mxu0 0.0
        %1575 = vmatpush2.msra.mxu0 0.0
        %1576 = vmatprep.subr.mxu0 0.0
        %1577 = vmatpush2.msra.mxu0 0.0
        %1578 = vmatprep.subr.mxu0 0.0
        %1579 = vmatpush2.msra.mxu0 0.0
        %1580 = vmatprep.subr.mxu0 0.0
        %1581 = vmatpush2.msra.mxu0 0.0
        %1582 = vmatprep.subr.mxu0 0.0
        %1583 = vmatpush2.msra.mxu0 0.0
        %1584 = vmatprep.subr.mxu0 0.0
        %1585 = vmatpush2.msra.mxu0 0.0
        %1586 = vmatprep.subr.mxu0 0.0
        %1587 = vmatpush2.msra.mxu0 0.0
        %1588 = vmatprep.subr.mxu0 0.0
        %1589 = vmatpush2.msra.mxu0 0.0
        %1590 = vmatprep.subr.mxu0 0.0
        %1591 = vmatpush2.msra.mxu0 0.0
        %1592 = vmatprep.subr.mxu0 0.0
        %1593 = vmatpush2.msra.mxu0 0.0
        %1594 = vmatprep.subr.mxu0 0.0
        %1595 = vmatpush2.msra.mxu0 0.0
        %1596 = vmatprep.subr.mxu0 0.0
        %1597 = vmatpush2.msra.mxu0 0.0
        %1598 = vmatprep.subr.mxu0 0.0
        %1599 = vmatpush2.msra.mxu0 0.0
        %1600 = vmatprep.mubr.f32.mxu0 0.0
        %1601 = vmatmul.mubr.f32.gmra.mxu0 %v676
        %v1602 = vpop.f32.mrf.mxu0
        %v1603 = vadd.f32 %v1321, %v1602
        %v1604 = vpop.f32.mrf.mxu0
        %1605 = vdwg.mxu0
        %vm1606 = vcmask 64512
        %v1608 = vsel %vm1606, %v745, 0
        %v1611 = vsel %vm1606, %v1069, 0
        %1613 = vmatprep.subr.mxu0 0.0
        %1614 = vmatpush1.xpose.msra.mxu0 0.0
        %1615 = vmatprep.subr.mxu0 0.0
        %1616 = vmatpush1.xpose.msra.mxu0 0.0
        %1617 = vmatprep.subr.mxu0 0.0
        %1618 = vmatpush1.xpose.msra.mxu0 0.0
        %1619 = vmatprep.subr.mxu0 0.0
        %1620 = vmatpush1.xpose.msra.mxu0 0.0
        %1621 = vmatprep.subr.mxu0 0.0
        %1622 = vmatpush1.xpose.msra.mxu0 0.0
        %1623 = vmatprep.subr.mxu0 0.0
        %1624 = vmatpush1.xpose.msra.mxu0 0.0
        %1625 = vmatprep.subr.mxu0 0.0
        %1626 = vmatpush1.xpose.msra.mxu0 0.0
        %1627 = vmatprep.subr.mxu0 0.0
        %1628 = vmatpush1.xpose.msra.mxu0 0.0
        %1629 = vmatprep.subr.mxu0 0.0
        %1630 = vmatpush1.xpose.msra.mxu0 0.0
        %1631 = vmatprep.subr.mxu0 0.0
        %1632 = vmatpush1.xpose.msra.mxu0 0.0
        %1633 = vmatprep.subr.mxu0 0.0
        %1634 = vmatpush1.xpose.msra.mxu0 0.0
        %1635 = vmatprep.subr.mxu0 0.0
        %1636 = vmatpush1.xpose.msra.mxu0 0.0
        %1637 = vmatprep.subr.mxu0 0.0
        %1638 = vmatpush1.xpose.msra.mxu0 0.0
        %1639 = vmatprep.subr.mxu0 0.0
        %1640 = vmatpush1.xpose.msra.mxu0 0.0
        %1641 = vmatprep.subr.mxu0 0.0
        %1642 = vmatpush1.xpose.msra.mxu0 0.0
        %1643 = vmatprep.subr.mxu0 0.0
        %1644 = vmatpush1.xpose.msra.mxu0 %v1611
        %1645 = vmatprep.subr.mxu0 0.0
        %1646 = vmatpush2.xpose.msra.mxu0 0.0
        %1647 = vmatprep.subr.mxu0 0.0
        %1648 = vmatpush2.xpose.msra.mxu0 0.0
        %1649 = vmatprep.subr.mxu0 0.0
        %1650 = vmatpush2.xpose.msra.mxu0 0.0
        %1651 = vmatprep.subr.mxu0 0.0
        %1652 = vmatpush2.xpose.msra.mxu0 0.0
        %1653 = vmatprep.subr.mxu0 0.0
        %1654 = vmatpush2.xpose.msra.mxu0 0.0
        %1655 = vmatprep.subr.mxu0 0.0
        %1656 = vmatpush2.xpose.msra.mxu0 0.0
        %1657 = vmatprep.subr.mxu0 0.0
        %1658 = vmatpush2.xpose.msra.mxu0 0.0
        %1659 = vmatprep.subr.mxu0 0.0
        %1660 = vmatpush2.xpose.msra.mxu0 0.0
        %1661 = vmatprep.subr.mxu0 0.0
        %1662 = vmatpush2.xpose.msra.mxu0 0.0
        %1663 = vmatprep.subr.mxu0 0.0
        %1664 = vmatpush2.xpose.msra.mxu0 0.0
        %1665 = vmatprep.subr.mxu0 0.0
        %1666 = vmatpush2.xpose.msra.mxu0 0.0
        %1667 = vmatprep.subr.mxu0 0.0
        %1668 = vmatpush2.xpose.msra.mxu0 0.0
        %1669 = vmatprep.subr.mxu0 0.0
        %1670 = vmatpush2.xpose.msra.mxu0 0.0
        %1671 = vmatprep.subr.mxu0 0.0
        %1672 = vmatpush2.xpose.msra.mxu0 0.0
        %1673 = vmatprep.subr.mxu0 0.0
        %1674 = vmatpush2.xpose.msra.mxu0 0.0
        %1675 = vmatprep.subr.mxu0 0.0
        %1676 = vmatpush2.xpose.msra.mxu0 0.0
        %1677 = vmatprep.mubr.f32.mxu0 0.0
        %1678 = vmatmul.mubr.f32.gmra.mxu0 %v1608
        %v1679 = vpop.f32.mrf.mxu0
        %v1680 = vadd.f32 0.0, %v1679
        %v1681 = vpop.f32.mrf.mxu0
        %1682 = vdwg.mxu0
        %v1684 = vsel %vm1606, %v815, 0
        %v1687 = vsel %vm1606, %v1139, 0
        %1689 = vmatprep.subr.mxu0 0.0
        %1690 = vmatpush1.xpose.msra.mxu0 0.0
        %1691 = vmatprep.subr.mxu0 0.0
        %1692 = vmatpush1.xpose.msra.mxu0 0.0
        %1693 = vmatprep.subr.mxu0 0.0
        %1694 = vmatpush1.xpose.msra.mxu0 0.0
        %1695 = vmatprep.subr.mxu0 0.0
        %1696 = vmatpush1.xpose.msra.mxu0 0.0
        %1697 = vmatprep.subr.mxu0 0.0
        %1698 = vmatpush1.xpose.msra.mxu0 0.0
        %1699 = vmatprep.subr.mxu0 0.0
        %1700 = vmatpush1.xpose.msra.mxu0 0.0
        %1701 = vmatprep.subr.mxu0 0.0
        %1702 = vmatpush1.xpose.msra.mxu0 0.0
        %1703 = vmatprep.subr.mxu0 0.0
        %1704 = vmatpush1.xpose.msra.mxu0 0.0
        %1705 = vmatprep.subr.mxu0 0.0
        %1706 = vmatpush1.xpose.msra.mxu0 0.0
        %1707 = vmatprep.subr.mxu0 0.0
        %1708 = vmatpush1.xpose.msra.mxu0 0.0
        %1709 = vmatprep.subr.mxu0 0.0
        %1710 = vmatpush1.xpose.msra.mxu0 0.0
        %1711 = vmatprep.subr.mxu0 0.0
        %1712 = vmatpush1.xpose.msra.mxu0 0.0
        %1713 = vmatprep.subr.mxu0 0.0
        %1714 = vmatpush1.xpose.msra.mxu0 0.0
        %1715 = vmatprep.subr.mxu0 0.0
        %1716 = vmatpush1.xpose.msra.mxu0 0.0
        %1717 = vmatprep.subr.mxu0 0.0
        %1718 = vmatpush1.xpose.msra.mxu0 0.0
        %1719 = vmatprep.subr.mxu0 0.0
        %1720 = vmatpush1.xpose.msra.mxu0 %v1687
        %1721 = vmatprep.subr.mxu0 0.0
        %1722 = vmatpush2.xpose.msra.mxu0 0.0
        %1723 = vmatprep.subr.mxu0 0.0
        %1724 = vmatpush2.xpose.msra.mxu0 0.0
        %1725 = vmatprep.subr.mxu0 0.0
        %1726 = vmatpush2.xpose.msra.mxu0 0.0
        %1727 = vmatprep.subr.mxu0 0.0
        %1728 = vmatpush2.xpose.msra.mxu0 0.0
        %1729 = vmatprep.subr.mxu0 0.0
        %1730 = vmatpush2.xpose.msra.mxu0 0.0
        %1731 = vmatprep.subr.mxu0 0.0
        %1732 = vmatpush2.xpose.msra.mxu0 0.0
        %1733 = vmatprep.subr.mxu0 0.0
        %1734 = vmatpush2.xpose.msra.mxu0 0.0
        %1735 = vmatprep.subr.mxu0 0.0
        %1736 = vmatpush2.xpose.msra.mxu0 0.0
        %1737 = vmatprep.subr.mxu0 0.0
        %1738 = vmatpush2.xpose.msra.mxu0 0.0
        %1739 = vmatprep.subr.mxu0 0.0
        %1740 = vmatpush2.xpose.msra.mxu0 0.0
        %1741 = vmatprep.subr.mxu0 0.0
        %1742 = vmatpush2.xpose.msra.mxu0 0.0
        %1743 = vmatprep.subr.mxu0 0.0
        %1744 = vmatpush2.xpose.msra.mxu0 0.0
        %1745 = vmatprep.subr.mxu0 0.0
        %1746 = vmatpush2.xpose.msra.mxu0 0.0
        %1747 = vmatprep.subr.mxu0 0.0
        %1748 = vmatpush2.xpose.msra.mxu0 0.0
        %1749 = vmatprep.subr.mxu0 0.0
        %1750 = vmatpush2.xpose.msra.mxu0 0.0
        %1751 = vmatprep.subr.mxu0 0.0
        %1752 = vmatpush2.xpose.msra.mxu0 0.0
        %1753 = vmatprep.mubr.f32.mxu0 0.0
        %1754 = vmatmul.mubr.f32.gmra.mxu0 %v1684
        %v1755 = vpop.f32.mrf.mxu0
        %v1756 = vadd.f32 0.0, %v1755
        %v1757 = vpop.f32.mrf.mxu0
        %1758 = vdwg.mxu0
        %v1760 = vsel %vm1606, %v885, 0
        %v1763 = vsel %vm1606, %v1209, 0
        %1765 = vmatprep.subr.mxu0 0.0
        %1766 = vmatpush1.xpose.msra.mxu0 0.0
        %1767 = vmatprep.subr.mxu0 0.0
        %1768 = vmatpush1.xpose.msra.mxu0 0.0
        %1769 = vmatprep.subr.mxu0 0.0
        %1770 = vmatpush1.xpose.msra.mxu0 0.0
        %1771 = vmatprep.subr.mxu0 0.0
        %1772 = vmatpush1.xpose.msra.mxu0 0.0
        %1773 = vmatprep.subr.mxu0 0.0
        %1774 = vmatpush1.xpose.msra.mxu0 0.0
        %1775 = vmatprep.subr.mxu0 0.0
        %1776 = vmatpush1.xpose.msra.mxu0 0.0
        %1777 = vmatprep.subr.mxu0 0.0
        %1778 = vmatpush1.xpose.msra.mxu0 0.0
        %1779 = vmatprep.subr.mxu0 0.0
        %1780 = vmatpush1.xpose.msra.mxu0 0.0
        %1781 = vmatprep.subr.mxu0 0.0
        %1782 = vmatpush1.xpose.msra.mxu0 0.0
        %1783 = vmatprep.subr.mxu0 0.0
        %1784 = vmatpush1.xpose.msra.mxu0 0.0
        %1785 = vmatprep.subr.mxu0 0.0
        %1786 = vmatpush1.xpose.msra.mxu0 0.0
        %1787 = vmatprep.subr.mxu0 0.0
        %1788 = vmatpush1.xpose.msra.mxu0 0.0
        %1789 = vmatprep.subr.mxu0 0.0
        %1790 = vmatpush1.xpose.msra.mxu0 0.0
        %1791 = vmatprep.subr.mxu0 0.0
        %1792 = vmatpush1.xpose.msra.mxu0 0.0
        %1793 = vmatprep.subr.mxu0 0.0
        %1794 = vmatpush1.xpose.msra.mxu0 0.0
        %1795 = vmatprep.subr.mxu0 0.0
        %1796 = vmatpush1.xpose.msra.mxu0 %v1763
        %1797 = vmatprep.subr.mxu0 0.0
        %1798 = vmatpush2.xpose.msra.mxu0 0.0
        %1799 = vmatprep.subr.mxu0 0.0
        %1800 = vmatpush2.xpose.msra.mxu0 0.0
        %1801 = vmatprep.subr.mxu0 0.0
        %1802 = vmatpush2.xpose.msra.mxu0 0.0
        %1803 = vmatprep.subr.mxu0 0.0
        %1804 = vmatpush2.xpose.msra.mxu0 0.0
        %1805 = vmatprep.subr.mxu0 0.0
        %1806 = vmatpush2.xpose.msra.mxu0 0.0
        %1807 = vmatprep.subr.mxu0 0.0
        %1808 = vmatpush2.xpose.msra.mxu0 0.0
        %1809 = vmatprep.subr.mxu0 0.0
        %1810 = vmatpush2.xpose.msra.mxu0 0.0
        %1811 = vmatprep.subr.mxu0 0.0
        %1812 = vmatpush2.xpose.msra.mxu0 0.0
        %1813 = vmatprep.subr.mxu0 0.0
        %1814 = vmatpush2.xpose.msra.mxu0 0.0
        %1815 = vmatprep.subr.mxu0 0.0
        %1816 = vmatpush2.xpose.msra.mxu0 0.0
        %1817 = vmatprep.subr.mxu0 0.0
        %1818 = vmatpush2.xpose.msra.mxu0 0.0
        %1819 = vmatprep.subr.mxu0 0.0
        %1820 = vmatpush2.xpose.msra.mxu0 0.0
        %1821 = vmatprep.subr.mxu0 0.0
        %1822 = vmatpush2.xpose.msra.mxu0 0.0
        %1823 = vmatprep.subr.mxu0 0.0
        %1824 = vmatpush2.xpose.msra.mxu0 0.0
        %1825 = vmatprep.subr.mxu0 0.0
        %1826 = vmatpush2.xpose.msra.mxu0 0.0
        %1827 = vmatprep.subr.mxu0 0.0
        %1828 = vmatpush2.xpose.msra.mxu0 0.0
        %1829 = vmatprep.mubr.f32.mxu0 0.0
        %1830 = vmatmul.mubr.f32.gmra.mxu0 %v1760
        %v1831 = vpop.f32.mrf.mxu0
        %v1832 = vadd.f32 0.0, %v1831
        %v1833 = vpop.f32.mrf.mxu0
        %1834 = vdwg.mxu0
        %v1836 = vsel %vm1606, %v955, 0
        %v1839 = vsel %vm1606, %v1279, 0
        %1841 = vmatprep.subr.mxu0 0.0
        %1842 = vmatpush1.xpose.msra.mxu0 0.0
        %1843 = vmatprep.subr.mxu0 0.0
        %1844 = vmatpush1.xpose.msra.mxu0 0.0
        %1845 = vmatprep.subr.mxu0 0.0
        %1846 = vmatpush1.xpose.msra.mxu0 0.0
        %1847 = vmatprep.subr.mxu0 0.0
        %1848 = vmatpush1.xpose.msra.mxu0 0.0
        %1849 = vmatprep.subr.mxu0 0.0
        %1850 = vmatpush1.xpose.msra.mxu0 0.0
        %1851 = vmatprep.subr.mxu0 0.0
        %1852 = vmatpush1.xpose.msra.mxu0 0.0
        %1853 = vmatprep.subr.mxu0 0.0
        %1854 = vmatpush1.xpose.msra.mxu0 0.0
        %1855 = vmatprep.subr.mxu0 0.0
        %1856 = vmatpush1.xpose.msra.mxu0 0.0
        %1857 = vmatprep.subr.mxu0 0.0
        %1858 = vmatpush1.xpose.msra.mxu0 0.0
        %1859 = vmatprep.subr.mxu0 0.0
        %1860 = vmatpush1.xpose.msra.mxu0 0.0
        %1861 = vmatprep.subr.mxu0 0.0
        %1862 = vmatpush1.xpose.msra.mxu0 0.0
        %1863 = vmatprep.subr.mxu0 0.0
        %1864 = vmatpush1.xpose.msra.mxu0 0.0
        %1865 = vmatprep.subr.mxu0 0.0
        %1866 = vmatpush1.xpose.msra.mxu0 0.0
        %1867 = vmatprep.subr.mxu0 0.0
        %1868 = vmatpush1.xpose.msra.mxu0 0.0
        %1869 = vmatprep.subr.mxu0 0.0
        %1870 = vmatpush1.xpose.msra.mxu0 0.0
        %1871 = vmatprep.subr.mxu0 0.0
        %1872 = vmatpush1.xpose.msra.mxu0 %v1839
        %1873 = vmatprep.subr.mxu0 0.0
        %1874 = vmatpush2.xpose.msra.mxu0 0.0
        %1875 = vmatprep.subr.mxu0 0.0
        %1876 = vmatpush2.xpose.msra.mxu0 0.0
        %1877 = vmatprep.subr.mxu0 0.0
        %1878 = vmatpush2.xpose.msra.mxu0 0.0
        %1879 = vmatprep.subr.mxu0 0.0
        %1880 = vmatpush2.xpose.msra.mxu0 0.0
        %1881 = vmatprep.subr.mxu0 0.0
        %1882 = vmatpush2.xpose.msra.mxu0 0.0
        %1883 = vmatprep.subr.mxu0 0.0
        %1884 = vmatpush2.xpose.msra.mxu0 0.0
        %1885 = vmatprep.subr.mxu0 0.0
        %1886 = vmatpush2.xpose.msra.mxu0 0.0
        %1887 = vmatprep.subr.mxu0 0.0
        %1888 = vmatpush2.xpose.msra.mxu0 0.0
        %1889 = vmatprep.subr.mxu0 0.0
        %1890 = vmatpush2.xpose.msra.mxu0 0.0
        %1891 = vmatprep.subr.mxu0 0.0
        %1892 = vmatpush2.xpose.msra.mxu0 0.0
        %1893 = vmatprep.subr.mxu0 0.0
        %1894 = vmatpush2.xpose.msra.mxu0 0.0
        %1895 = vmatprep.subr.mxu0 0.0
        %1896 = vmatpush2.xpose.msra.mxu0 0.0
        %1897 = vmatprep.subr.mxu0 0.0
        %1898 = vmatpush2.xpose.msra.mxu0 0.0
        %1899 = vmatprep.subr.mxu0 0.0
        %1900 = vmatpush2.xpose.msra.mxu0 0.0
        %1901 = vmatprep.subr.mxu0 0.0
        %1902 = vmatpush2.xpose.msra.mxu0 0.0
        %1903 = vmatprep.subr.mxu0 0.0
        %1904 = vmatpush2.xpose.msra.mxu0 0.0
        %1905 = vmatprep.mubr.f32.mxu0 0.0
        %1906 = vmatmul.mubr.f32.gmra.mxu0 %v1836
        %v1907 = vpop.f32.mrf.mxu0
        %v1908 = vadd.f32 0.0, %v1907
        %v1909 = vpop.f32.mrf.mxu0
        %1910 = vdwg.mxu0
        %v1911 = vmul.f32 %v1680, 0.35355338
        %v1912 = vmul.f32 %v1756, 0.35355338
        %v1913 = vmul.f32 %v1832, 0.35355338
        %v1914 = vmul.f32 %v1908, 0.35355338
        %v1915 = vsel %vm629, 1, 0
        %vm1916 = vcmp.eq.s32.totalorder %v1915, 1
        %v1917 = vsel %vm1916, -1e+09, %v1911
        %v1918 = vsel %vm1916, -1e+09, %v1912
        %v1919 = vsel %vm1916, -1e+09, %v1913
        %v1920 = vsel %vm1916, -1e+09, %v1914
        %v1921 = vsel %vm1606, %v1917, -inf
        %1922 = vmax.xlane.f32.xlu0 %v1921
        %v1923 = vpop.xlane.xlu0 %1922
        %v1924 = vsel %vm1606, %v1918, -inf
        %1925 = vmax.xlane.f32.xlu0 %v1924
        %v1926 = vpop.xlane.xlu0 %1925
        %v1927 = vsel %vm1606, %v1919, -inf
        %1928 = vmax.xlane.f32.xlu0 %v1927
        %v1929 = vpop.xlane.xlu0 %1928
        %v1930 = vsel %vm1606, %v1920, -inf
        %1931 = vmax.xlane.f32.xlu0 %v1930
        %v1932 = vpop.xlane.xlu0 %1931
        %v1933 = vsub.f32 %v1917, %v1923
        %v1934 = vsub.f32 %v1918, %v1926
        %v1935 = vsub.f32 %v1919, %v1929
        %v1936 = vsub.f32 %v1920, %v1932
        %v1937 = vmul.f32 %v1933, 1.442695
        %v1938 = vpow.pop %v1937
        %v1939 = vmul.f32 %v1934, 1.442695
        %v1940 = vpow.pop %v1939
        %v1941 = vmul.f32 %v1935, 1.442695
        %v1942 = vpow.pop %v1941
        %v1943 = vmul.f32 %v1936, 1.442695
        %v1944 = vpow.pop %v1943
        %v1945 = vsel %vm1606, %v1938, 0.0
        %1946 = vadd.xlane.f32.xlu0 %v1945
        %v1947 = vpop.xlane.xlu0 %1946
        %v1948 = vsel %vm1606, %v1940, 0.0
        %1949 = vadd.xlane.f32.xlu0 %v1948
        %v1950 = vpop.xlane.xlu0 %1949
        %v1951 = vsel %vm1606, %v1942, 0.0
        %1952 = vadd.xlane.f32.xlu0 %v1951
        %v1953 = vpop.xlane.xlu0 %1952
        %v1954 = vsel %vm1606, %v1944, 0.0
        %1955 = vadd.xlane.f32.xlu0 %v1954
        %v1956 = vpop.xlane.xlu0 %1955
        %v1957 = vrcp.pop %v1947
        %v1958 = vrcp.pop %v1950
        %v1959 = vrcp.pop %v1953
        %v1960 = vrcp.pop %v1956
        %v1961 = vmul.f32 %v1947, %v1957
        %v1962 = vmul.f32 %v1950, %v1958
        %v1963 = vmul.f32 %v1953, %v1959
        %v1964 = vmul.f32 %v1956, %v1960
        %v1965 = vsub.f32 2.0, %v1961
        %v1966 = vsub.f32 2.0, %v1962
        %v1967 = vsub.f32 2.0, %v1963
        %v1968 = vsub.f32 2.0, %v1964
        %v1969 = vmul.f32 %v1957, %v1965
        %v1970 = vmul.f32 %v1958, %v1966
        %v1971 = vmul.f32 %v1959, %v1967
        %v1972 = vmul.f32 %v1960, %v1968
        %v1973 = vmul.f32 %v1938, %v1969
        %v1974 = vmul.f32 %v1940, %v1970
        %v1975 = vmul.f32 %v1942, %v1971
        %v1976 = vmul.f32 %v1944, %v1972
        %1977 = vst.msk [vmem:[%s617] sm:$0xff] %vm1606, %v1973
        %1978 = vst.msk [vmem:[%s617 + $0x8] sm:$0xff] %vm1606, %v1974
        %1979 = vst.msk [vmem:[%s617 + $0x10] sm:$0xff] %vm1606, %v1975
        %1980 = vst.msk [vmem:[%s617 + $0x18] sm:$0xff] %vm1606, %v1976
        %v1982 = vsel %vm1606, %v1973, 0
        %1984 = vmatprep.subr.mxu0 0.0
        %1985 = vmatpush1.msra.mxu0 0.0
        %1986 = vmatprep.subr.mxu0 0.0
        %1987 = vmatpush1.msra.mxu0 0.0
        %1988 = vmatprep.subr.mxu0 0.0
        %1989 = vmatpush1.msra.mxu0 0.0
        %1990 = vmatprep.subr.mxu0 0.0
        %1991 = vmatpush1.msra.mxu0 0.0
        %1992 = vmatprep.subr.mxu0 0.0
        %1993 = vmatpush1.msra.mxu0 0.0
        %1994 = vmatprep.subr.mxu0 0.0
        %1995 = vmatpush1.msra.mxu0 0.0
        %1996 = vmatprep.subr.mxu0 0.0
        %1997 = vmatpush1.msra.mxu0 0.0
        %1998 = vmatprep.subr.mxu0 0.0
        %1999 = vmatpush1.msra.mxu0 0.0
        %2000 = vmatprep.subr.mxu0 0.0
        %2001 = vmatpush1.msra.mxu0 0.0
        %2002 = vmatprep.subr.mxu0 0.0
        %2003 = vmatpush1.msra.mxu0 0.0
        %2004 = vmatprep.subr.mxu0 0.0
        %2005 = vmatpush1.msra.mxu0 0.0
        %2006 = vmatprep.subr.mxu0 0.0
        %2007 = vmatpush1.msra.mxu0 0.0
        %2008 = vmatprep.subr.mxu0 0.0
        %2009 = vmatpush1.msra.mxu0 0.0
        %2010 = vmatprep.subr.mxu0 0.0
        %2011 = vmatpush1.msra.mxu0 0.0
        %2012 = vmatprep.subr.mxu0 0.0
        %2013 = vmatpush1.msra.mxu0 0.0
        %2014 = vmatprep.subr.mxu0 0.0
        %2015 = vmatpush1.msra.mxu0 %v1393
        %2016 = vmatprep.subr.mxu0 0.0
        %2017 = vmatpush2.msra.mxu0 0.0
        %2018 = vmatprep.subr.mxu0 0.0
        %2019 = vmatpush2.msra.mxu0 0.0
        %2020 = vmatprep.subr.mxu0 0.0
        %2021 = vmatpush2.msra.mxu0 0.0
        %2022 = vmatprep.subr.mxu0 0.0
        %2023 = vmatpush2.msra.mxu0 0.0
        %2024 = vmatprep.subr.mxu0 0.0
        %2025 = vmatpush2.msra.mxu0 0.0
        %2026 = vmatprep.subr.mxu0 0.0
        %2027 = vmatpush2.msra.mxu0 0.0
        %2028 = vmatprep.subr.mxu0 0.0
        %2029 = vmatpush2.msra.mxu0 0.0
        %2030 = vmatprep.subr.mxu0 0.0
        %2031 = vmatpush2.msra.mxu0 0.0
        %2032 = vmatprep.subr.mxu0 0.0
        %2033 = vmatpush2.msra.mxu0 0.0
        %2034 = vmatprep.subr.mxu0 0.0
        %2035 = vmatpush2.msra.mxu0 0.0
        %2036 = vmatprep.subr.mxu0 0.0
        %2037 = vmatpush2.msra.mxu0 0.0
        %2038 = vmatprep.subr.mxu0 0.0
        %2039 = vmatpush2.msra.mxu0 0.0
        %2040 = vmatprep.subr.mxu0 0.0
        %2041 = vmatpush2.msra.mxu0 0.0
        %2042 = vmatprep.subr.mxu0 0.0
        %2043 = vmatpush2.msra.mxu0 0.0
        %2044 = vmatprep.subr.mxu0 0.0
        %2045 = vmatpush2.msra.mxu0 0.0
        %2046 = vmatprep.subr.mxu0 0.0
        %2047 = vmatpush2.msra.mxu0 0.0
        %2048 = vmatprep.mubr.f32.mxu0 0.0
        %2049 = vmatmul.mubr.f32.gmra.mxu0 %v1982
        %v2050 = vpop.f32.mrf.mxu0
        %v2051 = vadd.f32 0.0, %v2050
        %v2052 = vpop.f32.mrf.mxu0
        %2053 = vdwg.mxu0
        %v2055 = vsel %vm1606, %v1974, 0
        %2057 = vmatprep.subr.mxu0 0.0
        %2058 = vmatpush1.msra.mxu0 0.0
        %2059 = vmatprep.subr.mxu0 0.0
        %2060 = vmatpush1.msra.mxu0 0.0
        %2061 = vmatprep.subr.mxu0 0.0
        %2062 = vmatpush1.msra.mxu0 0.0
        %2063 = vmatprep.subr.mxu0 0.0
        %2064 = vmatpush1.msra.mxu0 0.0
        %2065 = vmatprep.subr.mxu0 0.0
        %2066 = vmatpush1.msra.mxu0 0.0
        %2067 = vmatprep.subr.mxu0 0.0
        %2068 = vmatpush1.msra.mxu0 0.0
        %2069 = vmatprep.subr.mxu0 0.0
        %2070 = vmatpush1.msra.mxu0 0.0
        %2071 = vmatprep.subr.mxu0 0.0
        %2072 = vmatpush1.msra.mxu0 0.0
        %2073 = vmatprep.subr.mxu0 0.0
        %2074 = vmatpush1.msra.mxu0 0.0
        %2075 = vmatprep.subr.mxu0 0.0
        %2076 = vmatpush1.msra.mxu0 0.0
        %2077 = vmatprep.subr.mxu0 0.0
        %2078 = vmatpush1.msra.mxu0 0.0
        %2079 = vmatprep.subr.mxu0 0.0
        %2080 = vmatpush1.msra.mxu0 0.0
        %2081 = vmatprep.subr.mxu0 0.0
        %2082 = vmatpush1.msra.mxu0 0.0
        %2083 = vmatprep.subr.mxu0 0.0
        %2084 = vmatpush1.msra.mxu0 0.0
        %2085 = vmatprep.subr.mxu0 0.0
        %2086 = vmatpush1.msra.mxu0 0.0
        %2087 = vmatprep.subr.mxu0 0.0
        %2088 = vmatpush1.msra.mxu0 %v1463
        %2089 = vmatprep.subr.mxu0 0.0
        %2090 = vmatpush2.msra.mxu0 0.0
        %2091 = vmatprep.subr.mxu0 0.0
        %2092 = vmatpush2.msra.mxu0 0.0
        %2093 = vmatprep.subr.mxu0 0.0
        %2094 = vmatpush2.msra.mxu0 0.0
        %2095 = vmatprep.subr.mxu0 0.0
        %2096 = vmatpush2.msra.mxu0 0.0
        %2097 = vmatprep.subr.mxu0 0.0
        %2098 = vmatpush2.msra.mxu0 0.0
        %2099 = vmatprep.subr.mxu0 0.0
        %2100 = vmatpush2.msra.mxu0 0.0
        %2101 = vmatprep.subr.mxu0 0.0
        %2102 = vmatpush2.msra.mxu0 0.0
        %2103 = vmatprep.subr.mxu0 0.0
        %2104 = vmatpush2.msra.mxu0 0.0
        %2105 = vmatprep.subr.mxu0 0.0
        %2106 = vmatpush2.msra.mxu0 0.0
        %2107 = vmatprep.subr.mxu0 0.0
        %2108 = vmatpush2.msra.mxu0 0.0
        %2109 = vmatprep.subr.mxu0 0.0
        %2110 = vmatpush2.msra.mxu0 0.0
        %2111 = vmatprep.subr.mxu0 0.0
        %2112 = vmatpush2.msra.mxu0 0.0
        %2113 = vmatprep.subr.mxu0 0.0
        %2114 = vmatpush2.msra.mxu0 0.0
        %2115 = vmatprep.subr.mxu0 0.0
        %2116 = vmatpush2.msra.mxu0 0.0
        %2117 = vmatprep.subr.mxu0 0.0
        %2118 = vmatpush2.msra.mxu0 0.0
        %2119 = vmatprep.subr.mxu0 0.0
        %2120 = vmatpush2.msra.mxu0 0.0
        %2121 = vmatprep.mubr.f32.mxu0 0.0
        %2122 = vmatmul.mubr.f32.gmra.mxu0 %v2055
        %v2123 = vpop.f32.mrf.mxu0
        %v2124 = vadd.f32 0.0, %v2123
        %v2125 = vpop.f32.mrf.mxu0
        %2126 = vdwg.mxu0
        %v2128 = vsel %vm1606, %v1975, 0
        %2130 = vmatprep.subr.mxu0 0.0
        %2131 = vmatpush1.msra.mxu0 0.0
        %2132 = vmatprep.subr.mxu0 0.0
        %2133 = vmatpush1.msra.mxu0 0.0
        %2134 = vmatprep.subr.mxu0 0.0
        %2135 = vmatpush1.msra.mxu0 0.0
        %2136 = vmatprep.subr.mxu0 0.0
        %2137 = vmatpush1.msra.mxu0 0.0
        %2138 = vmatprep.subr.mxu0 0.0
        %2139 = vmatpush1.msra.mxu0 0.0
        %2140 = vmatprep.subr.mxu0 0.0
        %2141 = vmatpush1.msra.mxu0 0.0
        %2142 = vmatprep.subr.mxu0 0.0
        %2143 = vmatpush1.msra.mxu0 0.0
        %2144 = vmatprep.subr.mxu0 0.0
        %2145 = vmatpush1.msra.mxu0 0.0
        %2146 = vmatprep.subr.mxu0 0.0
        %2147 = vmatpush1.msra.mxu0 0.0
        %2148 = vmatprep.subr.mxu0 0.0
        %2149 = vmatpush1.msra.mxu0 0.0
        %2150 = vmatprep.subr.mxu0 0.0
        %2151 = vmatpush1.msra.mxu0 0.0
        %2152 = vmatprep.subr.mxu0 0.0
        %2153 = vmatpush1.msra.mxu0 0.0
        %2154 = vmatprep.subr.mxu0 0.0
        %2155 = vmatpush1.msra.mxu0 0.0
        %2156 = vmatprep.subr.mxu0 0.0
        %2157 = vmatpush1.msra.mxu0 0.0
        %2158 = vmatprep.subr.mxu0 0.0
        %2159 = vmatpush1.msra.mxu0 0.0
        %2160 = vmatprep.subr.mxu0 0.0
        %2161 = vmatpush1.msra.mxu0 %v1533
        %2162 = vmatprep.subr.mxu0 0.0
        %2163 = vmatpush2.msra.mxu0 0.0
        %2164 = vmatprep.subr.mxu0 0.0
        %2165 = vmatpush2.msra.mxu0 0.0
        %2166 = vmatprep.subr.mxu0 0.0
        %2167 = vmatpush2.msra.mxu0 0.0
        %2168 = vmatprep.subr.mxu0 0.0
        %2169 = vmatpush2.msra.mxu0 0.0
        %2170 = vmatprep.subr.mxu0 0.0
        %2171 = vmatpush2.msra.mxu0 0.0
        %2172 = vmatprep.subr.mxu0 0.0
        %2173 = vmatpush2.msra.mxu0 0.0
        %2174 = vmatprep.subr.mxu0 0.0
        %2175 = vmatpush2.msra.mxu0 0.0
        %2176 = vmatprep.subr.mxu0 0.0
        %2177 = vmatpush2.msra.mxu0 0.0
        %2178 = vmatprep.subr.mxu0 0.0
        %2179 = vmatpush2.msra.mxu0 0.0
        %2180 = vmatprep.subr.mxu0 0.0
        %2181 = vmatpush2.msra.mxu0 0.0
        %2182 = vmatprep.subr.mxu0 0.0
        %2183 = vmatpush2.msra.mxu0 0.0
        %2184 = vmatprep.subr.mxu0 0.0
        %2185 = vmatpush2.msra.mxu0 0.0
        %2186 = vmatprep.subr.mxu0 0.0
        %2187 = vmatpush2.msra.mxu0 0.0
        %2188 = vmatprep.subr.mxu0 0.0
        %2189 = vmatpush2.msra.mxu0 0.0
        %2190 = vmatprep.subr.mxu0 0.0
        %2191 = vmatpush2.msra.mxu0 0.0
        %2192 = vmatprep.subr.mxu0 0.0
        %2193 = vmatpush2.msra.mxu0 0.0
        %2194 = vmatprep.mubr.f32.mxu0 0.0
        %2195 = vmatmul.mubr.f32.gmra.mxu0 %v2128
        %v2196 = vpop.f32.mrf.mxu0
        %v2197 = vadd.f32 0.0, %v2196
        %v2198 = vpop.f32.mrf.mxu0
        %2199 = vdwg.mxu0
        %v2201 = vsel %vm1606, %v1976, 0
        %2203 = vmatprep.subr.mxu0 0.0
        %2204 = vmatpush1.msra.mxu0 0.0
        %2205 = vmatprep.subr.mxu0 0.0
        %2206 = vmatpush1.msra.mxu0 0.0
        %2207 = vmatprep.subr.mxu0 0.0
        %2208 = vmatpush1.msra.mxu0 0.0
        %2209 = vmatprep.subr.mxu0 0.0
        %2210 = vmatpush1.msra.mxu0 0.0
        %2211 = vmatprep.subr.mxu0 0.0
        %2212 = vmatpush1.msra.mxu0 0.0
        %2213 = vmatprep.subr.mxu0 0.0
        %2214 = vmatpush1.msra.mxu0 0.0
        %2215 = vmatprep.subr.mxu0 0.0
        %2216 = vmatpush1.msra.mxu0 0.0
        %2217 = vmatprep.subr.mxu0 0.0
        %2218 = vmatpush1.msra.mxu0 0.0
        %2219 = vmatprep.subr.mxu0 0.0
        %2220 = vmatpush1.msra.mxu0 0.0
        %2221 = vmatprep.subr.mxu0 0.0
        %2222 = vmatpush1.msra.mxu0 0.0
        %2223 = vmatprep.subr.mxu0 0.0
        %2224 = vmatpush1.msra.mxu0 0.0
        %2225 = vmatprep.subr.mxu0 0.0
        %2226 = vmatpush1.msra.mxu0 0.0
        %2227 = vmatprep.subr.mxu0 0.0
        %2228 = vmatpush1.msra.mxu0 0.0
        %2229 = vmatprep.subr.mxu0 0.0
        %2230 = vmatpush1.msra.mxu0 0.0
        %2231 = vmatprep.subr.mxu0 0.0
        %2232 = vmatpush1.msra.mxu0 0.0
        %2233 = vmatprep.subr.mxu0 0.0
        %2234 = vmatpush1.msra.mxu0 %v1603
        %2235 = vmatprep.subr.mxu0 0.0
        %2236 = vmatpush2.msra.mxu0 0.0
        %2237 = vmatprep.subr.mxu0 0.0
        %2238 = vmatpush2.msra.mxu0 0.0
        %2239 = vmatprep.subr.mxu0 0.0
        %2240 = vmatpush2.msra.mxu0 0.0
        %2241 = vmatprep.subr.mxu0 0.0
        %2242 = vmatpush2.msra.mxu0 0.0
        %2243 = vmatprep.subr.mxu0 0.0
        %2244 = vmatpush2.msra.mxu0 0.0
        %2245 = vmatprep.subr.mxu0 0.0
        %2246 = vmatpush2.msra.mxu0 0.0
        %2247 = vmatprep.subr.mxu0 0.0
        %2248 = vmatpush2.msra.mxu0 0.0
        %2249 = vmatprep.subr.mxu0 0.0
        %2250 = vmatpush2.msra.mxu0 0.0
        %2251 = vmatprep.subr.mxu0 0.0
        %2252 = vmatpush2.msra.mxu0 0.0
        %2253 = vmatprep.subr.mxu0 0.0
        %2254 = vmatpush2.msra.mxu0 0.0
        %2255 = vmatprep.subr.mxu0 0.0
        %2256 = vmatpush2.msra.mxu0 0.0
        %2257 = vmatprep.subr.mxu0 0.0
        %2258 = vmatpush2.msra.mxu0 0.0
        %2259 = vmatprep.subr.mxu0 0.0
        %2260 = vmatpush2.msra.mxu0 0.0
        %2261 = vmatprep.subr.mxu0 0.0
        %2262 = vmatpush2.msra.mxu0 0.0
        %2263 = vmatprep.subr.mxu0 0.0
        %2264 = vmatpush2.msra.mxu0 0.0
        %2265 = vmatprep.subr.mxu0 0.0
        %2266 = vmatpush2.msra.mxu0 0.0
        %2267 = vmatprep.mubr.f32.mxu0 0.0
        %2268 = vmatmul.mubr.f32.gmra.mxu0 %v2201
        %v2269 = vpop.f32.mrf.mxu0
        %v2270 = vadd.f32 0.0, %v2269
        %v2271 = vpop.f32.mrf.mxu0
        %2272 = vdwg.mxu0
        %v2273 = vld [vmem:[%s8] sm:$0xff]
        %v2274 = vld [vmem:[%s8 + $0x8] sm:$0xff]
        %v2275 = vld [vmem:[%s8 + $0x10] sm:$0xff]
        %v2276 = vld [vmem:[%s8 + $0x18] sm:$0xff]
        %v2278 = vsel %vm1606, %v2051, 0
        %2280 = vmatprep.subr.mxu0 0.0
        %2281 = vmatpush1.msra.mxu0 0.0
        %2282 = vmatprep.subr.mxu0 0.0
        %2283 = vmatpush1.msra.mxu0 0.0
        %2284 = vmatprep.subr.mxu0 0.0
        %2285 = vmatpush1.msra.mxu0 0.0
        %2286 = vmatprep.subr.mxu0 0.0
        %2287 = vmatpush1.msra.mxu0 0.0
        %2288 = vmatprep.subr.mxu0 0.0
        %2289 = vmatpush1.msra.mxu0 0.0
        %2290 = vmatprep.subr.mxu0 0.0
        %2291 = vmatpush1.msra.mxu0 0.0
        %2292 = vmatprep.subr.mxu0 0.0
        %2293 = vmatpush1.msra.mxu0 0.0
        %2294 = vmatprep.subr.mxu0 0.0
        %2295 = vmatpush1.msra.mxu0 0.0
        %2296 = vmatprep.subr.mxu0 0.0
        %2297 = vmatpush1.msra.mxu0 0.0
        %2298 = vmatprep.subr.mxu0 0.0
        %2299 = vmatpush1.msra.mxu0 0.0
        %2300 = vmatprep.subr.mxu0 0.0
        %2301 = vmatpush1.msra.mxu0 0.0
        %2302 = vmatprep.subr.mxu0 0.0
        %2303 = vmatpush1.msra.mxu0 0.0
        %2304 = vmatprep.subr.mxu0 0.0
        %2305 = vmatpush1.msra.mxu0 0.0
        %2306 = vmatprep.subr.mxu0 0.0
        %2307 = vmatpush1.msra.mxu0 0.0
        %2308 = vmatprep.subr.mxu0 0.0
        %2309 = vmatpush1.msra.mxu0 0.0
        %2310 = vmatprep.subr.mxu0 0.0
        %2311 = vmatpush1.msra.mxu0 %v2273
        %2312 = vmatprep.subr.mxu0 0.0
        %2313 = vmatpush2.msra.mxu0 0.0
        %2314 = vmatprep.subr.mxu0 0.0
        %2315 = vmatpush2.msra.mxu0 0.0
        %2316 = vmatprep.subr.mxu0 0.0
        %2317 = vmatpush2.msra.mxu0 0.0
        %2318 = vmatprep.subr.mxu0 0.0
        %2319 = vmatpush2.msra.mxu0 0.0
        %2320 = vmatprep.subr.mxu0 0.0
        %2321 = vmatpush2.msra.mxu0 0.0
        %2322 = vmatprep.subr.mxu0 0.0
        %2323 = vmatpush2.msra.mxu0 0.0
        %2324 = vmatprep.subr.mxu0 0.0
        %2325 = vmatpush2.msra.mxu0 0.0
        %2326 = vmatprep.subr.mxu0 0.0
        %2327 = vmatpush2.msra.mxu0 0.0
        %2328 = vmatprep.subr.mxu0 0.0
        %2329 = vmatpush2.msra.mxu0 0.0
        %2330 = vmatprep.subr.mxu0 0.0
        %2331 = vmatpush2.msra.mxu0 0.0
        %2332 = vmatprep.subr.mxu0 0.0
        %2333 = vmatpush2.msra.mxu0 0.0
        %2334 = vmatprep.subr.mxu0 0.0
        %2335 = vmatpush2.msra.mxu0 0.0
        %2336 = vmatprep.subr.mxu0 0.0
        %2337 = vmatpush2.msra.mxu0 0.0
        %2338 = vmatprep.subr.mxu0 0.0
        %2339 = vmatpush2.msra.mxu0 0.0
        %2340 = vmatprep.subr.mxu0 0.0
        %2341 = vmatpush2.msra.mxu0 0.0
        %2342 = vmatprep.subr.mxu0 0.0
        %2343 = vmatpush2.msra.mxu0 0.0
        %2344 = vmatprep.mubr.f32.mxu0 0.0
        %2345 = vmatmul.mubr.f32.gmra.mxu0 %v2278
        %v2346 = vpop.f32.mrf.mxu0
        %v2347 = vadd.f32 0.0, %v2346
        %v2348 = vpop.f32.mrf.mxu0
        %2349 = vdwg.mxu0
        %v2351 = vsel %vm1606, %v2124, 0
        %2353 = vmatprep.subr.mxu0 0.0
        %2354 = vmatpush1.msra.mxu0 0.0
        %2355 = vmatprep.subr.mxu0 0.0
        %2356 = vmatpush1.msra.mxu0 0.0
        %2357 = vmatprep.subr.mxu0 0.0
        %2358 = vmatpush1.msra.mxu0 0.0
        %2359 = vmatprep.subr.mxu0 0.0
        %2360 = vmatpush1.msra.mxu0 0.0
        %2361 = vmatprep.subr.mxu0 0.0
        %2362 = vmatpush1.msra.mxu0 0.0
        %2363 = vmatprep.subr.mxu0 0.0
        %2364 = vmatpush1.msra.mxu0 0.0
        %2365 = vmatprep.subr.mxu0 0.0
        %2366 = vmatpush1.msra.mxu0 0.0
        %2367 = vmatprep.subr.mxu0 0.0
        %2368 = vmatpush1.msra.mxu0 0.0
        %2369 = vmatprep.subr.mxu0 0.0
        %2370 = vmatpush1.msra.mxu0 0.0
        %2371 = vmatprep.subr.mxu0 0.0
        %2372 = vmatpush1.msra.mxu0 0.0
        %2373 = vmatprep.subr.mxu0 0.0
        %2374 = vmatpush1.msra.mxu0 0.0
        %2375 = vmatprep.subr.mxu0 0.0
        %2376 = vmatpush1.msra.mxu0 0.0
        %2377 = vmatprep.subr.mxu0 0.0
        %2378 = vmatpush1.msra.mxu0 0.0
        %2379 = vmatprep.subr.mxu0 0.0
        %2380 = vmatpush1.msra.mxu0 0.0
        %2381 = vmatprep.subr.mxu0 0.0
        %2382 = vmatpush1.msra.mxu0 0.0
        %2383 = vmatprep.subr.mxu0 0.0
        %2384 = vmatpush1.msra.mxu0 %v2274
        %2385 = vmatprep.subr.mxu0 0.0
        %2386 = vmatpush2.msra.mxu0 0.0
        %2387 = vmatprep.subr.mxu0 0.0
        %2388 = vmatpush2.msra.mxu0 0.0
        %2389 = vmatprep.subr.mxu0 0.0
        %2390 = vmatpush2.msra.mxu0 0.0
        %2391 = vmatprep.subr.mxu0 0.0
        %2392 = vmatpush2.msra.mxu0 0.0
        %2393 = vmatprep.subr.mxu0 0.0
        %2394 = vmatpush2.msra.mxu0 0.0
        %2395 = vmatprep.subr.mxu0 0.0
        %2396 = vmatpush2.msra.mxu0 0.0
        %2397 = vmatprep.subr.mxu0 0.0
        %2398 = vmatpush2.msra.mxu0 0.0
        %2399 = vmatprep.subr.mxu0 0.0
        %2400 = vmatpush2.msra.mxu0 0.0
        %2401 = vmatprep.subr.mxu0 0.0
        %2402 = vmatpush2.msra.mxu0 0.0
        %2403 = vmatprep.subr.mxu0 0.0
        %2404 = vmatpush2.msra.mxu0 0.0
        %2405 = vmatprep.subr.mxu0 0.0
        %2406 = vmatpush2.msra.mxu0 0.0
        %2407 = vmatprep.subr.mxu0 0.0
        %2408 = vmatpush2.msra.mxu0 0.0
        %2409 = vmatprep.subr.mxu0 0.0
        %2410 = vmatpush2.msra.mxu0 0.0
        %2411 = vmatprep.subr.mxu0 0.0
        %2412 = vmatpush2.msra.mxu0 0.0
        %2413 = vmatprep.subr.mxu0 0.0
        %2414 = vmatpush2.msra.mxu0 0.0
        %2415 = vmatprep.subr.mxu0 0.0
        %2416 = vmatpush2.msra.mxu0 0.0
        %2417 = vmatprep.mubr.f32.mxu0 0.0
        %2418 = vmatmul.mubr.f32.gmra.mxu0 %v2351
        %v2419 = vpop.f32.mrf.mxu0
        %v2420 = vadd.f32 0.0, %v2419
        %v2421 = vpop.f32.mrf.mxu0
        %2422 = vdwg.mxu0
        %v2424 = vsel %vm1606, %v2197, 0
        %2426 = vmatprep.subr.mxu0 0.0
        %2427 = vmatpush1.msra.mxu0 0.0
        %2428 = vmatprep.subr.mxu0 0.0
        %2429 = vmatpush1.msra.mxu0 0.0
        %2430 = vmatprep.subr.mxu0 0.0
        %2431 = vmatpush1.msra.mxu0 0.0
        %2432 = vmatprep.subr.mxu0 0.0
        %2433 = vmatpush1.msra.mxu0 0.0
        %2434 = vmatprep.subr.mxu0 0.0
        %2435 = vmatpush1.msra.mxu0 0.0
        %2436 = vmatprep.subr.mxu0 0.0
        %2437 = vmatpush1.msra.mxu0 0.0
        %2438 = vmatprep.subr.mxu0 0.0
        %2439 = vmatpush1.msra.mxu0 0.0
        %2440 = vmatprep.subr.mxu0 0.0
        %2441 = vmatpush1.msra.mxu0 0.0
        %2442 = vmatprep.subr.mxu0 0.0
        %2443 = vmatpush1.msra.mxu0 0.0
        %2444 = vmatprep.subr.mxu0 0.0
        %2445 = vmatpush1.msra.mxu0 0.0
        %2446 = vmatprep.subr.mxu0 0.0
        %2447 = vmatpush1.msra.mxu0 0.0
        %2448 = vmatprep.subr.mxu0 0.0
        %2449 = vmatpush1.msra.mxu0 0.0
        %2450 = vmatprep.subr.mxu0 0.0
        %2451 = vmatpush1.msra.mxu0 0.0
        %2452 = vmatprep.subr.mxu0 0.0
        %2453 = vmatpush1.msra.mxu0 0.0
        %2454 = vmatprep.subr.mxu0 0.0
        %2455 = vmatpush1.msra.mxu0 0.0
        %2456 = vmatprep.subr.mxu0 0.0
        %2457 = vmatpush1.msra.mxu0 %v2275
        %2458 = vmatprep.subr.mxu0 0.0
        %2459 = vmatpush2.msra.mxu0 0.0
        %2460 = vmatprep.subr.mxu0 0.0
        %2461 = vmatpush2.msra.mxu0 0.0
        %2462 = vmatprep.subr.mxu0 0.0
        %2463 = vmatpush2.msra.mxu0 0.0
        %2464 = vmatprep.subr.mxu0 0.0
        %2465 = vmatpush2.msra.mxu0 0.0
        %2466 = vmatprep.subr.mxu0 0.0
        %2467 = vmatpush2.msra.mxu0 0.0
        %2468 = vmatprep.subr.mxu0 0.0
        %2469 = vmatpush2.msra.mxu0 0.0
        %2470 = vmatprep.subr.mxu0 0.0
        %2471 = vmatpush2.msra.mxu0 0.0
        %2472 = vmatprep.subr.mxu0 0.0
        %2473 = vmatpush2.msra.mxu0 0.0
        %2474 = vmatprep.subr.mxu0 0.0
        %2475 = vmatpush2.msra.mxu0 0.0
        %2476 = vmatprep.subr.mxu0 0.0
        %2477 = vmatpush2.msra.mxu0 0.0
        %2478 = vmatprep.subr.mxu0 0.0
        %2479 = vmatpush2.msra.mxu0 0.0
        %2480 = vmatprep.subr.mxu0 0.0
        %2481 = vmatpush2.msra.mxu0 0.0
        %2482 = vmatprep.subr.mxu0 0.0
        %2483 = vmatpush2.msra.mxu0 0.0
        %2484 = vmatprep.subr.mxu0 0.0
        %2485 = vmatpush2.msra.mxu0 0.0
        %2486 = vmatprep.subr.mxu0 0.0
        %2487 = vmatpush2.msra.mxu0 0.0
        %2488 = vmatprep.subr.mxu0 0.0
        %2489 = vmatpush2.msra.mxu0 0.0
        %2490 = vmatprep.mubr.f32.mxu0 0.0
        %2491 = vmatmul.mubr.f32.gmra.mxu0 %v2424
        %v2492 = vpop.f32.mrf.mxu0
        %v2493 = vadd.f32 0.0, %v2492
        %v2494 = vpop.f32.mrf.mxu0
        %2495 = vdwg.mxu0
        %v2497 = vsel %vm1606, %v2270, 0
        %2499 = vmatprep.subr.mxu0 0.0
        %2500 = vmatpush1.msra.mxu0 0.0
        %2501 = vmatprep.subr.mxu0 0.0
        %2502 = vmatpush1.msra.mxu0 0.0
        %2503 = vmatprep.subr.mxu0 0.0
        %2504 = vmatpush1.msra.mxu0 0.0
        %2505 = vmatprep.subr.mxu0 0.0
        %2506 = vmatpush1.msra.mxu0 0.0
        %2507 = vmatprep.subr.mxu0 0.0
        %2508 = vmatpush1.msra.mxu0 0.0
        %2509 = vmatprep.subr.mxu0 0.0
        %2510 = vmatpush1.msra.mxu0 0.0
        %2511 = vmatprep.subr.mxu0 0.0
        %2512 = vmatpush1.msra.mxu0 0.0
        %2513 = vmatprep.subr.mxu0 0.0
        %2514 = vmatpush1.msra.mxu0 0.0
        %2515 = vmatprep.subr.mxu0 0.0
        %2516 = vmatpush1.msra.mxu0 0.0
        %2517 = vmatprep.subr.mxu0 0.0
        %2518 = vmatpush1.msra.mxu0 0.0
        %2519 = vmatprep.subr.mxu0 0.0
        %2520 = vmatpush1.msra.mxu0 0.0
        %2521 = vmatprep.subr.mxu0 0.0
        %2522 = vmatpush1.msra.mxu0 0.0
        %2523 = vmatprep.subr.mxu0 0.0
        %2524 = vmatpush1.msra.mxu0 0.0
        %2525 = vmatprep.subr.mxu0 0.0
        %2526 = vmatpush1.msra.mxu0 0.0
        %2527 = vmatprep.subr.mxu0 0.0
        %2528 = vmatpush1.msra.mxu0 0.0
        %2529 = vmatprep.subr.mxu0 0.0
        %2530 = vmatpush1.msra.mxu0 %v2276
        %2531 = vmatprep.subr.mxu0 0.0
        %2532 = vmatpush2.msra.mxu0 0.0
        %2533 = vmatprep.subr.mxu0 0.0
        %2534 = vmatpush2.msra.mxu0 0.0
        %2535 = vmatprep.subr.mxu0 0.0
        %2536 = vmatpush2.msra.mxu0 0.0
        %2537 = vmatprep.subr.mxu0 0.0
        %2538 = vmatpush2.msra.mxu0 0.0
        %2539 = vmatprep.subr.mxu0 0.0
        %2540 = vmatpush2.msra.mxu0 0.0
        %2541 = vmatprep.subr.mxu0 0.0
        %2542 = vmatpush2.msra.mxu0 0.0
        %2543 = vmatprep.subr.mxu0 0.0
        %2544 = vmatpush2.msra.mxu0 0.0
        %2545 = vmatprep.subr.mxu0 0.0
        %2546 = vmatpush2.msra.mxu0 0.0
        %2547 = vmatprep.subr.mxu0 0.0
        %2548 = vmatpush2.msra.mxu0 0.0
        %2549 = vmatprep.subr.mxu0 0.0
        %2550 = vmatpush2.msra.mxu0 0.0
        %2551 = vmatprep.subr.mxu0 0.0
        %2552 = vmatpush2.msra.mxu0 0.0
        %2553 = vmatprep.subr.mxu0 0.0
        %2554 = vmatpush2.msra.mxu0 0.0
        %2555 = vmatprep.subr.mxu0 0.0
        %2556 = vmatpush2.msra.mxu0 0.0
        %2557 = vmatprep.subr.mxu0 0.0
        %2558 = vmatpush2.msra.mxu0 0.0
        %2559 = vmatprep.subr.mxu0 0.0
        %2560 = vmatpush2.msra.mxu0 0.0
        %2561 = vmatprep.subr.mxu0 0.0
        %2562 = vmatpush2.msra.mxu0 0.0
        %2563 = vmatprep.mubr.f32.mxu0 0.0
        %2564 = vmatmul.mubr.f32.gmra.mxu0 %v2497
        %v2565 = vpop.f32.mrf.mxu0
        %v2566 = vadd.f32 0.0, %v2565
        %v2567 = vpop.f32.mrf.mxu0
        %2568 = vdwg.mxu0
        %v2569 = vsel %vm674, %v2347, 0.0
        %v2570 = vsel %vm674, %v2420, 0.0
        %v2571 = vadd.f32 %v2569, %v2570
        %v2572 = vsel %vm674, %v2493, 0.0
        %v2573 = vadd.f32 %v2571, %v2572
        %v2574 = vsel %vm674, %v2566, 0.0
        %v2575 = vadd.f32 %v2573, %v2574
        %v2576 = vld [vmem:[%s9] sm:$0x1]
        %v2578 = vlaneseq
        %v2579 = vshrl.u32 %v2578, 7
        %v2580 = vsub.s32 0, %v2579
        %v2581 = vrot.slane %v2576, %v2580
        %v2583 = vadd.f32 %v2575, %v2581
        %v2584 = vadd.f32 %v626, %v2583
        %v2585 = vld [vmem:[%s10] sm:$0x1]
        %v2586 = vld [vmem:[%s11] sm:$0x1]
        %v2587 = vsel %vm674, %v2584, 0.0
        %2588 = vadd.xlane.f32.xlu0 %v2587
        %v2589 = vpop.xlane.xlu0 %2588
        %v2590 = vrcp.pop 32.0
        %v2591 = vmul.f32 %v2589, %v2590
        %v2592 = vsub.f32 %v2584, %v2591
        %v2593 = vmul.f32 %v2592, %v2592
        %v2594 = vsel %vm674, %v2593, 0.0
        %2595 = vadd.xlane.f32.xlu0 %v2594
        %v2596 = vpop.xlane.xlu0 %2595
        %v2597 = vmul.f32 %v2596, %v2590
        %v2598 = vadd.f32 %v2597, 1e-06
        %v2599 = vrsqrt.pop %v2598
        %v2600 = vmul.f32 %v2592, %v2599
        %v2602 = vlaneseq
        %v2603 = vshrl.u32 %v2602, 7
        %v2604 = vsub.s32 0, %v2603
        %v2605 = vrot.slane %v2585, %v2604
        %v2607 = vmul.f32 %v2600, %v2605
        %v2609 = vlaneseq
        %v2610 = vshrl.u32 %v2609, 7
        %v2611 = vsub.s32 0, %v2610
        %v2612 = vrot.slane %v2586, %v2611
        %v2614 = vadd.f32 %v2607, %v2612
        %v2615 = vld [vmem:[%s12] sm:$0xff]
        %v2616 = vld [vmem:[%s12 + $0x8] sm:$0xff]
        %v2617 = vld [vmem:[%s12 + $0x10] sm:$0xff]
        %v2618 = vld [vmem:[%s12 + $0x18] sm:$0xff]
        %v2619 = vld [vmem:[%s13] sm:$0x1]
        %v2621 = vlaneseq
        %v2622 = vshrl.u32 %v2621, 7
        %v2623 = vsub.s32 0, %v2622
        %v2624 = vrot.slane %v2619, %v2623
        %v2627 = vsel %vm674, %v2614, 0
        %2629 = vmatprep.subr.mxu0 0.0
        %2630 = vmatpush1.msra.mxu0 0.0
        %2631 = vmatprep.subr.mxu0 0.0
        %2632 = vmatpush1.msra.mxu0 0.0
        %2633 = vmatprep.subr.mxu0 0.0
        %2634 = vmatpush1.msra.mxu0 0.0
        %2635 = vmatprep.subr.mxu0 0.0
        %2636 = vmatpush1.msra.mxu0 0.0
        %2637 = vmatprep.subr.mxu0 0.0
        %2638 = vmatpush1.msra.mxu0 0.0
        %2639 = vmatprep.subr.mxu0 0.0
        %2640 = vmatpush1.msra.mxu0 0.0
        %2641 = vmatprep.subr.mxu0 0.0
        %2642 = vmatpush1.msra.mxu0 0.0
        %2643 = vmatprep.subr.mxu0 0.0
        %2644 = vmatpush1.msra.mxu0 0.0
        %2645 = vmatprep.subr.mxu0 0.0
        %2646 = vmatpush1.msra.mxu0 0.0
        %2647 = vmatprep.subr.mxu0 0.0
        %2648 = vmatpush1.msra.mxu0 0.0
        %2649 = vmatprep.subr.mxu0 0.0
        %2650 = vmatpush1.msra.mxu0 0.0
        %2651 = vmatprep.subr.mxu0 0.0
        %2652 = vmatpush1.msra.mxu0 0.0
        %2653 = vmatprep.subr.mxu0 0.0
        %2654 = vmatpush1.msra.mxu0 %v2618
        %2655 = vmatprep.subr.mxu0 0.0
        %2656 = vmatpush1.msra.mxu0 %v2617
        %2657 = vmatprep.subr.mxu0 0.0
        %2658 = vmatpush1.msra.mxu0 %v2616
        %2659 = vmatprep.subr.mxu0 0.0
        %2660 = vmatpush1.msra.mxu0 %v2615
        %2661 = vmatprep.subr.mxu0 0.0
        %2662 = vmatpush2.msra.mxu0 0.0
        %2663 = vmatprep.subr.mxu0 0.0
        %2664 = vmatpush2.msra.mxu0 0.0
        %2665 = vmatprep.subr.mxu0 0.0
        %2666 = vmatpush2.msra.mxu0 0.0
        %2667 = vmatprep.subr.mxu0 0.0
        %2668 = vmatpush2.msra.mxu0 0.0
        %2669 = vmatprep.subr.mxu0 0.0
        %2670 = vmatpush2.msra.mxu0 0.0
        %2671 = vmatprep.subr.mxu0 0.0
        %2672 = vmatpush2.msra.mxu0 0.0
        %2673 = vmatprep.subr.mxu0 0.0
        %2674 = vmatpush2.msra.mxu0 0.0
        %2675 = vmatprep.subr.mxu0 0.0
        %2676 = vmatpush2.msra.mxu0 0.0
        %2677 = vmatprep.subr.mxu0 0.0
        %2678 = vmatpush2.msra.mxu0 0.0
        %2679 = vmatprep.subr.mxu0 0.0
        %2680 = vmatpush2.msra.mxu0 0.0
        %2681 = vmatprep.subr.mxu0 0.0
        %2682 = vmatpush2.msra.mxu0 0.0
        %2683 = vmatprep.subr.mxu0 0.0
        %2684 = vmatpush2.msra.mxu0 0.0
        %2685 = vmatprep.subr.mxu0 0.0
        %2686 = vmatpush2.msra.mxu0 0.0
        %2687 = vmatprep.subr.mxu0 0.0
        %2688 = vmatpush2.msra.mxu0 0.0
        %2689 = vmatprep.subr.mxu0 0.0
        %2690 = vmatpush2.msra.mxu0 0.0
        %2691 = vmatprep.subr.mxu0 0.0
        %2692 = vmatpush2.msra.mxu0 0.0
        %2693 = vmatprep.mubr.f32.mxu0 0.0
        %2694 = vmatmul.mubr.f32.gmra.mxu0 %v2627
        %v2695 = vpop.f32.mrf.mxu0
        %v2696 = vadd.f32 %v2624, %v2695
        %v2697 = vpop.f32.mrf.mxu0
        %2698 = vdwg.mxu0
        %v2699 = vmul.f32 %v2696, 0.5
        %v2700 = vmul.f32 %v2696, %v2696
        %v2701 = vmul.f32 %v2700, %v2696
        %v2702 = vmul.f32 %v2701, 0.044715
        %v2703 = vadd.f32 %v2696, %v2702
        %v2704 = vmul.f32 %v2703, 0.7978846
        %v2705 = vtanh.pop %v2704
        %v2706 = vadd.f32 %v2705, 1.0
        %v2707 = vmul.f32 %v2699, %v2706
        %v2708 = vld [vmem:[%s14] sm:$0xff]
        %v2709 = vld [vmem:[%s14 + $0x8] sm:$0xff]
        %v2710 = vld [vmem:[%s14 + $0x10] sm:$0xff]
        %v2711 = vld [vmem:[%s14 + $0x18] sm:$0xff]
        %v2712 = vld [vmem:[%s14 + $0x20] sm:$0xff]
        %v2713 = vld [vmem:[%s14 + $0x28] sm:$0xff]
        %v2714 = vld [vmem:[%s14 + $0x30] sm:$0xff]
        %v2715 = vld [vmem:[%s14 + $0x38] sm:$0xff]
        %v2716 = vld [vmem:[%s15] sm:$0x1]
        %v2718 = vlaneseq
        %v2719 = vshrl.u32 %v2718, 7
        %v2720 = vsub.s32 0, %v2719
        %v2721 = vrot.slane %v2716, %v2720
        %vm2723 = vcmask 523264
        %v2725 = vsel %vm2723, %v2707, 0
        %2727 = vmatprep.subr.mxu0 0.0
        %2728 = vmatpush1.msra.mxu0 0.0
        %2729 = vmatprep.subr.mxu0 0.0
        %2730 = vmatpush1.msra.mxu0 0.0
        %2731 = vmatprep.subr.mxu0 0.0
        %2732 = vmatpush1.msra.mxu0 0.0
        %2733 = vmatprep.subr.mxu0 0.0
        %2734 = vmatpush1.msra.mxu0 0.0
        %2735 = vmatprep.subr.mxu0 0.0
        %2736 = vmatpush1.msra.mxu0 0.0
        %2737 = vmatprep.subr.mxu0 0.0
        %2738 = vmatpush1.msra.mxu0 0.0
        %2739 = vmatprep.subr.mxu0 0.0
        %2740 = vmatpush1.msra.mxu0 0.0
        %2741 = vmatprep.subr.mxu0 0.0
        %2742 = vmatpush1.msra.mxu0 0.0
        %2743 = vmatprep.subr.mxu0 0.0
        %2744 = vmatpush1.msra.mxu0 %v2715
        %2745 = vmatprep.subr.mxu0 0.0
        %2746 = vmatpush1.msra.mxu0 %v2714
        %2747 = vmatprep.subr.mxu0 0.0
        %2748 = vmatpush1.msra.mxu0 %v2713
        %2749 = vmatprep.subr.mxu0 0.0
        %2750 = vmatpush1.msra.mxu0 %v2712
        %2751 = vmatprep.subr.mxu0 0.0
        %2752 = vmatpush1.msra.mxu0 %v2711
        %2753 = vmatprep.subr.mxu0 0.0
        %2754 = vmatpush1.msra.mxu0 %v2710
        %2755 = vmatprep.subr.mxu0 0.0
        %2756 = vmatpush1.msra.mxu0 %v2709
        %2757 = vmatprep.subr.mxu0 0.0
        %2758 = vmatpush1.msra.mxu0 %v2708
        %2759 = vmatprep.subr.mxu0 0.0
        %2760 = vmatpush2.msra.mxu0 0.0
        %2761 = vmatprep.subr.mxu0 0.0
        %2762 = vmatpush2.msra.mxu0 0.0
        %2763 = vmatprep.subr.mxu0 0.0
        %2764 = vmatpush2.msra.mxu0 0.0
        %2765 = vmatprep.subr.mxu0 0.0
        %2766 = vmatpush2.msra.mxu0 0.0
        %2767 = vmatprep.subr.mxu0 0.0
        %2768 = vmatpush2.msra.mxu0 0.0
        %2769 = vmatprep.subr.mxu0 0.0
        %2770 = vmatpush2.msra.mxu0 0.0
        %2771 = vmatprep.subr.mxu0 0.0
        %2772 = vmatpush2.msra.mxu0 0.0
        %2773 = vmatprep.subr.mxu0 0.0
        %2774 = vmatpush2.msra.mxu0 0.0
        %2775 = vmatprep.subr.mxu0 0.0
        %2776 = vmatpush2.msra.mxu0 0.0
        %2777 = vmatprep.subr.mxu0 0.0
        %2778 = vmatpush2.msra.mxu0 0.0
        %2779 = vmatprep.subr.mxu0 0.0
        %2780 = vmatpush2.msra.mxu0 0.0
        %2781 = vmatprep.subr.mxu0 0.0
        %2782 = vmatpush2.msra.mxu0 0.0
        %2783 = vmatprep.subr.mxu0 0.0
        %2784 = vmatpush2.msra.mxu0 0.0
        %2785 = vmatprep.subr.mxu0 0.0
        %2786 = vmatpush2.msra.mxu0 0.0
        %2787 = vmatprep.subr.mxu0 0.0
        %2788 = vmatpush2.msra.mxu0 0.0
        %2789 = vmatprep.subr.mxu0 0.0
        %2790 = vmatpush2.msra.mxu0 0.0
        %2791 = vmatprep.mubr.f32.mxu0 0.0
        %2792 = vmatmul.mubr.f32.gmra.mxu0 %v2725
        %v2793 = vpop.f32.mrf.mxu0
        %v2794 = vadd.f32 %v2721, %v2793
        %v2795 = vpop.f32.mrf.mxu0
        %2796 = vdwg.mxu0
        %v2797 = vadd.f32 %v2794, %v2614
        %v2798 = vld [vmem:[%s16] sm:$0x1]
        %v2799 = vld [vmem:[%s17] sm:$0x1]
        %v2800 = vsel %vm674, %v2797, 0.0
        %2801 = vadd.xlane.f32.xlu0 %v2800
        %v2802 = vpop.xlane.xlu0 %2801
        %v2803 = vmul.f32 %v2802, %v2590
        %v2804 = vsub.f32 %v2797, %v2803
        %v2805 = vmul.f32 %v2804, %v2804
        %v2806 = vsel %vm674, %v2805, 0.0
        %2807 = vadd.xlane.f32.xlu0 %v2806
        %v2808 = vpop.xlane.xlu0 %2807
        %v2809 = vmul.f32 %v2808, %v2590
        %v2810 = vadd.f32 %v2809, 1e-06
        %v2811 = vrsqrt.pop %v2810
        %v2812 = vmul.f32 %v2804, %v2811
        %v2814 = vlaneseq
        %v2815 = vshrl.u32 %v2814, 7
        %v2816 = vsub.s32 0, %v2815
        %v2817 = vrot.slane %v2798, %v2816
        %v2819 = vmul.f32 %v2812, %v2817
        %v2821 = vlaneseq
        %v2822 = vshrl.u32 %v2821, 7
        %v2823 = vsub.s32 0, %v2822
        %v2824 = vrot.slane %v2799, %v2823
        %v2826 = vadd.f32 %v2819, %v2824
        %2827 = vst.msk [vmem:[%s610] sm:$0xff] %vm674, %v2826
        %s2828 = sand.u32 %s433, 1
        %s2829 = scalar_lea.sflag [#allocation3], %s2828
        %s2830 = sand.u32 %s433, 1
        %s2831 = smul.addr %s2830, 8
        %s2832 = scalar_lea.vmem [#allocation2], %s2831
        %s2833 = sand.u32 %s459, 1
        %s2834 = scalar_lea.sflag [#allocation5], %s2833
        %s2835 = sand.u32 %s459, 1
        %s2836 = smul.addr %s2835, 32
        %s2837 = scalar_lea.vmem [#allocation4], %s2836
        // Predicated region
        $region93: #{tpu_custom_call.1} parent=91 // pred_check
          %p2838 = pneg %p443
        $region94: #{tpu_custom_call.1} parent=91 // pred_check_branch
          %2840 = sbr.rel (%p2838) target = $region96
        $region95: #{tpu_custom_call.1} parent=91 // pred_region
          %s2842 = ssub.s32 128, 128
          %2843 = vsyncadd %s2829, %s2842
          %s2844 = smul.addr %s37, 128
          %s2845 = scalar_lea.hbm %s18, %s2844
          %s2847 = sshll.u32 %s2832, 4
          %s2848 = int_to_ptr.vmem [resolvable:$true] %s2847
          %2850 = dma.vmem_to_hbm [thread:$0]  %s2848, 128, %s2845, %s2829
        $region96: #{tpu_custom_call.1} parent=91 // pred_fallthru
          _
        // Predicated region
        $region97: #{tpu_custom_call.1} parent=91 // pred_check
          %p2851 = pneg %p469
        $region98: #{tpu_custom_call.1} parent=91 // pred_check_branch
          %2853 = sbr.rel (%p2851) target = $region100
        $region99: #{tpu_custom_call.1} parent=91 // pred_region
          %s2855 = ssub.s32 512, 512
          %2856 = vsyncadd %s2834, %s2855
          %s2857 = smul.addr %s37, 4
          %s2858 = smul.addr %s2857, 128
          %s2859 = scalar_lea.hbm %s19, %s2858
          %s2860 = sshll.u32 %s2837, 4
          %s2861 = int_to_ptr.vmem [resolvable:$true] %s2860
          %2866 = dma.vmem_to_hbm [thread:$0]  %s2861, 512, %s2859, %s2834, 128, 128, 8
        $region100: #{tpu_custom_call.1} parent=91 // pred_fallthru
          _
      $region92: #{tpu_custom_call.1} parent=5 // pred_fallthru
        _
      %p2867 = scmp.le.s32.totalorder 2, %s32
      // Predicated region
      $region101: #{tpu_custom_call.1} parent=5 // pred_check
        %p2868 = pneg %p2867
      $region102: #{tpu_custom_call.1} parent=5 // pred_check_branch
        %2870 = sbr.rel (%p2868) target = $region104
      $region103: #{tpu_custom_call.1} parent=5 // pred_region
        %s2871 = ssub.s32 %s32, 2
        // Predicated region
        $region105: #{tpu_custom_call.1} parent=103 // pred_check
          %p2872 = pneg %p449
        $region106: #{tpu_custom_call.1} parent=103 // pred_check_branch
          %2874 = sbr.rel (%p2872) target = $region108
        $region107: #{tpu_custom_call.1} parent=103 // pred_region
          %s2875 = sand.u32 %s434, 1
          %s2876 = scalar_lea.sflag [#allocation3], %s2875
          %s2877 = sand.u32 %s434, 1
          %s2878 = smul.addr %s2877, 8
          %s2879 = scalar_lea.vmem [#allocation2], %s2878
          %2880 = dma.done %s2876, 128
        $region108: #{tpu_custom_call.1} parent=103 // pred_fallthru
          _
        // Predicated region
        $region109: #{tpu_custom_call.1} parent=103 // pred_check
          %p2881 = pneg %p475
        $region110: #{tpu_custom_call.1} parent=103 // pred_check_branch
          %2883 = sbr.rel (%p2881) target = $region112
        $region111: #{tpu_custom_call.1} parent=103 // pred_region
          %s2884 = sand.u32 %s460, 1
          %s2885 = scalar_lea.sflag [#allocation5], %s2884
          %s2886 = sand.u32 %s460, 1
          %s2887 = smul.addr %s2886, 32
          %s2888 = scalar_lea.vmem [#allocation4], %s2887
          %2889 = dma.done %s2885, 512
        $region112: #{tpu_custom_call.1} parent=103 // pred_fallthru
          _
      $region104: #{tpu_custom_call.1} parent=5 // pred_fallthru
        _
    $region6: #{tpu_custom_call.1} parent=1 // loop_footer
      %s36 = sadd.s32 1, %s32
    $region7: #{tpu_custom_call.1} parent=1 // loop_footer_branch
      %31 = sbr.rel target = $region3
    $region8: #{tpu_custom_call.1} parent=1 // loop_exit
      _
    %2890 = vsyncpa [#allocation3], 1
    %s2891 = scalar_lea.sflag [#allocation3], 1
    %2892 = vsyncpa %s2891, 1
    %2893 = vsyncpa [#allocation5], 1
    %s2894 = scalar_lea.sflag [#allocation5], 1
    %2895 = vsyncpa %s2894, 1

</llo_original>
